<compile_context>
chip_gen: v7x
topology: tpu7x:2x2x1
jax: 0.10.0
libtpu: 0.0.40
codegen_flags: <defaults>
</compile_context>

<pallas_src>
import math

import jax
import jax.numpy as jnp
from jax.experimental import pallas as pl
from jax.experimental.pallas import tpu as pltpu

# Small, module-consistent sizes (original: hidden=312, num_class=len(set(y)))
B, S, H = 2, 8, 32          # batch, sequence, hidden
NH, HD = 4, 8               # heads, head_dim (NH * HD == H)
FFN = 64                    # intermediate size
VOCAB = 100                 # toy vocabulary
NTYPE = 2                   # token type vocabulary
NUM_CLASS = 5               # classifier output size
NUM_LAYERS = 2              # encoder layers
EPS = 1e-12
C_PAD = 128                 # lane-dense padded classifier width
MATMUL_DTYPE = jnp.bfloat16

# lvec (per-layer stacked (1, H) vectors) index layout
_BQ, _BK, _BV, _BO, _LN1G, _LN1B, _B2, _LN2G, _LN2B = range(9)
# ln_pool (global (1, H) vectors) index layout
_EMB_G, _EMB_B, _POOL_B = range(3)


# ---------------------------------------------------------------------------
# Kernel body (single fused forward)
# ---------------------------------------------------------------------------
def _layer_norm(x, g, b):
    mu = jnp.mean(x, axis=-1, keepdims=True)
    var = jnp.mean((x - mu) ** 2, axis=-1, keepdims=True)
    return (x - mu) * jax.lax.rsqrt(var + EPS) * g + b


def _mm(a, w):
    # bf16 MXU matmul with f32 accumulation.
    return jnp.dot(a.astype(MATMUL_DTYPE), w.astype(MATMUL_DTYPE),
                   preferred_element_type=jnp.float32)


def _to_heads(t2d):
    # (B*S, H) -> (B*NH, S, HD): head-batched layout for the attention einsums.
    return jnp.swapaxes(t2d.reshape(B, S, NH, HD), 1, 2).reshape(B * NH, S, HD)


def bert_forward_kernel(emb_ref, mask_ref,
                        ln_pool_ref,     # (3, 1, H): emb_ln_g, emb_ln_b, pool_b
                        wqkv_ref,        # (L, 3, H, H)  (Q third pre-scaled by 1/sqrt(HD))
                        wo_ref,          # (L, H, H)
                        lvec_ref,        # (L, 9, 1, H): bq,bk,bv,bo,ln1g,ln1b,b2,ln2g,ln2b
                        w1_ref, b1_ref, w2_ref,
                        pool_w_ref, cls_w_ref, cls_b_ref,
                        out_ref):
    # Embedding LayerNorm over the fused (B*S, H) slab.
    x = _layer_norm(emb_ref[...].reshape(B * S, H),
                    ln_pool_ref[_EMB_G], ln_pool_ref[_EMB_B])

    # Additive attention mask in f32, broadcast ONCE (hoisted out of all loops).
    mask_add = (1.0 - mask_ref[...]) * -1e9                                # (B, S)
    mask_bcast = jnp.broadcast_to(mask_add[:, None, None, :],
                                  (B, NH, S, S)).reshape(B * NH, S, S)     # (B*NH, Sq, Sk)

    def layer_body(l, x):
        wqkv_l = wqkv_ref[l]          # (3, H, H) bf16
        lv = lvec_ref[l]              # (9, 1, H) f32

        # QKV split on the leading weight axis (no lane-offset slicing).
        # 1/sqrt(HD) is already folded into wqkv_l[0] / lv[_BQ].
        q = _to_heads(_mm(x, wqkv_l[0]) + lv[_BQ])                         # (B*NH, S, HD)
        k = _to_heads(_mm(x, wqkv_l[1]) + lv[_BK])
        v = _to_heads(_mm(x, wqkv_l[2]) + lv[_BV])

        # Head-batched attention (single batch dim, contraction on HD).
        scores = jnp.einsum('gqd,gkd->gqk', q.astype(MATMUL_DTYPE),
                            k.astype(MATMUL_DTYPE),
                            preferred_element_type=jnp.float32) + mask_bcast
        m = jnp.max(scores, axis=-1, keepdims=True)
        e = jnp.exp(scores - m)
        p = e * pl.reciprocal(jnp.sum(e, axis=-1, keepdims=True), approx=True)
        ctx = jnp.einsum('gqk,gkd->gqd', p.astype(MATMUL_DTYPE),
                         v.astype(MATMUL_DTYPE),
                         preferred_element_type=jnp.float32)               # (B*NH, S, HD)
        # Back to row-major (B*S, H) via reshape (no concatenate).
        ctx = jnp.swapaxes(ctx.reshape(B, NH, S, HD), 1, 2).reshape(B * S, H)

        attn_out = _mm(ctx, wo_ref[l]) + lv[_BO]
        x1 = _layer_norm(x + attn_out, lv[_LN1G], lv[_LN1B])

        h1 = _mm(x1, w1_ref[l]) + b1_ref[l]
        # TODO(synk): HF/PyTorch BERT uses exact erf GELU; tanh approximation here.
        h1 = jax.nn.gelu(h1)
        h2 = _mm(h1, w2_ref[l]) + lv[_B2]
        return _layer_norm(x1 + h2, lv[_LN2G], lv[_LN2B])

    x = jax.lax.fori_loop(0, NUM_LAYERS, layer_body, x, unroll=True)

    # BERT pooler on [CLS]: tanh(Linear), then Dropout(0.3), then Linear(H, C).
    cls_tok = x.reshape(B, S, H)[:, 0, :]                                  # (B, H)
    pooled = jnp.tanh(_mm(cls_tok, pool_w_ref[...]) + ln_pool_ref[_POOL_B])
    # TODO(synk): nn.Dropout(0.3) is identity in eval/inference mode; no RNG path.
    # Lane-dense store: classifier weight/bias are zero-padded to C_PAD=128 lanes.
    out_ref[...] = _mm(pooled, cls_w_ref[...]) + cls_b_ref[...]            # (B, C_PAD)


# ---------------------------------------------------------------------------
# Pallas wrapper (single call for the whole forward)
# ---------------------------------------------------------------------------
_PARAM_ORDER = ['ln_pool', 'wqkv', 'wo', 'lvec', 'w1', 'b1', 'w2',
                'pool_w', 'cls_w', 'cls_b']


def bert_class_forward(ids, mask, token_type_ids, params):
    # Embedding gathers (glue, plain JAX).
    emb = (params['word_emb'][ids]
           + params['pos_emb'][None, :, :]
           + params['type_emb'][token_type_ids])                           # (B, S, H) f32
    maskf = mask.astype(jnp.float32)                                       # (B, S)

    weights = [params[n] for n in _PARAM_ORDER]
    n_in = 2 + len(weights)
    logits_padded = pl.pallas_call(
        bert_forward_kernel,
        out_shape=jax.ShapeDtypeStruct((B, C_PAD), jnp.float32),
        in_specs=[pl.BlockSpec(memory_space=pltpu.MemorySpace.VMEM)] * n_in,
        out_specs=pl.BlockSpec(memory_space=pltpu.MemorySpace.VMEM),
    )(emb, maskf, *weights)
    return logits_padded[:, :NUM_CLASS]


# ---------------------------------------------------------------------------
# Parameters (deterministic synthetic init; no checkpoint load)
# ---------------------------------------------------------------------------
def init_params(key):
    keys = iter(jax.random.split(key, 16))

    def nrm(shape, dtype=jnp.float32):
        return (0.02 * jax.random.normal(next(keys), shape, jnp.float32)).astype(dtype)

    L = NUM_LAYERS
    scale = 1.0 / math.sqrt(HD)

    # QKV weights (L, 3, H, H); fold the attention scale into the Q third.
    wqkv = nrm((L, 3, H, H), jnp.float32)
    wqkv = wqkv.at[:, 0].multiply(scale)
    wqkv = wqkv.astype(MATMUL_DTYPE)

    # Stacked per-layer (1, H) vectors: bq,bk,bv,bo,ln1g,ln1b,b2,ln2g,ln2b.
    lvec = jnp.zeros((L, 9, 1, H), jnp.float32)
    lvec = lvec.at[:, _LN1G].set(1.0)
    lvec = lvec.at[:, _LN2G].set(1.0)
    lvec = lvec.at[:, _BQ].multiply(scale)   # scale-folded Q bias (zeros here)

    # Stacked global (1, H) vectors: emb_ln_g, emb_ln_b, pool_b.
    ln_pool = jnp.zeros((3, 1, H), jnp.float32)
    ln_pool = ln_pool.at[_EMB_G].set(1.0)

    # Classifier weight zero-padded to 128 lanes (lane-dense output).
    cls_w = jnp.zeros((H, C_PAD), MATMUL_DTYPE)
    cls_w = cls_w.at[:, :NUM_CLASS].set(nrm((H, NUM_CLASS), MATMUL_DTYPE))

    return {
        'word_emb': nrm((VOCAB, H)),
        'pos_emb': nrm((S, H)),
        'type_emb': nrm((NTYPE, H)),
        'ln_pool': ln_pool,
        # Stacked per-layer weights, resident in VMEM inside the fused kernel.
        'wqkv': wqkv,
        'wo': nrm((L, H, H), MATMUL_DTYPE),
        'lvec': lvec,
        'w1': nrm((L, H, FFN), MATMUL_DTYPE),
        'b1': jnp.zeros((L, 1, FFN), jnp.float32),
        'w2': nrm((L, FFN, H), MATMUL_DTYPE),
        'pool_w': nrm((H, H), MATMUL_DTYPE),
        'cls_w': cls_w,
        'cls_b': jnp.zeros((1, C_PAD), jnp.float32),
    }


if __name__ == "__main__":
    key = jax.random.PRNGKey(0)
    pkey, ikey = jax.random.split(key)
    params = init_params(pkey)

    ids = jax.random.randint(ikey, (B, S), 0, VOCAB, dtype=jnp.int32)
    mask = jnp.ones((B, S), dtype=jnp.int32).at[1, 6:].set(0)   # pad tail of sample 1
    token_type_ids = jnp.zeros((B, S), dtype=jnp.int32)

    logits = bert_class_forward(ids, mask, token_type_ids, params)
    jax.block_until_ready(logits)
    assert logits.shape == (B, NUM_CLASS) and logits.dtype == jnp.float32
    assert bool(jnp.all(jnp.isfinite(logits)))
    print("KERNEL_OK")
</pallas_src>

<mosaic_0001>
module attributes {stable_mosaic.version = 11 : i64} {
  func.func @bert_forward_kernel(%arg0: memref<2x8x32xf32, #tpu.memory_space<vmem>>, %arg1: memref<2x8xf32, #tpu.memory_space<vmem>>, %arg2: memref<3x1x32xf32, #tpu.memory_space<vmem>>, %arg3: memref<2x3x32x32xbf16, #tpu.memory_space<vmem>>, %arg4: memref<2x32x32xbf16, #tpu.memory_space<vmem>>, %arg5: memref<2x9x1x32xf32, #tpu.memory_space<vmem>>, %arg6: memref<2x32x64xbf16, #tpu.memory_space<vmem>>, %arg7: memref<2x1x64xf32, #tpu.memory_space<vmem>>, %arg8: memref<2x64x32xbf16, #tpu.memory_space<vmem>>, %arg9: memref<32x32xbf16, #tpu.memory_space<vmem>>, %arg10: memref<32x128xbf16, #tpu.memory_space<vmem>>, %arg11: memref<1x128xf32, #tpu.memory_space<vmem>>, %arg12: memref<2x128xf32, #tpu.memory_space<vmem>>) attributes {dimension_semantics = [], scalar_prefetch = 0 : i64, scratch_operands = 0 : i64, tpu.core_type = #tpu.core_type<tc>} {
    %c0 = arith.constant 0 : index
    %c0_0 = arith.constant 0 : index
    %c0_1 = arith.constant 0 : index
    %0 = vector.load %arg0[%c0, %c0_0, %c0_1] : memref<2x8x32xf32, #tpu.memory_space<vmem>>, vector<2x8x32xf32>
    %1 = vector.shape_cast %0 : vector<2x8x32xf32> to vector<16x32xf32>
    %c0_2 = arith.constant 0 : index
    %c0_3 = arith.constant 0 : index
    %c0_4 = arith.constant 0 : index
    %2 = vector.load %arg2[%c0_2, %c0_3, %c0_4] : memref<3x1x32xf32, #tpu.memory_space<vmem>>, vector<1x1x32xf32>
    %3 = vector.shape_cast %2 : vector<1x1x32xf32> to vector<1x32xf32>
    %c1 = arith.constant 1 : index
    %c0_5 = arith.constant 0 : index
    %c0_6 = arith.constant 0 : index
    %4 = vector.load %arg2[%c1, %c0_5, %c0_6] : memref<3x1x32xf32, #tpu.memory_space<vmem>>, vector<1x1x32xf32>
    %5 = vector.shape_cast %4 : vector<1x1x32xf32> to vector<1x32xf32>
    %cst = arith.constant dense<0.000000e+00> : vector<16xf32>
    %6 = vector.multi_reduction <add>, %1, %cst [1] : vector<16x32xf32> to vector<16xf32>
    %7 = vector.shape_cast %6 : vector<16xf32> to vector<16x1xf32>
    %cst_7 = arith.constant 3.200000e+01 : f32
    %8 = vector.broadcast %cst_7 : f32 to vector<16x1xf32>
    %9 = arith.divf %7, %8 : vector<16x1xf32>
    %10 = vector.broadcast %9 : vector<16x1xf32> to vector<16x32xf32>
    %11 = arith.subf %1, %10 : vector<16x32xf32>
    %12 = arith.mulf %11, %11 : vector<16x32xf32>
    %cst_8 = arith.constant dense<0.000000e+00> : vector<16xf32>
    %13 = vector.multi_reduction <add>, %12, %cst_8 [1] : vector<16x32xf32> to vector<16xf32>
    %14 = vector.shape_cast %13 : vector<16xf32> to vector<16x1xf32>
    %cst_9 = arith.constant 3.200000e+01 : f32
    %15 = vector.broadcast %cst_9 : f32 to vector<16x1xf32>
    %16 = arith.divf %14, %15 : vector<16x1xf32>
    %17 = vector.broadcast %9 : vector<16x1xf32> to vector<16x32xf32>
    %18 = arith.subf %1, %17 : vector<16x32xf32>
    %cst_10 = arith.constant 9.99999996E-13 : f32
    %19 = vector.broadcast %cst_10 : f32 to vector<16x1xf32>
    %20 = arith.addf %16, %19 : vector<16x1xf32>
    %21 = math.rsqrt %20 : vector<16x1xf32>
    %22 = vector.broadcast %21 : vector<16x1xf32> to vector<16x32xf32>
    %23 = arith.mulf %18, %22 : vector<16x32xf32>
    %24 = vector.broadcast %3 : vector<1x32xf32> to vector<16x32xf32>
    %25 = arith.mulf %23, %24 : vector<16x32xf32>
    %26 = vector.broadcast %5 : vector<1x32xf32> to vector<16x32xf32>
    %27 = arith.addf %25, %26 : vector<16x32xf32>
    %c0_11 = arith.constant 0 : index
    %c0_12 = arith.constant 0 : index
    %28 = vector.load %arg1[%c0_11, %c0_12] : memref<2x8xf32, #tpu.memory_space<vmem>>, vector<2x8xf32>
    %cst_13 = arith.constant 1.000000e+00 : f32
    %29 = vector.broadcast %cst_13 : f32 to vector<2x8xf32>
    %30 = arith.subf %29, %28 : vector<2x8xf32>
    %cst_14 = arith.constant -1.000000e+09 : f32
    %31 = vector.broadcast %cst_14 : f32 to vector<2x8xf32>
    %32 = arith.mulf %30, %31 : vector<2x8xf32>
    %33 = vector.shape_cast %32 : vector<2x8xf32> to vector<2x1x1x8xf32>
    %34 = vector.shape_cast %33 : vector<2x1x1x8xf32> to vector<2x1x1x8xf32>
    %35 = vector.broadcast %34 : vector<2x1x1x8xf32> to vector<2x4x8x8xf32>
    %36 = vector.shape_cast %35 : vector<2x4x8x8xf32> to vector<8x8x8xf32>
    %c0_i32 = arith.constant 0 : i32
    %37 = arith.index_cast %c0_i32 : i32 to index
    %c0_15 = arith.constant 0 : index
    %c0_16 = arith.constant 0 : index
    %c0_17 = arith.constant 0 : index
    %38 = vector.load %arg3[%37, %c0_15, %c0_16, %c0_17] : memref<2x3x32x32xbf16, #tpu.memory_space<vmem>>, vector<1x3x32x32xbf16>
    %39 = vector.shape_cast %38 : vector<1x3x32x32xbf16> to vector<3x32x32xbf16>
    %40 = arith.index_cast %c0_i32 : i32 to index
    %c0_18 = arith.constant 0 : index
    %c0_19 = arith.constant 0 : index
    %c0_20 = arith.constant 0 : index
    %41 = vector.load %arg5[%40, %c0_18, %c0_19, %c0_20] : memref<2x9x1x32xf32, #tpu.memory_space<vmem>>, vector<1x9x1x32xf32>
    %42 = vector.shape_cast %41 : vector<1x9x1x32xf32> to vector<9x1x32xf32>
    %43 = vector.extract_strided_slice %39 {offsets = [0, 0, 0], sizes = [1, 32, 32], strides = [1, 1, 1]} : vector<3x32x32xbf16> to vector<1x32x32xbf16>
    %44 = vector.shape_cast %43 : vector<1x32x32xbf16> to vector<32x32xbf16>
    %45 = arith.truncf %27 : vector<16x32xf32> to vector<16x32xbf16>
    %cst_21 = arith.constant dense<0.000000e+00> : vector<16x32xf32>
    %46 = tpu.matmul %45, %44, %cst_21 {dimension_numbers = #tpu.dot_dimension_numbers<[1], [0], [0], [1], [0, 0, 1, 1], [], []>} : vector<16x32xbf16>, vector<32x32xbf16>, vector<16x32xf32> -> vector<16x32xf32>
    %47 = vector.extract_strided_slice %42 {offsets = [0, 0, 0], sizes = [1, 1, 32], strides = [1, 1, 1]} : vector<9x1x32xf32> to vector<1x1x32xf32>
    %48 = vector.shape_cast %47 : vector<1x1x32xf32> to vector<1x32xf32>
    %49 = vector.broadcast %48 : vector<1x32xf32> to vector<16x32xf32>
    %50 = arith.addf %46, %49 : vector<16x32xf32>
    %51 = vector.shape_cast %50 : vector<16x32xf32> to vector<2x8x4x8xf32>
    %52 = tpu.transpose %51, [0, 2, 1, 3] : vector<2x8x4x8xf32> -> vector<2x4x8x8xf32>
    %53 = vector.shape_cast %52 : vector<2x4x8x8xf32> to vector<8x8x8xf32>
    %54 = vector.extract_strided_slice %39 {offsets = [1, 0, 0], sizes = [1, 32, 32], strides = [1, 1, 1]} : vector<3x32x32xbf16> to vector<1x32x32xbf16>
    %55 = vector.shape_cast %54 : vector<1x32x32xbf16> to vector<32x32xbf16>
    %56 = arith.truncf %27 : vector<16x32xf32> to vector<16x32xbf16>
    %cst_22 = arith.constant dense<0.000000e+00> : vector<16x32xf32>
    %57 = tpu.matmul %56, %55, %cst_22 {dimension_numbers = #tpu.dot_dimension_numbers<[1], [0], [0], [1], [0, 0, 1, 1], [], []>} : vector<16x32xbf16>, vector<32x32xbf16>, vector<16x32xf32> -> vector<16x32xf32>
    %58 = vector.extract_strided_slice %42 {offsets = [1, 0, 0], sizes = [1, 1, 32], strides = [1, 1, 1]} : vector<9x1x32xf32> to vector<1x1x32xf32>
    %59 = vector.shape_cast %58 : vector<1x1x32xf32> to vector<1x32xf32>
    %60 = vector.broadcast %59 : vector<1x32xf32> to vector<16x32xf32>
    %61 = arith.addf %57, %60 : vector<16x32xf32>
    %62 = vector.shape_cast %61 : vector<16x32xf32> to vector<2x8x4x8xf32>
    %63 = tpu.transpose %62, [0, 2, 1, 3] : vector<2x8x4x8xf32> -> vector<2x4x8x8xf32>
    %64 = vector.shape_cast %63 : vector<2x4x8x8xf32> to vector<8x8x8xf32>
    %65 = vector.extract_strided_slice %39 {offsets = [2, 0, 0], sizes = [1, 32, 32], strides = [1, 1, 1]} : vector<3x32x32xbf16> to vector<1x32x32xbf16>
    %66 = vector.shape_cast %65 : vector<1x32x32xbf16> to vector<32x32xbf16>
    %67 = arith.truncf %27 : vector<16x32xf32> to vector<16x32xbf16>
    %cst_23 = arith.constant dense<0.000000e+00> : vector<16x32xf32>
    %68 = tpu.matmul %67, %66, %cst_23 {dimension_numbers = #tpu.dot_dimension_numbers<[1], [0], [0], [1], [0, 0, 1, 1], [], []>} : vector<16x32xbf16>, vector<32x32xbf16>, vector<16x32xf32> -> vector<16x32xf32>
    %69 = vector.extract_strided_slice %42 {offsets = [2, 0, 0], sizes = [1, 1, 32], strides = [1, 1, 1]} : vector<9x1x32xf32> to vector<1x1x32xf32>
    %70 = vector.shape_cast %69 : vector<1x1x32xf32> to vector<1x32xf32>
    %71 = vector.broadcast %70 : vector<1x32xf32> to vector<16x32xf32>
    %72 = arith.addf %68, %71 : vector<16x32xf32>
    %73 = vector.shape_cast %72 : vector<16x32xf32> to vector<2x8x4x8xf32>
    %74 = tpu.transpose %73, [0, 2, 1, 3] : vector<2x8x4x8xf32> -> vector<2x4x8x8xf32>
    %75 = vector.shape_cast %74 : vector<2x4x8x8xf32> to vector<8x8x8xf32>
    %76 = arith.truncf %53 : vector<8x8x8xf32> to vector<8x8x8xbf16>
    %77 = arith.truncf %64 : vector<8x8x8xf32> to vector<8x8x8xbf16>
    "tpu.trace_start"() <{level = 10 : i32, message = "gqd,gkd->gqk"}> : () -> ()
    %cst_24 = arith.constant dense<0.000000e+00> : vector<8x8x8xf32>
    %78 = tpu.matmul %76, %77, %cst_24 {dimension_numbers = #tpu.dot_dimension_numbers<[2], [2], [1], [1], [0, 0, 0, 1, 1, 1], [0], [0]>} : vector<8x8x8xbf16>, vector<8x8x8xbf16>, vector<8x8x8xf32> -> vector<8x8x8xf32>
    "tpu.trace_stop"() : () -> ()
    %79 = arith.addf %78, %36 : vector<8x8x8xf32>
    %cst_25 = arith.constant dense<0xFF800000> : vector<8x8xf32>
    %80 = vector.multi_reduction <maximumf>, %79, %cst_25 [2] : vector<8x8x8xf32> to vector<8x8xf32>
    %81 = vector.shape_cast %80 : vector<8x8xf32> to vector<8x8x1xf32>
    %82 = vector.broadcast %81 : vector<8x8x1xf32> to vector<8x8x8xf32>
    %83 = arith.subf %79, %82 : vector<8x8x8xf32>
    %84 = math.exp %83 : vector<8x8x8xf32>
    %cst_26 = arith.constant dense<0.000000e+00> : vector<8x8xf32>
    %85 = vector.multi_reduction <add>, %84, %cst_26 [2] : vector<8x8x8xf32> to vector<8x8xf32>
    %86 = vector.shape_cast %85 : vector<8x8xf32> to vector<8x8x1xf32>
    %87 = tpu.reciprocal %86 {approx = true} : vector<8x8x1xf32> -> vector<8x8x1xf32>
    %88 = vector.broadcast %87 : vector<8x8x1xf32> to vector<8x8x8xf32>
    %89 = arith.mulf %84, %88 : vector<8x8x8xf32>
    %90 = arith.truncf %89 : vector<8x8x8xf32> to vector<8x8x8xbf16>
    %91 = arith.truncf %75 : vector<8x8x8xf32> to vector<8x8x8xbf16>
    "tpu.trace_start"() <{level = 10 : i32, message = "gqk,gkd->gqd"}> : () -> ()
    %cst_27 = arith.constant dense<0.000000e+00> : vector<8x8x8xf32>
    %92 = tpu.matmul %90, %91, %cst_27 {dimension_numbers = #tpu.dot_dimension_numbers<[2], [1], [1], [2], [0, 0, 0, 1, 1, 2], [0], [0]>} : vector<8x8x8xbf16>, vector<8x8x8xbf16>, vector<8x8x8xf32> -> vector<8x8x8xf32>
    "tpu.trace_stop"() : () -> ()
    %93 = vector.shape_cast %92 : vector<8x8x8xf32> to vector<2x4x8x8xf32>
    %94 = tpu.transpose %93, [0, 2, 1, 3] : vector<2x4x8x8xf32> -> vector<2x8x4x8xf32>
    %95 = vector.shape_cast %94 : vector<2x8x4x8xf32> to vector<16x32xf32>
    %96 = arith.index_cast %c0_i32 : i32 to index
    %c0_28 = arith.constant 0 : index
    %c0_29 = arith.constant 0 : index
    %97 = vector.load %arg4[%96, %c0_28, %c0_29] : memref<2x32x32xbf16, #tpu.memory_space<vmem>>, vector<1x32x32xbf16>
    %98 = vector.shape_cast %97 : vector<1x32x32xbf16> to vector<32x32xbf16>
    %99 = arith.truncf %95 : vector<16x32xf32> to vector<16x32xbf16>
    %cst_30 = arith.constant dense<0.000000e+00> : vector<16x32xf32>
    %100 = tpu.matmul %99, %98, %cst_30 {dimension_numbers = #tpu.dot_dimension_numbers<[1], [0], [0], [1], [0, 0, 1, 1], [], []>} : vector<16x32xbf16>, vector<32x32xbf16>, vector<16x32xf32> -> vector<16x32xf32>
    %101 = vector.extract_strided_slice %42 {offsets = [3, 0, 0], sizes = [1, 1, 32], strides = [1, 1, 1]} : vector<9x1x32xf32> to vector<1x1x32xf32>
    %102 = vector.shape_cast %101 : vector<1x1x32xf32> to vector<1x32xf32>
    %103 = vector.broadcast %102 : vector<1x32xf32> to vector<16x32xf32>
    %104 = arith.addf %100, %103 : vector<16x32xf32>
    %105 = arith.addf %27, %104 : vector<16x32xf32>
    %106 = vector.extract_strided_slice %42 {offsets = [4, 0, 0], sizes = [1, 1, 32], strides = [1, 1, 1]} : vector<9x1x32xf32> to vector<1x1x32xf32>
    %107 = vector.shape_cast %106 : vector<1x1x32xf32> to vector<1x32xf32>
    %108 = vector.extract_strided_slice %42 {offsets = [5, 0, 0], sizes = [1, 1, 32], strides = [1, 1, 1]} : vector<9x1x32xf32> to vector<1x1x32xf32>
    %109 = vector.shape_cast %108 : vector<1x1x32xf32> to vector<1x32xf32>
    %cst_31 = arith.constant dense<0.000000e+00> : vector<16xf32>
    %110 = vector.multi_reduction <add>, %105, %cst_31 [1] : vector<16x32xf32> to vector<16xf32>
    %111 = vector.shape_cast %110 : vector<16xf32> to vector<16x1xf32>
    %cst_32 = arith.constant 3.200000e+01 : f32
    %112 = vector.broadcast %cst_32 : f32 to vector<16x1xf32>
    %113 = arith.divf %111, %112 : vector<16x1xf32>
    %114 = vector.broadcast %113 : vector<16x1xf32> to vector<16x32xf32>
    %115 = arith.subf %105, %114 : vector<16x32xf32>
    %116 = arith.mulf %115, %115 : vector<16x32xf32>
    %cst_33 = arith.constant dense<0.000000e+00> : vector<16xf32>
    %117 = vector.multi_reduction <add>, %116, %cst_33 [1] : vector<16x32xf32> to vector<16xf32>
    %118 = vector.shape_cast %117 : vector<16xf32> to vector<16x1xf32>
    %cst_34 = arith.constant 3.200000e+01 : f32
    %119 = vector.broadcast %cst_34 : f32 to vector<16x1xf32>
    %120 = arith.divf %118, %119 : vector<16x1xf32>
    %121 = vector.broadcast %113 : vector<16x1xf32> to vector<16x32xf32>
    %122 = arith.subf %105, %121 : vector<16x32xf32>
    %cst_35 = arith.constant 9.99999996E-13 : f32
    %123 = vector.broadcast %cst_35 : f32 to vector<16x1xf32>
    %124 = arith.addf %120, %123 : vector<16x1xf32>
    %125 = math.rsqrt %124 : vector<16x1xf32>
    %126 = vector.broadcast %125 : vector<16x1xf32> to vector<16x32xf32>
    %127 = arith.mulf %122, %126 : vector<16x32xf32>
    %128 = vector.broadcast %107 : vector<1x32xf32> to vector<16x32xf32>
    %129 = arith.mulf %127, %128 : vector<16x32xf32>
    %130 = vector.broadcast %109 : vector<1x32xf32> to vector<16x32xf32>
    %131 = arith.addf %129, %130 : vector<16x32xf32>
    %132 = arith.index_cast %c0_i32 : i32 to index
    %c0_36 = arith.constant 0 : index
    %c0_37 = arith.constant 0 : index
    %133 = vector.load %arg6[%132, %c0_36, %c0_37] : memref<2x32x64xbf16, #tpu.memory_space<vmem>>, vector<1x32x64xbf16>
    %134 = vector.shape_cast %133 : vector<1x32x64xbf16> to vector<32x64xbf16>
    %135 = arith.truncf %131 : vector<16x32xf32> to vector<16x32xbf16>
    %cst_38 = arith.constant dense<0.000000e+00> : vector<16x64xf32>
    %136 = tpu.matmul %135, %134, %cst_38 {dimension_numbers = #tpu.dot_dimension_numbers<[1], [0], [0], [1], [0, 0, 1, 1], [], []>} : vector<16x32xbf16>, vector<32x64xbf16>, vector<16x64xf32> -> vector<16x64xf32>
    %137 = arith.index_cast %c0_i32 : i32 to index
    %c0_39 = arith.constant 0 : index
    %c0_40 = arith.constant 0 : index
    %138 = vector.load %arg7[%137, %c0_39, %c0_40] : memref<2x1x64xf32, #tpu.memory_space<vmem>>, vector<1x1x64xf32>
    %139 = vector.shape_cast %138 : vector<1x1x64xf32> to vector<1x64xf32>
    %140 = vector.broadcast %139 : vector<1x64xf32> to vector<16x64xf32>
    %141 = arith.addf %136, %140 : vector<16x64xf32>
    %142 = arith.mulf %141, %141 : vector<16x64xf32>
    %143 = arith.mulf %141, %142 : vector<16x64xf32>
    %cst_41 = arith.constant 4.471500e-02 : f32
    %144 = vector.broadcast %cst_41 : f32 to vector<16x64xf32>
    %145 = arith.mulf %144, %143 : vector<16x64xf32>
    %146 = arith.addf %141, %145 : vector<16x64xf32>
    %cst_42 = arith.constant 0.797884583 : f32
    %147 = vector.broadcast %cst_42 : f32 to vector<16x64xf32>
    %148 = arith.mulf %147, %146 : vector<16x64xf32>
    %149 = math.tanh %148 : vector<16x64xf32>
    %cst_43 = arith.constant 1.000000e+00 : f32
    %150 = vector.broadcast %cst_43 : f32 to vector<16x64xf32>
    %151 = arith.addf %150, %149 : vector<16x64xf32>
    %cst_44 = arith.constant 5.000000e-01 : f32
    %152 = vector.broadcast %cst_44 : f32 to vector<16x64xf32>
    %153 = arith.mulf %152, %151 : vector<16x64xf32>
    %154 = arith.mulf %141, %153 : vector<16x64xf32>
    %155 = arith.index_cast %c0_i32 : i32 to index
    %c0_45 = arith.constant 0 : index
    %c0_46 = arith.constant 0 : index
    %156 = vector.load %arg8[%155, %c0_45, %c0_46] : memref<2x64x32xbf16, #tpu.memory_space<vmem>>, vector<1x64x32xbf16>
    %157 = vector.shape_cast %156 : vector<1x64x32xbf16> to vector<64x32xbf16>
    %158 = arith.truncf %154 : vector<16x64xf32> to vector<16x64xbf16>
    %cst_47 = arith.constant dense<0.000000e+00> : vector<16x32xf32>
    %159 = tpu.matmul %158, %157, %cst_47 {dimension_numbers = #tpu.dot_dimension_numbers<[1], [0], [0], [1], [0, 0, 1, 1], [], []>} : vector<16x64xbf16>, vector<64x32xbf16>, vector<16x32xf32> -> vector<16x32xf32>
    %160 = vector.extract_strided_slice %42 {offsets = [6, 0, 0], sizes = [1, 1, 32], strides = [1, 1, 1]} : vector<9x1x32xf32> to vector<1x1x32xf32>
    %161 = vector.shape_cast %160 : vector<1x1x32xf32> to vector<1x32xf32>
    %162 = vector.broadcast %161 : vector<1x32xf32> to vector<16x32xf32>
    %163 = arith.addf %159, %162 : vector<16x32xf32>
    %164 = arith.addf %131, %163 : vector<16x32xf32>
    %165 = vector.extract_strided_slice %42 {offsets = [7, 0, 0], sizes = [1, 1, 32], strides = [1, 1, 1]} : vector<9x1x32xf32> to vector<1x1x32xf32>
    %166 = vector.shape_cast %165 : vector<1x1x32xf32> to vector<1x32xf32>
    %167 = vector.extract_strided_slice %42 {offsets = [8, 0, 0], sizes = [1, 1, 32], strides = [1, 1, 1]} : vector<9x1x32xf32> to vector<1x1x32xf32>
    %168 = vector.shape_cast %167 : vector<1x1x32xf32> to vector<1x32xf32>
    %cst_48 = arith.constant dense<0.000000e+00> : vector<16xf32>
    %169 = vector.multi_reduction <add>, %164, %cst_48 [1] : vector<16x32xf32> to vector<16xf32>
    %170 = vector.shape_cast %169 : vector<16xf32> to vector<16x1xf32>
    %cst_49 = arith.constant 3.200000e+01 : f32
    %171 = vector.broadcast %cst_49 : f32 to vector<16x1xf32>
    %172 = arith.divf %170, %171 : vector<16x1xf32>
    %173 = vector.broadcast %172 : vector<16x1xf32> to vector<16x32xf32>
    %174 = arith.subf %164, %173 : vector<16x32xf32>
    %175 = arith.mulf %174, %174 : vector<16x32xf32>
    %cst_50 = arith.constant dense<0.000000e+00> : vector<16xf32>
    %176 = vector.multi_reduction <add>, %175, %cst_50 [1] : vector<16x32xf32> to vector<16xf32>
    %177 = vector.shape_cast %176 : vector<16xf32> to vector<16x1xf32>
    %cst_51 = arith.constant 3.200000e+01 : f32
    %178 = vector.broadcast %cst_51 : f32 to vector<16x1xf32>
    %179 = arith.divf %177, %178 : vector<16x1xf32>
    %180 = vector.broadcast %172 : vector<16x1xf32> to vector<16x32xf32>
    %181 = arith.subf %164, %180 : vector<16x32xf32>
    %cst_52 = arith.constant 9.99999996E-13 : f32
    %182 = vector.broadcast %cst_52 : f32 to vector<16x1xf32>
    %183 = arith.addf %179, %182 : vector<16x1xf32>
    %184 = math.rsqrt %183 : vector<16x1xf32>
    %185 = vector.broadcast %184 : vector<16x1xf32> to vector<16x32xf32>
    %186 = arith.mulf %181, %185 : vector<16x32xf32>
    %187 = vector.broadcast %166 : vector<1x32xf32> to vector<16x32xf32>
    %188 = arith.mulf %186, %187 : vector<16x32xf32>
    %189 = vector.broadcast %168 : vector<1x32xf32> to vector<16x32xf32>
    %190 = arith.addf %188, %189 : vector<16x32xf32>
    %c1_i32 = arith.constant 1 : i32
    %191 = arith.index_cast %c1_i32 : i32 to index
    %c0_53 = arith.constant 0 : index
    %c0_54 = arith.constant 0 : index
    %c0_55 = arith.constant 0 : index
    %192 = vector.load %arg3[%191, %c0_53, %c0_54, %c0_55] : memref<2x3x32x32xbf16, #tpu.memory_space<vmem>>, vector<1x3x32x32xbf16>
    %193 = vector.shape_cast %192 : vector<1x3x32x32xbf16> to vector<3x32x32xbf16>
    %194 = arith.index_cast %c1_i32 : i32 to index
    %c0_56 = arith.constant 0 : index
    %c0_57 = arith.constant 0 : index
    %c0_58 = arith.constant 0 : index
    %195 = vector.load %arg5[%194, %c0_56, %c0_57, %c0_58] : memref<2x9x1x32xf32, #tpu.memory_space<vmem>>, vector<1x9x1x32xf32>
    %196 = vector.shape_cast %195 : vector<1x9x1x32xf32> to vector<9x1x32xf32>
    %197 = vector.extract_strided_slice %193 {offsets = [0, 0, 0], sizes = [1, 32, 32], strides = [1, 1, 1]} : vector<3x32x32xbf16> to vector<1x32x32xbf16>
    %198 = vector.shape_cast %197 : vector<1x32x32xbf16> to vector<32x32xbf16>
    %199 = arith.truncf %190 : vector<16x32xf32> to vector<16x32xbf16>
    %cst_59 = arith.constant dense<0.000000e+00> : vector<16x32xf32>
    %200 = tpu.matmul %199, %198, %cst_59 {dimension_numbers = #tpu.dot_dimension_numbers<[1], [0], [0], [1], [0, 0, 1, 1], [], []>} : vector<16x32xbf16>, vector<32x32xbf16>, vector<16x32xf32> -> vector<16x32xf32>
    %201 = vector.extract_strided_slice %196 {offsets = [0, 0, 0], sizes = [1, 1, 32], strides = [1, 1, 1]} : vector<9x1x32xf32> to vector<1x1x32xf32>
    %202 = vector.shape_cast %201 : vector<1x1x32xf32> to vector<1x32xf32>
    %203 = vector.broadcast %202 : vector<1x32xf32> to vector<16x32xf32>
    %204 = arith.addf %200, %203 : vector<16x32xf32>
    %205 = vector.shape_cast %204 : vector<16x32xf32> to vector<2x8x4x8xf32>
    %206 = tpu.transpose %205, [0, 2, 1, 3] : vector<2x8x4x8xf32> -> vector<2x4x8x8xf32>
    %207 = vector.shape_cast %206 : vector<2x4x8x8xf32> to vector<8x8x8xf32>
    %208 = vector.extract_strided_slice %193 {offsets = [1, 0, 0], sizes = [1, 32, 32], strides = [1, 1, 1]} : vector<3x32x32xbf16> to vector<1x32x32xbf16>
    %209 = vector.shape_cast %208 : vector<1x32x32xbf16> to vector<32x32xbf16>
    %210 = arith.truncf %190 : vector<16x32xf32> to vector<16x32xbf16>
    %cst_60 = arith.constant dense<0.000000e+00> : vector<16x32xf32>
    %211 = tpu.matmul %210, %209, %cst_60 {dimension_numbers = #tpu.dot_dimension_numbers<[1], [0], [0], [1], [0, 0, 1, 1], [], []>} : vector<16x32xbf16>, vector<32x32xbf16>, vector<16x32xf32> -> vector<16x32xf32>
    %212 = vector.extract_strided_slice %196 {offsets = [1, 0, 0], sizes = [1, 1, 32], strides = [1, 1, 1]} : vector<9x1x32xf32> to vector<1x1x32xf32>
    %213 = vector.shape_cast %212 : vector<1x1x32xf32> to vector<1x32xf32>
    %214 = vector.broadcast %213 : vector<1x32xf32> to vector<16x32xf32>
    %215 = arith.addf %211, %214 : vector<16x32xf32>
    %216 = vector.shape_cast %215 : vector<16x32xf32> to vector<2x8x4x8xf32>
    %217 = tpu.transpose %216, [0, 2, 1, 3] : vector<2x8x4x8xf32> -> vector<2x4x8x8xf32>
    %218 = vector.shape_cast %217 : vector<2x4x8x8xf32> to vector<8x8x8xf32>
    %219 = vector.extract_strided_slice %193 {offsets = [2, 0, 0], sizes = [1, 32, 32], strides = [1, 1, 1]} : vector<3x32x32xbf16> to vector<1x32x32xbf16>
    %220 = vector.shape_cast %219 : vector<1x32x32xbf16> to vector<32x32xbf16>
    %221 = arith.truncf %190 : vector<16x32xf32> to vector<16x32xbf16>
    %cst_61 = arith.constant dense<0.000000e+00> : vector<16x32xf32>
    %222 = tpu.matmul %221, %220, %cst_61 {dimension_numbers = #tpu.dot_dimension_numbers<[1], [0], [0], [1], [0, 0, 1, 1], [], []>} : vector<16x32xbf16>, vector<32x32xbf16>, vector<16x32xf32> -> vector<16x32xf32>
    %223 = vector.extract_strided_slice %196 {offsets = [2, 0, 0], sizes = [1, 1, 32], strides = [1, 1, 1]} : vector<9x1x32xf32> to vector<1x1x32xf32>
    %224 = vector.shape_cast %223 : vector<1x1x32xf32> to vector<1x32xf32>
    %225 = vector.broadcast %224 : vector<1x32xf32> to vector<16x32xf32>
    %226 = arith.addf %222, %225 : vector<16x32xf32>
    %227 = vector.shape_cast %226 : vector<16x32xf32> to vector<2x8x4x8xf32>
    %228 = tpu.transpose %227, [0, 2, 1, 3] : vector<2x8x4x8xf32> -> vector<2x4x8x8xf32>
    %229 = vector.shape_cast %228 : vector<2x4x8x8xf32> to vector<8x8x8xf32>
    %230 = arith.truncf %207 : vector<8x8x8xf32> to vector<8x8x8xbf16>
    %231 = arith.truncf %218 : vector<8x8x8xf32> to vector<8x8x8xbf16>
    "tpu.trace_start"() <{level = 10 : i32, message = "gqd,gkd->gqk"}> : () -> ()
    %cst_62 = arith.constant dense<0.000000e+00> : vector<8x8x8xf32>
    %232 = tpu.matmul %230, %231, %cst_62 {dimension_numbers = #tpu.dot_dimension_numbers<[2], [2], [1], [1], [0, 0, 0, 1, 1, 1], [0], [0]>} : vector<8x8x8xbf16>, vector<8x8x8xbf16>, vector<8x8x8xf32> -> vector<8x8x8xf32>
    "tpu.trace_stop"() : () -> ()
    %233 = arith.addf %232, %36 : vector<8x8x8xf32>
    %cst_63 = arith.constant dense<0xFF800000> : vector<8x8xf32>
    %234 = vector.multi_reduction <maximumf>, %233, %cst_63 [2] : vector<8x8x8xf32> to vector<8x8xf32>
    %235 = vector.shape_cast %234 : vector<8x8xf32> to vector<8x8x1xf32>
    %236 = vector.broadcast %235 : vector<8x8x1xf32> to vector<8x8x8xf32>
    %237 = arith.subf %233, %236 : vector<8x8x8xf32>
    %238 = math.exp %237 : vector<8x8x8xf32>
    %cst_64 = arith.constant dense<0.000000e+00> : vector<8x8xf32>
    %239 = vector.multi_reduction <add>, %238, %cst_64 [2] : vector<8x8x8xf32> to vector<8x8xf32>
    %240 = vector.shape_cast %239 : vector<8x8xf32> to vector<8x8x1xf32>
    %241 = tpu.reciprocal %240 {approx = true} : vector<8x8x1xf32> -> vector<8x8x1xf32>
    %242 = vector.broadcast %241 : vector<8x8x1xf32> to vector<8x8x8xf32>
    %243 = arith.mulf %238, %242 : vector<8x8x8xf32>
    %244 = arith.truncf %243 : vector<8x8x8xf32> to vector<8x8x8xbf16>
    %245 = arith.truncf %229 : vector<8x8x8xf32> to vector<8x8x8xbf16>
    "tpu.trace_start"() <{level = 10 : i32, message = "gqk,gkd->gqd"}> : () -> ()
    %cst_65 = arith.constant dense<0.000000e+00> : vector<8x8x8xf32>
    %246 = tpu.matmul %244, %245, %cst_65 {dimension_numbers = #tpu.dot_dimension_numbers<[2], [1], [1], [2], [0, 0, 0, 1, 1, 2], [0], [0]>} : vector<8x8x8xbf16>, vector<8x8x8xbf16>, vector<8x8x8xf32> -> vector<8x8x8xf32>
    "tpu.trace_stop"() : () -> ()
    %247 = vector.shape_cast %246 : vector<8x8x8xf32> to vector<2x4x8x8xf32>
    %248 = tpu.transpose %247, [0, 2, 1, 3] : vector<2x4x8x8xf32> -> vector<2x8x4x8xf32>
    %249 = vector.shape_cast %248 : vector<2x8x4x8xf32> to vector<16x32xf32>
    %250 = arith.index_cast %c1_i32 : i32 to index
    %c0_66 = arith.constant 0 : index
    %c0_67 = arith.constant 0 : index
    %251 = vector.load %arg4[%250, %c0_66, %c0_67] : memref<2x32x32xbf16, #tpu.memory_space<vmem>>, vector<1x32x32xbf16>
    %252 = vector.shape_cast %251 : vector<1x32x32xbf16> to vector<32x32xbf16>
    %253 = arith.truncf %249 : vector<16x32xf32> to vector<16x32xbf16>
    %cst_68 = arith.constant dense<0.000000e+00> : vector<16x32xf32>
    %254 = tpu.matmul %253, %252, %cst_68 {dimension_numbers = #tpu.dot_dimension_numbers<[1], [0], [0], [1], [0, 0, 1, 1], [], []>} : vector<16x32xbf16>, vector<32x32xbf16>, vector<16x32xf32> -> vector<16x32xf32>
    %255 = vector.extract_strided_slice %196 {offsets = [3, 0, 0], sizes = [1, 1, 32], strides = [1, 1, 1]} : vector<9x1x32xf32> to vector<1x1x32xf32>
    %256 = vector.shape_cast %255 : vector<1x1x32xf32> to vector<1x32xf32>
    %257 = vector.broadcast %256 : vector<1x32xf32> to vector<16x32xf32>
    %258 = arith.addf %254, %257 : vector<16x32xf32>
    %259 = arith.addf %190, %258 : vector<16x32xf32>
    %260 = vector.extract_strided_slice %196 {offsets = [4, 0, 0], sizes = [1, 1, 32], strides = [1, 1, 1]} : vector<9x1x32xf32> to vector<1x1x32xf32>
    %261 = vector.shape_cast %260 : vector<1x1x32xf32> to vector<1x32xf32>
    %262 = vector.extract_strided_slice %196 {offsets = [5, 0, 0], sizes = [1, 1, 32], strides = [1, 1, 1]} : vector<9x1x32xf32> to vector<1x1x32xf32>
    %263 = vector.shape_cast %262 : vector<1x1x32xf32> to vector<1x32xf32>
    %cst_69 = arith.constant dense<0.000000e+00> : vector<16xf32>
    %264 = vector.multi_reduction <add>, %259, %cst_69 [1] : vector<16x32xf32> to vector<16xf32>
    %265 = vector.shape_cast %264 : vector<16xf32> to vector<16x1xf32>
    %cst_70 = arith.constant 3.200000e+01 : f32
    %266 = vector.broadcast %cst_70 : f32 to vector<16x1xf32>
    %267 = arith.divf %265, %266 : vector<16x1xf32>
    %268 = vector.broadcast %267 : vector<16x1xf32> to vector<16x32xf32>
    %269 = arith.subf %259, %268 : vector<16x32xf32>
    %270 = arith.mulf %269, %269 : vector<16x32xf32>
    %cst_71 = arith.constant dense<0.000000e+00> : vector<16xf32>
    %271 = vector.multi_reduction <add>, %270, %cst_71 [1] : vector<16x32xf32> to vector<16xf32>
    %272 = vector.shape_cast %271 : vector<16xf32> to vector<16x1xf32>
    %cst_72 = arith.constant 3.200000e+01 : f32
    %273 = vector.broadcast %cst_72 : f32 to vector<16x1xf32>
    %274 = arith.divf %272, %273 : vector<16x1xf32>
    %275 = vector.broadcast %267 : vector<16x1xf32> to vector<16x32xf32>
    %276 = arith.subf %259, %275 : vector<16x32xf32>
    %cst_73 = arith.constant 9.99999996E-13 : f32
    %277 = vector.broadcast %cst_73 : f32 to vector<16x1xf32>
    %278 = arith.addf %274, %277 : vector<16x1xf32>
    %279 = math.rsqrt %278 : vector<16x1xf32>
    %280 = vector.broadcast %279 : vector<16x1xf32> to vector<16x32xf32>
    %281 = arith.mulf %276, %280 : vector<16x32xf32>
    %282 = vector.broadcast %261 : vector<1x32xf32> to vector<16x32xf32>
    %283 = arith.mulf %281, %282 : vector<16x32xf32>
    %284 = vector.broadcast %263 : vector<1x32xf32> to vector<16x32xf32>
    %285 = arith.addf %283, %284 : vector<16x32xf32>
    %286 = arith.index_cast %c1_i32 : i32 to index
    %c0_74 = arith.constant 0 : index
    %c0_75 = arith.constant 0 : index
    %287 = vector.load %arg6[%286, %c0_74, %c0_75] : memref<2x32x64xbf16, #tpu.memory_space<vmem>>, vector<1x32x64xbf16>
    %288 = vector.shape_cast %287 : vector<1x32x64xbf16> to vector<32x64xbf16>
    %289 = arith.truncf %285 : vector<16x32xf32> to vector<16x32xbf16>
    %cst_76 = arith.constant dense<0.000000e+00> : vector<16x64xf32>
    %290 = tpu.matmul %289, %288, %cst_76 {dimension_numbers = #tpu.dot_dimension_numbers<[1], [0], [0], [1], [0, 0, 1, 1], [], []>} : vector<16x32xbf16>, vector<32x64xbf16>, vector<16x64xf32> -> vector<16x64xf32>
    %291 = arith.index_cast %c1_i32 : i32 to index
    %c0_77 = arith.constant 0 : index
    %c0_78 = arith.constant 0 : index
    %292 = vector.load %arg7[%291, %c0_77, %c0_78] : memref<2x1x64xf32, #tpu.memory_space<vmem>>, vector<1x1x64xf32>
    %293 = vector.shape_cast %292 : vector<1x1x64xf32> to vector<1x64xf32>
    %294 = vector.broadcast %293 : vector<1x64xf32> to vector<16x64xf32>
    %295 = arith.addf %290, %294 : vector<16x64xf32>
    %296 = arith.mulf %295, %295 : vector<16x64xf32>
    %297 = arith.mulf %295, %296 : vector<16x64xf32>
    %cst_79 = arith.constant 4.471500e-02 : f32
    %298 = vector.broadcast %cst_79 : f32 to vector<16x64xf32>
    %299 = arith.mulf %298, %297 : vector<16x64xf32>
    %300 = arith.addf %295, %299 : vector<16x64xf32>
    %cst_80 = arith.constant 0.797884583 : f32
    %301 = vector.broadcast %cst_80 : f32 to vector<16x64xf32>
    %302 = arith.mulf %301, %300 : vector<16x64xf32>
    %303 = math.tanh %302 : vector<16x64xf32>
    %cst_81 = arith.constant 1.000000e+00 : f32
    %304 = vector.broadcast %cst_81 : f32 to vector<16x64xf32>
    %305 = arith.addf %304, %303 : vector<16x64xf32>
    %cst_82 = arith.constant 5.000000e-01 : f32
    %306 = vector.broadcast %cst_82 : f32 to vector<16x64xf32>
    %307 = arith.mulf %306, %305 : vector<16x64xf32>
    %308 = arith.mulf %295, %307 : vector<16x64xf32>
    %309 = arith.index_cast %c1_i32 : i32 to index
    %c0_83 = arith.constant 0 : index
    %c0_84 = arith.constant 0 : index
    %310 = vector.load %arg8[%309, %c0_83, %c0_84] : memref<2x64x32xbf16, #tpu.memory_space<vmem>>, vector<1x64x32xbf16>
    %311 = vector.shape_cast %310 : vector<1x64x32xbf16> to vector<64x32xbf16>
    %312 = arith.truncf %308 : vector<16x64xf32> to vector<16x64xbf16>
    %cst_85 = arith.constant dense<0.000000e+00> : vector<16x32xf32>
    %313 = tpu.matmul %312, %311, %cst_85 {dimension_numbers = #tpu.dot_dimension_numbers<[1], [0], [0], [1], [0, 0, 1, 1], [], []>} : vector<16x64xbf16>, vector<64x32xbf16>, vector<16x32xf32> -> vector<16x32xf32>
    %314 = vector.extract_strided_slice %196 {offsets = [6, 0, 0], sizes = [1, 1, 32], strides = [1, 1, 1]} : vector<9x1x32xf32> to vector<1x1x32xf32>
    %315 = vector.shape_cast %314 : vector<1x1x32xf32> to vector<1x32xf32>
    %316 = vector.broadcast %315 : vector<1x32xf32> to vector<16x32xf32>
    %317 = arith.addf %313, %316 : vector<16x32xf32>
    %318 = arith.addf %285, %317 : vector<16x32xf32>
    %319 = vector.extract_strided_slice %196 {offsets = [7, 0, 0], sizes = [1, 1, 32], strides = [1, 1, 1]} : vector<9x1x32xf32> to vector<1x1x32xf32>
    %320 = vector.shape_cast %319 : vector<1x1x32xf32> to vector<1x32xf32>
    %321 = vector.extract_strided_slice %196 {offsets = [8, 0, 0], sizes = [1, 1, 32], strides = [1, 1, 1]} : vector<9x1x32xf32> to vector<1x1x32xf32>
    %322 = vector.shape_cast %321 : vector<1x1x32xf32> to vector<1x32xf32>
    %cst_86 = arith.constant dense<0.000000e+00> : vector<16xf32>
    %323 = vector.multi_reduction <add>, %318, %cst_86 [1] : vector<16x32xf32> to vector<16xf32>
    %324 = vector.shape_cast %323 : vector<16xf32> to vector<16x1xf32>
    %cst_87 = arith.constant 3.200000e+01 : f32
    %325 = vector.broadcast %cst_87 : f32 to vector<16x1xf32>
    %326 = arith.divf %324, %325 : vector<16x1xf32>
    %327 = vector.broadcast %326 : vector<16x1xf32> to vector<16x32xf32>
    %328 = arith.subf %318, %327 : vector<16x32xf32>
    %329 = arith.mulf %328, %328 : vector<16x32xf32>
    %cst_88 = arith.constant dense<0.000000e+00> : vector<16xf32>
    %330 = vector.multi_reduction <add>, %329, %cst_88 [1] : vector<16x32xf32> to vector<16xf32>
    %331 = vector.shape_cast %330 : vector<16xf32> to vector<16x1xf32>
    %cst_89 = arith.constant 3.200000e+01 : f32
    %332 = vector.broadcast %cst_89 : f32 to vector<16x1xf32>
    %333 = arith.divf %331, %332 : vector<16x1xf32>
    %334 = vector.broadcast %326 : vector<16x1xf32> to vector<16x32xf32>
    %335 = arith.subf %318, %334 : vector<16x32xf32>
    %cst_90 = arith.constant 9.99999996E-13 : f32
    %336 = vector.broadcast %cst_90 : f32 to vector<16x1xf32>
    %337 = arith.addf %333, %336 : vector<16x1xf32>
    %338 = math.rsqrt %337 : vector<16x1xf32>
    %339 = vector.broadcast %338 : vector<16x1xf32> to vector<16x32xf32>
    %340 = arith.mulf %335, %339 : vector<16x32xf32>
    %341 = vector.broadcast %320 : vector<1x32xf32> to vector<16x32xf32>
    %342 = arith.mulf %340, %341 : vector<16x32xf32>
    %343 = vector.broadcast %322 : vector<1x32xf32> to vector<16x32xf32>
    %344 = arith.addf %342, %343 : vector<16x32xf32>
    %c2_i32 = arith.constant 2 : i32
    %345 = vector.shape_cast %344 : vector<16x32xf32> to vector<2x8x32xf32>
    %346 = vector.extract_strided_slice %345 {offsets = [0, 0, 0], sizes = [2, 1, 32], strides = [1, 1, 1]} : vector<2x8x32xf32> to vector<2x1x32xf32>
    %347 = vector.shape_cast %346 : vector<2x1x32xf32> to vector<2x32xf32>
    %c0_91 = arith.constant 0 : index
    %c0_92 = arith.constant 0 : index
    %348 = vector.load %arg9[%c0_91, %c0_92] : memref<32x32xbf16, #tpu.memory_space<vmem>>, vector<32x32xbf16>
    %349 = arith.truncf %347 : vector<2x32xf32> to vector<2x32xbf16>
    %cst_93 = arith.constant dense<0.000000e+00> : vector<2x32xf32>
    %350 = tpu.matmul %349, %348, %cst_93 {dimension_numbers = #tpu.dot_dimension_numbers<[1], [0], [0], [1], [0, 0, 1, 1], [], []>} : vector<2x32xbf16>, vector<32x32xbf16>, vector<2x32xf32> -> vector<2x32xf32>
    %c2 = arith.constant 2 : index
    %c0_94 = arith.constant 0 : index
    %c0_95 = arith.constant 0 : index
    %351 = vector.load %arg2[%c2, %c0_94, %c0_95] : memref<3x1x32xf32, #tpu.memory_space<vmem>>, vector<1x1x32xf32>
    %352 = vector.shape_cast %351 : vector<1x1x32xf32> to vector<1x32xf32>
    %353 = vector.broadcast %352 : vector<1x32xf32> to vector<2x32xf32>
    %354 = arith.addf %350, %353 : vector<2x32xf32>
    %355 = math.tanh %354 : vector<2x32xf32>
    %c0_96 = arith.constant 0 : index
    %c0_97 = arith.constant 0 : index
    %356 = vector.load %arg10[%c0_96, %c0_97] : memref<32x128xbf16, #tpu.memory_space<vmem>>, vector<32x128xbf16>
    %357 = arith.truncf %355 : vector<2x32xf32> to vector<2x32xbf16>
    %cst_98 = arith.constant dense<0.000000e+00> : vector<2x128xf32>
    %358 = tpu.matmul %357, %356, %cst_98 {dimension_numbers = #tpu.dot_dimension_numbers<[1], [0], [0], [1], [0, 0, 1, 1], [], []>} : vector<2x32xbf16>, vector<32x128xbf16>, vector<2x128xf32> -> vector<2x128xf32>
    %c0_99 = arith.constant 0 : index
    %c0_100 = arith.constant 0 : index
    %359 = vector.load %arg11[%c0_99, %c0_100] : memref<1x128xf32, #tpu.memory_space<vmem>>, vector<1x128xf32>
    %360 = vector.broadcast %359 : vector<1x128xf32> to vector<2x128xf32>
    %361 = arith.addf %358, %360 : vector<2x128xf32>
    %c0_101 = arith.constant 0 : index
    %c0_102 = arith.constant 0 : index
    %362 = vector.load %arg12[%c0_101, %c0_102] : memref<2x128xf32, #tpu.memory_space<vmem>>, vector<2x128xf32>
    tpu.vector_store %arg12[%c0_101, %c0_102], %361 {strides = array<i32>} : memref<2x128xf32, #tpu.memory_space<vmem>>, vector<2x128xf32>,
    return
  }
}

</mosaic_0001>

<llo_original>
// kernel: tpu_custom_call.1
$region0: #{tpu_custom_call.1}
  #allocation0 [shape = 'u32[]', space=smem, size = 0x4, offset = 0x4, fixed_abs, tag = 'smem constant byte address 0x4 - core index']
  #allocation1 [shape = 'u32[144,128]{1,0:T(1,128)}', space=vmem, size = 0x12000, scoped, tag = 'internal scratch']
  %s0 = inlined_call_operand.hbm [shape: f32[2,8,32], index: 0, kind: input, shape index: {}]
  %s1 = inlined_call_operand.hbm [shape: f32[2,8], index: 1, kind: input, shape index: {}]
  %s2 = inlined_call_operand.hbm [shape: f32[3,1,32], index: 2, kind: input, shape index: {}]
  %s3 = inlined_call_operand.vmem [shape: bf16[2,3,32,32], index: 3, kind: input, shape index: {}]
  %s4 = inlined_call_operand.hbm [shape: bf16[2,32,32], index: 4, kind: input, shape index: {}]
  %s5 = inlined_call_operand.vmem [shape: f32[2,9,1,32], index: 5, kind: input, shape index: {}]
  %s6 = inlined_call_operand.hbm [shape: bf16[2,32,64], index: 6, kind: input, shape index: {}]
  %s7 = inlined_call_operand.hbm [shape: f32[2,1,64], index: 7, kind: input, shape index: {}]
  %s8 = inlined_call_operand.vmem [shape: bf16[2,64,32], index: 8, kind: input, shape index: {}]
  %s9 = inlined_call_operand.vmem [shape: bf16[32,32], index: 9, kind: input, shape index: {}]
  %s10 = inlined_call_operand.hbm [shape: bf16[32,128], index: 10, kind: input, shape index: {}]
  %s11 = inlined_call_operand.vmem [shape: f32[1,128], index: 11, kind: input, shape index: {}]
  %s12 = inlined_call_operand.hbm [shape: f32[2,128], index: 12, kind: output, shape index: {}]
  %s13 = sld [smem:[#allocation0]]
  $region86: #{tpu_custom_call.1} parent=0
    _
  %s15 = ssub.s32 1, %s13
  %s16 = scalar_select 0, %s15, %s13
  $region1: #{tpu_custom_call.1} parent=0
    #allocation2 [shape = 'u8[8192]{0}', space=vmem, size = 0x2000, scoped, tag = 'input window, operand 0, single buffered']
    #allocation3 [shape = 's32[1]{0}', space=sflag, size = 0x4, scoped, tag = 'scoped memory for tpu_custom_call.1']
    #allocation4 [shape = 's32[1]{0}', space=sflag, size = 0x4, scoped, tag = 'scoped memory for tpu_custom_call.1']
    #allocation5 [shape = 'u8[1024]{0}', space=vmem, size = 0x400, scoped, tag = 'input window, operand 1, single buffered']
    #allocation6 [shape = 's32[1]{0}', space=sflag, size = 0x4, scoped, tag = 'scoped memory for tpu_custom_call.1']
    #allocation7 [shape = 'u8[1536]{0}', space=vmem, size = 0x800, scoped, tag = 'input window, operand 2, single buffered']
    #allocation8 [shape = 'u8[16384]{0}', space=vmem, size = 0x4000, scoped, tag = 'input window, operand 4, single buffered']
    #allocation9 [shape = 's32[1]{0}', space=sflag, size = 0x4, scoped, tag = 'scoped memory for tpu_custom_call.1']
    #allocation10 [shape = 'u8[16384]{0}', space=vmem, size = 0x4000, scoped, tag = 'input window, operand 6, single buffered']
    #allocation11 [shape = 'u8[1024]{0}', space=vmem, size = 0x400, scoped, tag = 'input window, operand 7, single buffered']
    #allocation12 [shape = 's32[1]{0}', space=sflag, size = 0x4, scoped, tag = 'scoped memory for tpu_custom_call.1']
    #allocation13 [shape = 'u8[8192]{0}', space=vmem, size = 0x2000, scoped, tag = 'input window, operand 10, single buffered']
    #allocation14 [shape = 'u8[1024]{0}', space=vmem, size = 0x400, scoped, tag = 'output window, operand 0, single buffered']
    %17 = vsyncpa [#allocation3], 0
    %18 = vsyncpa [#allocation6], 0
    %19 = vsyncpa [#allocation9], 0
    %20 = vsyncpa [#allocation12], 0
    %21 = vsyncpa [#allocation4], 0
    // Predicated region
    $region2: #{tpu_custom_call.1} parent=1 // pred_check
      _
    $region3: #{tpu_custom_call.1} parent=1 // pred_check_branch
      %23 = sbr.rel (0) target = $region5
    $region4: #{tpu_custom_call.1} parent=1 // pred_region
      %s25 = ssub.s32 256, 256
      %26 = vsyncadd [#allocation3], %s25
      %s27 = sshll.u32 [#allocation2], 4
      %s28 = int_to_ptr.vmem [resolvable:$true] %s27
      %33 = dma.hbm_to_vmem [thread:$0]  %s0, 256, %s28, [#allocation3], 128, 128, 8
    $region5: #{tpu_custom_call.1} parent=1 // pred_fallthru
      _
    // Predicated region
    $region6: #{tpu_custom_call.1} parent=1 // pred_check
      _
    $region7: #{tpu_custom_call.1} parent=1 // pred_check_branch
      %35 = sbr.rel (0) target = $region9
    $region8: #{tpu_custom_call.1} parent=1 // pred_region
      %s37 = ssub.s32 32, 32
      %38 = vsyncadd [#allocation6], %s37
      %s40 = sshll.u32 [#allocation5], 4
      %s41 = int_to_ptr.vmem [resolvable:$true] %s40
      %43 = dma.hbm_to_vmem [thread:$0]  %s1, 32, %s41, [#allocation6]
    $region9: #{tpu_custom_call.1} parent=1 // pred_fallthru
      _
    // Predicated region
    $region10: #{tpu_custom_call.1} parent=1 // pred_check
      _
    $region11: #{tpu_custom_call.1} parent=1 // pred_check_branch
      %45 = sbr.rel (0) target = $region13
    $region12: #{tpu_custom_call.1} parent=1 // pred_region
      %s47 = ssub.s32 48, 48
      %48 = vsyncadd [#allocation6], %s47
      %s49 = sshll.u32 [#allocation7], 4
      %s50 = int_to_ptr.vmem [resolvable:$true] %s49
      %55 = dma.hbm_to_vmem [thread:$0]  %s2, 48, %s50, [#allocation6], 16, 16, 1
    $region13: #{tpu_custom_call.1} parent=1 // pred_fallthru
      _
    // Predicated region
    $region14: #{tpu_custom_call.1} parent=1 // pred_check
      _
    $region15: #{tpu_custom_call.1} parent=1 // pred_check_branch
      %57 = sbr.rel (0) target = $region17
    $region16: #{tpu_custom_call.1} parent=1 // pred_region
      _
    $region17: #{tpu_custom_call.1} parent=1 // pred_fallthru
      _
    // Predicated region
    $region18: #{tpu_custom_call.1} parent=1 // pred_check
      _
    $region19: #{tpu_custom_call.1} parent=1 // pred_check_branch
      %59 = sbr.rel (0) target = $region21
    $region20: #{tpu_custom_call.1} parent=1 // pred_region
      %s61 = ssub.s32 512, 512
      %62 = vsyncadd [#allocation9], %s61
      %s63 = sshll.u32 [#allocation8], 4
      %s64 = int_to_ptr.vmem [resolvable:$true] %s63
      %69 = dma.hbm_to_vmem [thread:$0]  %s4, 512, %s64, [#allocation9], 64, 64, 4
    $region21: #{tpu_custom_call.1} parent=1 // pred_fallthru
      _
    // Predicated region
    $region22: #{tpu_custom_call.1} parent=1 // pred_check
      _
    $region23: #{tpu_custom_call.1} parent=1 // pred_check_branch
      %71 = sbr.rel (0) target = $region25
    $region24: #{tpu_custom_call.1} parent=1 // pred_region
      _
    $region25: #{tpu_custom_call.1} parent=1 // pred_fallthru
      _
    // Predicated region
    $region26: #{tpu_custom_call.1} parent=1 // pred_check
      _
    $region27: #{tpu_custom_call.1} parent=1 // pred_check_branch
      %73 = sbr.rel (0) target = $region29
    $region28: #{tpu_custom_call.1} parent=1 // pred_region
      %s75 = ssub.s32 512, 512
      %76 = vsyncadd [#allocation9], %s75
      %s77 = sshll.u32 [#allocation10], 4
      %s78 = int_to_ptr.vmem [resolvable:$true] %s77
      %83 = dma.hbm_to_vmem [thread:$0]  %s6, 512, %s78, [#allocation9], 64, 64, 4
    $region29: #{tpu_custom_call.1} parent=1 // pred_fallthru
      _
    // Predicated region
    $region30: #{tpu_custom_call.1} parent=1 // pred_check
      _
    $region31: #{tpu_custom_call.1} parent=1 // pred_check_branch
      %85 = sbr.rel (0) target = $region33
    $region32: #{tpu_custom_call.1} parent=1 // pred_region
      %s87 = ssub.s32 32, 32
      %88 = vsyncadd [#allocation12], %s87
      %s89 = sshll.u32 [#allocation11], 4
      %s90 = int_to_ptr.vmem [resolvable:$true] %s89
      %95 = dma.hbm_to_vmem [thread:$0]  %s7, 32, %s90, [#allocation12], 16, 16, 1
    $region33: #{tpu_custom_call.1} parent=1 // pred_fallthru
      _
    // Predicated region
    $region34: #{tpu_custom_call.1} parent=1 // pred_check
      _
    $region35: #{tpu_custom_call.1} parent=1 // pred_check_branch
      %97 = sbr.rel (0) target = $region37
    $region36: #{tpu_custom_call.1} parent=1 // pred_region
      _
    $region37: #{tpu_custom_call.1} parent=1 // pred_fallthru
      _
    // Predicated region
    $region38: #{tpu_custom_call.1} parent=1 // pred_check
      _
    $region39: #{tpu_custom_call.1} parent=1 // pred_check_branch
      %99 = sbr.rel (0) target = $region41
    $region40: #{tpu_custom_call.1} parent=1 // pred_region
      _
    $region41: #{tpu_custom_call.1} parent=1 // pred_fallthru
      _
    // Predicated region
    $region42: #{tpu_custom_call.1} parent=1 // pred_check
      _
    $region43: #{tpu_custom_call.1} parent=1 // pred_check_branch
      %101 = sbr.rel (0) target = $region45
    $region44: #{tpu_custom_call.1} parent=1 // pred_region
      %s103 = ssub.s32 256, 256
      %104 = vsyncadd [#allocation12], %s103
      %s105 = sshll.u32 [#allocation13], 4
      %s106 = int_to_ptr.vmem [resolvable:$true] %s105
      %111 = dma.hbm_to_vmem [thread:$0]  %s10, 256, %s106, [#allocation12], 64, 64, 4
    $region45: #{tpu_custom_call.1} parent=1 // pred_fallthru
      _
    // Predicated region
    $region46: #{tpu_custom_call.1} parent=1 // pred_check
      _
    $region47: #{tpu_custom_call.1} parent=1 // pred_check_branch
      %113 = sbr.rel (0) target = $region49
    $region48: #{tpu_custom_call.1} parent=1 // pred_region
      _
    $region49: #{tpu_custom_call.1} parent=1 // pred_fallthru
      _
    // Predicated region
    $region50: #{tpu_custom_call.1} parent=1 // pred_check
      _
    $region51: #{tpu_custom_call.1} parent=1 // pred_check_branch
      %115 = sbr.rel (0) target = $region53
    $region52: #{tpu_custom_call.1} parent=1 // pred_region
      %116 = dma.done [#allocation3], 256
    $region53: #{tpu_custom_call.1} parent=1 // pred_fallthru
      _
    // Predicated region
    $region54: #{tpu_custom_call.1} parent=1 // pred_check
      _
    $region55: #{tpu_custom_call.1} parent=1 // pred_check_branch
      %118 = sbr.rel (0) target = $region57
    $region56: #{tpu_custom_call.1} parent=1 // pred_region
      %119 = dma.done [#allocation6], 32
    $region57: #{tpu_custom_call.1} parent=1 // pred_fallthru
      _
    // Predicated region
    $region58: #{tpu_custom_call.1} parent=1 // pred_check
      _
    $region59: #{tpu_custom_call.1} parent=1 // pred_check_branch
      %121 = sbr.rel (0) target = $region61
    $region60: #{tpu_custom_call.1} parent=1 // pred_region
      %122 = dma.done [#allocation6], 48
    $region61: #{tpu_custom_call.1} parent=1 // pred_fallthru
      _
    // Predicated region
    $region62: #{tpu_custom_call.1} parent=1 // pred_check
      _
    $region63: #{tpu_custom_call.1} parent=1 // pred_check_branch
      %124 = sbr.rel (0) target = $region65
    $region64: #{tpu_custom_call.1} parent=1 // pred_region
      %125 = dma.done [#allocation9], 512
    $region65: #{tpu_custom_call.1} parent=1 // pred_fallthru
      _
    // Predicated region
    $region66: #{tpu_custom_call.1} parent=1 // pred_check
      _
    $region67: #{tpu_custom_call.1} parent=1 // pred_check_branch
      %127 = sbr.rel (0) target = $region69
    $region68: #{tpu_custom_call.1} parent=1 // pred_region
      %128 = dma.done [#allocation9], 512
    $region69: #{tpu_custom_call.1} parent=1 // pred_fallthru
      _
    // Predicated region
    $region70: #{tpu_custom_call.1} parent=1 // pred_check
      _
    $region71: #{tpu_custom_call.1} parent=1 // pred_check_branch
      %130 = sbr.rel (0) target = $region73
    $region72: #{tpu_custom_call.1} parent=1 // pred_region
      %131 = dma.done [#allocation12], 32
    $region73: #{tpu_custom_call.1} parent=1 // pred_fallthru
      _
    // Predicated region
    $region74: #{tpu_custom_call.1} parent=1 // pred_check
      _
    $region75: #{tpu_custom_call.1} parent=1 // pred_check_branch
      %133 = sbr.rel (0) target = $region77
    $region76: #{tpu_custom_call.1} parent=1 // pred_region
      %134 = dma.done [#allocation12], 256
    $region77: #{tpu_custom_call.1} parent=1 // pred_fallthru
      _
    %v136 = vld [vmem:[#allocation2] sm:$0xff]
    %v137 = vld [vmem:[#allocation2 + $0x8] sm:$0xff]
    %v138 = vld [vmem:[#allocation7] sm:$0x1]
    %s139 = scalar_lea.vmem [#allocation7], 1
    %v140 = vld [vmem:[%s139] sm:$0x1]
    %vm141 = vcmask 261120
    %v142 = vsel %vm141, %v136, 0.0
    %143 = vadd.xlane.f32.xlu0 %v142
    %v144 = vpop.xlane.xlu0 %143
    %v145 = vsel %vm141, %v137, 0.0
    %146 = vadd.xlane.f32.xlu0 %v145
    %v147 = vpop.xlane.xlu0 %146
    %v148 = vrcp.pop 32.0
    %v149 = vmul.f32 %v144, %v148
    %v150 = vmul.f32 %v147, %v148
    %v151 = vsub.f32 %v136, %v149
    %v152 = vsub.f32 %v137, %v150
    %v153 = vmul.f32 %v151, %v151
    %v154 = vmul.f32 %v152, %v152
    %v155 = vsel %vm141, %v153, 0.0
    %156 = vadd.xlane.f32.xlu0 %v155
    %v157 = vpop.xlane.xlu0 %156
    %v158 = vsel %vm141, %v154, 0.0
    %159 = vadd.xlane.f32.xlu0 %v158
    %v160 = vpop.xlane.xlu0 %159
    %v161 = vmul.f32 %v157, %v148
    %v162 = vmul.f32 %v160, %v148
    %v163 = vadd.f32 %v161, 1e-12
    %v164 = vadd.f32 %v162, 1e-12
    %v165 = vrsqrt.pop %v163
    %v166 = vrsqrt.pop %v164
    %v167 = vmul.f32 %v151, %v165
    %v168 = vmul.f32 %v152, %v166
    %v170 = vlaneseq
    %v171 = vshrl.u32 %v170, 7
    %v172 = vsub.s32 0, %v171
    %v173 = vrot.slane %v138, %v172
    %v175 = vmul.f32 %v167, %v173
    %v176 = vmul.f32 %v168, %v173
    %v178 = vlaneseq
    %v179 = vshrl.u32 %v178, 7
    %v180 = vsub.s32 0, %v179
    %v181 = vrot.slane %v140, %v180
    %v183 = vadd.f32 %v175, %v181
    %v184 = vadd.f32 %v176, %v181
    %v185 = vld [vmem:[#allocation5] sm:$0x3]
    %v186 = vsub.f32 1.0, %v185
    %v187 = vmul.f32 %v186, -1e+09
    %v190 = vunpack.c.l.s4 1966171168
    %v191 = vunpack.c.0.s8 %v190
    %v192 = vlaneseq
    %v193 = vshrl.u32 %v192, 7
    %v194 = vsub.s32 %v191, %v193
    %v195 = vrot.slane %v187, %v194
    %v196 = vcombine.high %v195, %v195
    %v198 = vunpack.c.l.s4 1966171168
    %v199 = vunpack.c.0.s8 %v198
    %v200 = vlaneseq
    %v201 = vshrl.u32 %v200, 7
    %v202 = vsub.s32 %v199, %v201
    %v203 = vrot.slane %v195, %v202
    %v205 = vunpack.c.l.s4 1966171168
    %v206 = vunpack.c.0.s8 %v205
    %v207 = vlaneseq
    %v208 = vshrl.u32 %v207, 7
    %v209 = vsub.s32 %v206, %v208
    %v210 = vrot.slane %v196, %v209
    %v211 = vlaneseq
    %v212 = vshrl.u32 %v211, 7
    %v213 = vsub.s32 0, %v212
    %v214 = vrot.slane %v203, %v213
    %v215 = vlaneseq
    %v216 = vshrl.u32 %v215, 7
    %v217 = vsub.s32 0, %v216
    %v218 = vrot.slane %v210, %v217
    %v221 = vld [vmem:[%s3] sm:$0xf]
    %v222 = vld [vmem:[%s3 + $0x4] sm:$0xf]
    %v223 = vld [vmem:[%s3 + $0x8] sm:$0xf]
    %v224 = vld [vmem:[%s3 + $0xc] sm:$0xf]
    %v225 = vld [vmem:[%s3 + $0x10] sm:$0xf]
    %v226 = vld [vmem:[%s3 + $0x14] sm:$0xf]
    %v227 = vld [vmem:[%s3 + $0x18] sm:$0xf]
    %v228 = vld [vmem:[%s3 + $0x1c] sm:$0xf]
    %v229 = vld [vmem:[%s3 + $0x20] sm:$0xf]
    %v230 = vld [vmem:[%s3 + $0x24] sm:$0xf]
    %v231 = vld [vmem:[%s3 + $0x28] sm:$0xf]
    %v232 = vld [vmem:[%s3 + $0x2c] sm:$0xf]
    %v233 = vld [vmem:[%s5] sm:$0x1]
    %v234 = vld [vmem:[%s5 + $0x1] sm:$0x1]
    %v235 = vld [vmem:[%s5 + $0x2] sm:$0x1]
    %v236 = vld [vmem:[%s5 + $0x3] sm:$0x1]
    %v237 = vld [vmem:[%s5 + $0x4] sm:$0x1]
    %v238 = vld [vmem:[%s5 + $0x5] sm:$0x1]
    %v239 = vld [vmem:[%s5 + $0x6] sm:$0x1]
    %v240 = vld [vmem:[%s5 + $0x7] sm:$0x1]
    %v241 = vld [vmem:[%s5 + $0x8] sm:$0x1]
    %v242 = vpack.c.bf16 %v184, %v183
    %v244 = vlaneseq
    %v245 = vshrl.u32 %v244, 7
    %v246 = vsub.s32 0, %v245
    %v247 = vrot.slane %v233, %v246
    %v253 = vunpack.c.l.b16 %v221
    %v254 = vunpack.c.l.b16 %v222
    %v255 = vunpack.c.l.b16 %v223
    %v256 = vunpack.c.l.b16 %v224
    %v257 = vpack.c.b16 %v254, %v253
    %v258 = vpack.c.b16 %v256, %v255
    %v262 = vsel %vm141, %v242, 0
    %264 = vmatprep.subr.bf16.mxu0 0
    %265 = vmatpush1.bf16.msra.mxu0 %v257
    %266 = vmatprep.subr.bf16.mxu0 0
    %267 = vmatpush1.bf16.msra.mxu0 %v258
    %268 = vmatprep.subr.bf16.mxu0 0
    %269 = vmatpush1.bf16.msra.mxu0 0
    %270 = vmatprep.subr.bf16.mxu0 0
    %271 = vmatpush1.bf16.msra.mxu0 0
    %272 = vmatprep.subr.bf16.mxu0 0
    %273 = vmatpush1.bf16.msra.mxu0 0
    %274 = vmatprep.subr.bf16.mxu0 0
    %275 = vmatpush1.bf16.msra.mxu0 0
    %276 = vmatprep.subr.bf16.mxu0 0
    %277 = vmatpush1.bf16.msra.mxu0 0
    %278 = vmatprep.subr.bf16.mxu0 0
    %279 = vmatpush1.bf16.msra.mxu0 0
    %280 = vmatprep.subr.bf16.mxu0 0
    %281 = vmatpush1.bf16.msra.mxu0 0
    %282 = vmatprep.subr.bf16.mxu0 0
    %283 = vmatpush1.bf16.msra.mxu0 0
    %284 = vmatprep.subr.bf16.mxu0 0
    %285 = vmatpush1.bf16.msra.mxu0 0
    %286 = vmatprep.subr.bf16.mxu0 0
    %287 = vmatpush1.bf16.msra.mxu0 0
    %288 = vmatprep.subr.bf16.mxu0 0
    %289 = vmatpush1.bf16.msra.mxu0 0
    %290 = vmatprep.subr.bf16.mxu0 0
    %291 = vmatpush1.bf16.msra.mxu0 0
    %292 = vmatprep.subr.bf16.mxu0 0
    %293 = vmatpush1.bf16.msra.mxu0 0
    %294 = vmatprep.subr.bf16.mxu0 0
    %295 = vmatpush1.bf16.msra.mxu0 0
    %296 = vmatprep.mubr.bf16.mxu0 0
    %297 = vmatmul.mubr.bf16.gmra.mrb[0].mxu0 %v262
    %v298 = vpop.f32.mrb[0].mxu0
    %v299 = vadd.f32 %v247, %v298
    %v300 = vpop.f32.mrb[0].mxu0
    %v301 = vpop.f32.mrb[0].mxu0
    %v302 = vadd.f32 %v247, %v301
    %v303 = vpop.f32.mrb[0].mxu0
    %304 = vdwg.mxu0
    %307 = vrot.lane.b32.xlu0 %v299, 120
    %v308 = vpop.permute.xlu0 %307
    %309 = vrot.lane.b32.xlu0 %v302, 120
    %v310 = vpop.permute.xlu0 %309
    %313 = vrot.lane.b32.xlu0 %v299, 112
    %v314 = vpop.permute.xlu0 %313
    %315 = vrot.lane.b32.xlu0 %v302, 112
    %v316 = vpop.permute.xlu0 %315
    %319 = vrot.lane.b32.xlu0 %v299, 104
    %v320 = vpop.permute.xlu0 %319
    %321 = vrot.lane.b32.xlu0 %v302, 104
    %v322 = vpop.permute.xlu0 %321
    %v325 = vcombine.low %v299, %v314
    %v326 = vcombine.high %v299, %v314
    %v328 = vunpack.c.l.s4 1983009808
    %v329 = vunpack.c.0.s8 %v328
    %v330 = vlaneseq
    %v331 = vshrl.u32 %v330, 7
    %v332 = vsub.s32 %v329, %v331
    %v333 = vrot.slane %v325, %v332
    %v335 = vunpack.c.l.s4 1983009808
    %v336 = vunpack.c.0.s8 %v335
    %v337 = vlaneseq
    %v338 = vshrl.u32 %v337, 7
    %v339 = vsub.s32 %v336, %v338
    %v340 = vrot.slane %v326, %v339
    %v341 = vcombine.low %v308, %v320
    %v342 = vcombine.high %v308, %v320
    %v344 = vunpack.c.l.s4 1983009808
    %v345 = vunpack.c.0.s8 %v344
    %v346 = vlaneseq
    %v347 = vshrl.u32 %v346, 7
    %v348 = vsub.s32 %v345, %v347
    %v349 = vrot.slane %v341, %v348
    %v351 = vunpack.c.l.s4 1983009808
    %v352 = vunpack.c.0.s8 %v351
    %v353 = vlaneseq
    %v354 = vshrl.u32 %v353, 7
    %v355 = vsub.s32 %v352, %v354
    %v356 = vrot.slane %v342, %v355
    %v357 = vcombine.low %v333, %v349
    %v358 = vcombine.high %v333, %v349
    %v360 = vunpack.c.l.s4 1934713408
    %v361 = vunpack.c.0.s8 %v360
    %v362 = vlaneseq
    %v363 = vshrl.u32 %v362, 7
    %v364 = vsub.s32 %v361, %v363
    %v365 = vrot.slane %v357, %v364
    %v367 = vunpack.c.l.s4 1934713408
    %v368 = vunpack.c.0.s8 %v367
    %v369 = vlaneseq
    %v370 = vshrl.u32 %v369, 7
    %v371 = vsub.s32 %v368, %v370
    %v372 = vrot.slane %v358, %v371
    %v373 = vcombine.low %v340, %v356
    %v374 = vcombine.high %v340, %v356
    %v376 = vunpack.c.l.s4 1934713408
    %v377 = vunpack.c.0.s8 %v376
    %v378 = vlaneseq
    %v379 = vshrl.u32 %v378, 7
    %v380 = vsub.s32 %v377, %v379
    %v381 = vrot.slane %v373, %v380
    %v383 = vunpack.c.l.s4 1934713408
    %v384 = vunpack.c.0.s8 %v383
    %v385 = vlaneseq
    %v386 = vshrl.u32 %v385, 7
    %v387 = vsub.s32 %v384, %v386
    %v388 = vrot.slane %v374, %v387
    %v389 = vcombine.high %v365, 0.0
    %v390 = vcombine.high %v372, 0.0
    %v391 = vcombine.high %v381, 0.0
    %v392 = vcombine.high %v388, 0.0
    %v393 = vcombine.low %v302, %v316
    %v394 = vcombine.high %v302, %v316
    %v396 = vunpack.c.l.s4 1983009808
    %v397 = vunpack.c.0.s8 %v396
    %v398 = vlaneseq
    %v399 = vshrl.u32 %v398, 7
    %v400 = vsub.s32 %v397, %v399
    %v401 = vrot.slane %v393, %v400
    %v403 = vunpack.c.l.s4 1983009808
    %v404 = vunpack.c.0.s8 %v403
    %v405 = vlaneseq
    %v406 = vshrl.u32 %v405, 7
    %v407 = vsub.s32 %v404, %v406
    %v408 = vrot.slane %v394, %v407
    %v409 = vcombine.low %v310, %v322
    %v410 = vcombine.high %v310, %v322
    %v412 = vunpack.c.l.s4 1983009808
    %v413 = vunpack.c.0.s8 %v412
    %v414 = vlaneseq
    %v415 = vshrl.u32 %v414, 7
    %v416 = vsub.s32 %v413, %v415
    %v417 = vrot.slane %v409, %v416
    %v419 = vunpack.c.l.s4 1983009808
    %v420 = vunpack.c.0.s8 %v419
    %v421 = vlaneseq
    %v422 = vshrl.u32 %v421, 7
    %v423 = vsub.s32 %v420, %v422
    %v424 = vrot.slane %v410, %v423
    %v425 = vcombine.low %v401, %v417
    %v426 = vcombine.high %v401, %v417
    %v428 = vunpack.c.l.s4 1934713408
    %v429 = vunpack.c.0.s8 %v428
    %v430 = vlaneseq
    %v431 = vshrl.u32 %v430, 7
    %v432 = vsub.s32 %v429, %v431
    %v433 = vrot.slane %v425, %v432
    %v435 = vunpack.c.l.s4 1934713408
    %v436 = vunpack.c.0.s8 %v435
    %v437 = vlaneseq
    %v438 = vshrl.u32 %v437, 7
    %v439 = vsub.s32 %v436, %v438
    %v440 = vrot.slane %v426, %v439
    %v441 = vcombine.low %v408, %v424
    %v442 = vcombine.high %v408, %v424
    %v444 = vunpack.c.l.s4 1934713408
    %v445 = vunpack.c.0.s8 %v444
    %v446 = vlaneseq
    %v447 = vshrl.u32 %v446, 7
    %v448 = vsub.s32 %v445, %v447
    %v449 = vrot.slane %v441, %v448
    %v451 = vunpack.c.l.s4 1934713408
    %v452 = vunpack.c.0.s8 %v451
    %v453 = vlaneseq
    %v454 = vshrl.u32 %v453, 7
    %v455 = vsub.s32 %v452, %v454
    %v456 = vrot.slane %v442, %v455
    %v457 = vcombine.high %v433, 0.0
    %v458 = vcombine.high %v440, 0.0
    %v459 = vcombine.high %v449, 0.0
    %v460 = vcombine.high %v456, 0.0
    %v461 = vcombine.low %v365, %v372
    %v463 = vunpack.c.l.s4 1983009808
    %v464 = vunpack.c.0.s8 %v463
    %v465 = vlaneseq
    %v466 = vshrl.u32 %v465, 7
    %v467 = vsub.s32 %v464, %v466
    %v468 = vrot.slane %v461, %v467
    %v469 = vcombine.low %v389, %v390
    %v471 = vunpack.c.l.s4 1983009808
    %v472 = vunpack.c.0.s8 %v471
    %v473 = vlaneseq
    %v474 = vshrl.u32 %v473, 7
    %v475 = vsub.s32 %v472, %v474
    %v476 = vrot.slane %v469, %v475
    %v477 = vcombine.low %v381, %v388
    %v479 = vunpack.c.l.s4 1983009808
    %v480 = vunpack.c.0.s8 %v479
    %v481 = vlaneseq
    %v482 = vshrl.u32 %v481, 7
    %v483 = vsub.s32 %v480, %v482
    %v484 = vrot.slane %v477, %v483
    %v485 = vcombine.low %v391, %v392
    %v487 = vunpack.c.l.s4 1983009808
    %v488 = vunpack.c.0.s8 %v487
    %v489 = vlaneseq
    %v490 = vshrl.u32 %v489, 7
    %v491 = vsub.s32 %v488, %v490
    %v492 = vrot.slane %v485, %v491
    %v493 = vcombine.low %v468, %v476
    %v494 = vcombine.high %v468, %v476
    %v496 = vunpack.c.l.s4 1934713408
    %v497 = vunpack.c.0.s8 %v496
    %v498 = vlaneseq
    %v499 = vshrl.u32 %v498, 7
    %v500 = vsub.s32 %v497, %v499
    %v501 = vrot.slane %v493, %v500
    %v503 = vunpack.c.l.s4 1934713408
    %v504 = vunpack.c.0.s8 %v503
    %v505 = vlaneseq
    %v506 = vshrl.u32 %v505, 7
    %v507 = vsub.s32 %v504, %v506
    %v508 = vrot.slane %v494, %v507
    %v509 = vcombine.low %v484, %v492
    %v510 = vcombine.high %v484, %v492
    %v512 = vunpack.c.l.s4 1934713408
    %v513 = vunpack.c.0.s8 %v512
    %v514 = vlaneseq
    %v515 = vshrl.u32 %v514, 7
    %v516 = vsub.s32 %v513, %v515
    %v517 = vrot.slane %v509, %v516
    %v519 = vunpack.c.l.s4 1934713408
    %v520 = vunpack.c.0.s8 %v519
    %v521 = vlaneseq
    %v522 = vshrl.u32 %v521, 7
    %v523 = vsub.s32 %v520, %v522
    %v524 = vrot.slane %v510, %v523
    %v525 = vcombine.low %v501, %v517
    %v526 = vcombine.high %v501, %v517
    %v527 = vcombine.low %v508, %v524
    %v528 = vcombine.high %v508, %v524
    %v529 = vcombine.low %v433, %v440
    %v531 = vunpack.c.l.s4 1983009808
    %v532 = vunpack.c.0.s8 %v531
    %v533 = vlaneseq
    %v534 = vshrl.u32 %v533, 7
    %v535 = vsub.s32 %v532, %v534
    %v536 = vrot.slane %v529, %v535
    %v537 = vcombine.low %v457, %v458
    %v539 = vunpack.c.l.s4 1983009808
    %v540 = vunpack.c.0.s8 %v539
    %v541 = vlaneseq
    %v542 = vshrl.u32 %v541, 7
    %v543 = vsub.s32 %v540, %v542
    %v544 = vrot.slane %v537, %v543
    %v545 = vcombine.low %v449, %v456
    %v547 = vunpack.c.l.s4 1983009808
    %v548 = vunpack.c.0.s8 %v547
    %v549 = vlaneseq
    %v550 = vshrl.u32 %v549, 7
    %v551 = vsub.s32 %v548, %v550
    %v552 = vrot.slane %v545, %v551
    %v553 = vcombine.low %v459, %v460
    %v555 = vunpack.c.l.s4 1983009808
    %v556 = vunpack.c.0.s8 %v555
    %v557 = vlaneseq
    %v558 = vshrl.u32 %v557, 7
    %v559 = vsub.s32 %v556, %v558
    %v560 = vrot.slane %v553, %v559
    %v561 = vcombine.low %v536, %v544
    %v562 = vcombine.high %v536, %v544
    %v564 = vunpack.c.l.s4 1934713408
    %v565 = vunpack.c.0.s8 %v564
    %v566 = vlaneseq
    %v567 = vshrl.u32 %v566, 7
    %v568 = vsub.s32 %v565, %v567
    %v569 = vrot.slane %v561, %v568
    %v571 = vunpack.c.l.s4 1934713408
    %v572 = vunpack.c.0.s8 %v571
    %v573 = vlaneseq
    %v574 = vshrl.u32 %v573, 7
    %v575 = vsub.s32 %v572, %v574
    %v576 = vrot.slane %v562, %v575
    %v577 = vcombine.low %v552, %v560
    %v578 = vcombine.high %v552, %v560
    %v580 = vunpack.c.l.s4 1934713408
    %v581 = vunpack.c.0.s8 %v580
    %v582 = vlaneseq
    %v583 = vshrl.u32 %v582, 7
    %v584 = vsub.s32 %v581, %v583
    %v585 = vrot.slane %v577, %v584
    %v587 = vunpack.c.l.s4 1934713408
    %v588 = vunpack.c.0.s8 %v587
    %v589 = vlaneseq
    %v590 = vshrl.u32 %v589, 7
    %v591 = vsub.s32 %v588, %v590
    %v592 = vrot.slane %v578, %v591
    %v593 = vcombine.low %v569, %v585
    %v594 = vcombine.high %v569, %v585
    %v595 = vcombine.low %v576, %v592
    %v596 = vcombine.high %v576, %v592
    %v598 = vlaneseq
    %v599 = vshrl.u32 %v598, 7
    %v600 = vsub.s32 0, %v599
    %v601 = vrot.slane %v234, %v600
    %v607 = vunpack.c.l.b16 %v225
    %v608 = vunpack.c.l.b16 %v226
    %v609 = vunpack.c.l.b16 %v227
    %v610 = vunpack.c.l.b16 %v228
    %v611 = vpack.c.b16 %v608, %v607
    %v612 = vpack.c.b16 %v610, %v609
    %615 = vmatprep.subr.bf16.mxu0 0
    %616 = vmatpush1.bf16.msra.mxu0 %v611
    %617 = vmatprep.subr.bf16.mxu0 0
    %618 = vmatpush1.bf16.msra.mxu0 %v612
    %619 = vmatprep.subr.bf16.mxu0 0
    %620 = vmatpush1.bf16.msra.mxu0 0
    %621 = vmatprep.subr.bf16.mxu0 0
    %622 = vmatpush1.bf16.msra.mxu0 0
    %623 = vmatprep.subr.bf16.mxu0 0
    %624 = vmatpush1.bf16.msra.mxu0 0
    %625 = vmatprep.subr.bf16.mxu0 0
    %626 = vmatpush1.bf16.msra.mxu0 0
    %627 = vmatprep.subr.bf16.mxu0 0
    %628 = vmatpush1.bf16.msra.mxu0 0
    %629 = vmatprep.subr.bf16.mxu0 0
    %630 = vmatpush1.bf16.msra.mxu0 0
    %631 = vmatprep.subr.bf16.mxu0 0
    %632 = vmatpush1.bf16.msra.mxu0 0
    %633 = vmatprep.subr.bf16.mxu0 0
    %634 = vmatpush1.bf16.msra.mxu0 0
    %635 = vmatprep.subr.bf16.mxu0 0
    %636 = vmatpush1.bf16.msra.mxu0 0
    %637 = vmatprep.subr.bf16.mxu0 0
    %638 = vmatpush1.bf16.msra.mxu0 0
    %639 = vmatprep.subr.bf16.mxu0 0
    %640 = vmatpush1.bf16.msra.mxu0 0
    %641 = vmatprep.subr.bf16.mxu0 0
    %642 = vmatpush1.bf16.msra.mxu0 0
    %643 = vmatprep.subr.bf16.mxu0 0
    %644 = vmatpush1.bf16.msra.mxu0 0
    %645 = vmatprep.subr.bf16.mxu0 0
    %646 = vmatpush1.bf16.msra.mxu0 0
    %647 = vmatprep.mubr.bf16.mxu0 0
    %648 = vmatmul.mubr.bf16.gmra.mrb[0].mxu0 %v262
    %v649 = vpop.f32.mrb[0].mxu0
    %v650 = vadd.f32 %v601, %v649
    %v651 = vpop.f32.mrb[0].mxu0
    %v652 = vpop.f32.mrb[0].mxu0
    %v653 = vadd.f32 %v601, %v652
    %v654 = vpop.f32.mrb[0].mxu0
    %655 = vdwg.mxu0
    %658 = vrot.lane.b32.xlu0 %v650, 120
    %v659 = vpop.permute.xlu0 %658
    %660 = vrot.lane.b32.xlu0 %v653, 120
    %v661 = vpop.permute.xlu0 %660
    %664 = vrot.lane.b32.xlu0 %v650, 112
    %v665 = vpop.permute.xlu0 %664
    %666 = vrot.lane.b32.xlu0 %v653, 112
    %v667 = vpop.permute.xlu0 %666
    %670 = vrot.lane.b32.xlu0 %v650, 104
    %v671 = vpop.permute.xlu0 %670
    %672 = vrot.lane.b32.xlu0 %v653, 104
    %v673 = vpop.permute.xlu0 %672
    %v676 = vcombine.low %v650, %v665
    %v677 = vcombine.high %v650, %v665
    %v679 = vunpack.c.l.s4 1983009808
    %v680 = vunpack.c.0.s8 %v679
    %v681 = vlaneseq
    %v682 = vshrl.u32 %v681, 7
    %v683 = vsub.s32 %v680, %v682
    %v684 = vrot.slane %v676, %v683
    %v686 = vunpack.c.l.s4 1983009808
    %v687 = vunpack.c.0.s8 %v686
    %v688 = vlaneseq
    %v689 = vshrl.u32 %v688, 7
    %v690 = vsub.s32 %v687, %v689
    %v691 = vrot.slane %v677, %v690
    %v692 = vcombine.low %v659, %v671
    %v693 = vcombine.high %v659, %v671
    %v695 = vunpack.c.l.s4 1983009808
    %v696 = vunpack.c.0.s8 %v695
    %v697 = vlaneseq
    %v698 = vshrl.u32 %v697, 7
    %v699 = vsub.s32 %v696, %v698
    %v700 = vrot.slane %v692, %v699
    %v702 = vunpack.c.l.s4 1983009808
    %v703 = vunpack.c.0.s8 %v702
    %v704 = vlaneseq
    %v705 = vshrl.u32 %v704, 7
    %v706 = vsub.s32 %v703, %v705
    %v707 = vrot.slane %v693, %v706
    %v708 = vcombine.low %v684, %v700
    %v709 = vcombine.high %v684, %v700
    %v711 = vunpack.c.l.s4 1934713408
    %v712 = vunpack.c.0.s8 %v711
    %v713 = vlaneseq
    %v714 = vshrl.u32 %v713, 7
    %v715 = vsub.s32 %v712, %v714
    %v716 = vrot.slane %v708, %v715
    %v718 = vunpack.c.l.s4 1934713408
    %v719 = vunpack.c.0.s8 %v718
    %v720 = vlaneseq
    %v721 = vshrl.u32 %v720, 7
    %v722 = vsub.s32 %v719, %v721
    %v723 = vrot.slane %v709, %v722
    %v724 = vcombine.low %v691, %v707
    %v725 = vcombine.high %v691, %v707
    %v727 = vunpack.c.l.s4 1934713408
    %v728 = vunpack.c.0.s8 %v727
    %v729 = vlaneseq
    %v730 = vshrl.u32 %v729, 7
    %v731 = vsub.s32 %v728, %v730
    %v732 = vrot.slane %v724, %v731
    %v734 = vunpack.c.l.s4 1934713408
    %v735 = vunpack.c.0.s8 %v734
    %v736 = vlaneseq
    %v737 = vshrl.u32 %v736, 7
    %v738 = vsub.s32 %v735, %v737
    %v739 = vrot.slane %v725, %v738
    %v740 = vcombine.high %v716, 0.0
    %v741 = vcombine.high %v723, 0.0
    %v742 = vcombine.high %v732, 0.0
    %v743 = vcombine.high %v739, 0.0
    %v744 = vcombine.low %v653, %v667
    %v745 = vcombine.high %v653, %v667
    %v747 = vunpack.c.l.s4 1983009808
    %v748 = vunpack.c.0.s8 %v747
    %v749 = vlaneseq
    %v750 = vshrl.u32 %v749, 7
    %v751 = vsub.s32 %v748, %v750
    %v752 = vrot.slane %v744, %v751
    %v754 = vunpack.c.l.s4 1983009808
    %v755 = vunpack.c.0.s8 %v754
    %v756 = vlaneseq
    %v757 = vshrl.u32 %v756, 7
    %v758 = vsub.s32 %v755, %v757
    %v759 = vrot.slane %v745, %v758
    %v760 = vcombine.low %v661, %v673
    %v761 = vcombine.high %v661, %v673
    %v763 = vunpack.c.l.s4 1983009808
    %v764 = vunpack.c.0.s8 %v763
    %v765 = vlaneseq
    %v766 = vshrl.u32 %v765, 7
    %v767 = vsub.s32 %v764, %v766
    %v768 = vrot.slane %v760, %v767
    %v770 = vunpack.c.l.s4 1983009808
    %v771 = vunpack.c.0.s8 %v770
    %v772 = vlaneseq
    %v773 = vshrl.u32 %v772, 7
    %v774 = vsub.s32 %v771, %v773
    %v775 = vrot.slane %v761, %v774
    %v776 = vcombine.low %v752, %v768
    %v777 = vcombine.high %v752, %v768
    %v779 = vunpack.c.l.s4 1934713408
    %v780 = vunpack.c.0.s8 %v779
    %v781 = vlaneseq
    %v782 = vshrl.u32 %v781, 7
    %v783 = vsub.s32 %v780, %v782
    %v784 = vrot.slane %v776, %v783
    %v786 = vunpack.c.l.s4 1934713408
    %v787 = vunpack.c.0.s8 %v786
    %v788 = vlaneseq
    %v789 = vshrl.u32 %v788, 7
    %v790 = vsub.s32 %v787, %v789
    %v791 = vrot.slane %v777, %v790
    %v792 = vcombine.low %v759, %v775
    %v793 = vcombine.high %v759, %v775
    %v795 = vunpack.c.l.s4 1934713408
    %v796 = vunpack.c.0.s8 %v795
    %v797 = vlaneseq
    %v798 = vshrl.u32 %v797, 7
    %v799 = vsub.s32 %v796, %v798
    %v800 = vrot.slane %v792, %v799
    %v802 = vunpack.c.l.s4 1934713408
    %v803 = vunpack.c.0.s8 %v802
    %v804 = vlaneseq
    %v805 = vshrl.u32 %v804, 7
    %v806 = vsub.s32 %v803, %v805
    %v807 = vrot.slane %v793, %v806
    %v808 = vcombine.high %v784, 0.0
    %v809 = vcombine.high %v791, 0.0
    %v810 = vcombine.high %v800, 0.0
    %v811 = vcombine.high %v807, 0.0
    %v812 = vcombine.low %v716, %v723
    %v814 = vunpack.c.l.s4 1983009808
    %v815 = vunpack.c.0.s8 %v814
    %v816 = vlaneseq
    %v817 = vshrl.u32 %v816, 7
    %v818 = vsub.s32 %v815, %v817
    %v819 = vrot.slane %v812, %v818
    %v820 = vcombine.low %v740, %v741
    %v822 = vunpack.c.l.s4 1983009808
    %v823 = vunpack.c.0.s8 %v822
    %v824 = vlaneseq
    %v825 = vshrl.u32 %v824, 7
    %v826 = vsub.s32 %v823, %v825
    %v827 = vrot.slane %v820, %v826
    %v828 = vcombine.low %v732, %v739
    %v830 = vunpack.c.l.s4 1983009808
    %v831 = vunpack.c.0.s8 %v830
    %v832 = vlaneseq
    %v833 = vshrl.u32 %v832, 7
    %v834 = vsub.s32 %v831, %v833
    %v835 = vrot.slane %v828, %v834
    %v836 = vcombine.low %v742, %v743
    %v838 = vunpack.c.l.s4 1983009808
    %v839 = vunpack.c.0.s8 %v838
    %v840 = vlaneseq
    %v841 = vshrl.u32 %v840, 7
    %v842 = vsub.s32 %v839, %v841
    %v843 = vrot.slane %v836, %v842
    %v844 = vcombine.low %v819, %v827
    %v845 = vcombine.high %v819, %v827
    %v847 = vunpack.c.l.s4 1934713408
    %v848 = vunpack.c.0.s8 %v847
    %v849 = vlaneseq
    %v850 = vshrl.u32 %v849, 7
    %v851 = vsub.s32 %v848, %v850
    %v852 = vrot.slane %v844, %v851
    %v854 = vunpack.c.l.s4 1934713408
    %v855 = vunpack.c.0.s8 %v854
    %v856 = vlaneseq
    %v857 = vshrl.u32 %v856, 7
    %v858 = vsub.s32 %v855, %v857
    %v859 = vrot.slane %v845, %v858
    %v860 = vcombine.low %v835, %v843
    %v861 = vcombine.high %v835, %v843
    %v863 = vunpack.c.l.s4 1934713408
    %v864 = vunpack.c.0.s8 %v863
    %v865 = vlaneseq
    %v866 = vshrl.u32 %v865, 7
    %v867 = vsub.s32 %v864, %v866
    %v868 = vrot.slane %v860, %v867
    %v870 = vunpack.c.l.s4 1934713408
    %v871 = vunpack.c.0.s8 %v870
    %v872 = vlaneseq
    %v873 = vshrl.u32 %v872, 7
    %v874 = vsub.s32 %v871, %v873
    %v875 = vrot.slane %v861, %v874
    %v876 = vcombine.low %v852, %v868
    %v877 = vcombine.high %v852, %v868
    %v878 = vcombine.low %v859, %v875
    %v879 = vcombine.high %v859, %v875
    %v880 = vcombine.low %v784, %v791
    %v882 = vunpack.c.l.s4 1983009808
    %v883 = vunpack.c.0.s8 %v882
    %v884 = vlaneseq
    %v885 = vshrl.u32 %v884, 7
    %v886 = vsub.s32 %v883, %v885
    %v887 = vrot.slane %v880, %v886
    %v888 = vcombine.low %v808, %v809
    %v890 = vunpack.c.l.s4 1983009808
    %v891 = vunpack.c.0.s8 %v890
    %v892 = vlaneseq
    %v893 = vshrl.u32 %v892, 7
    %v894 = vsub.s32 %v891, %v893
    %v895 = vrot.slane %v888, %v894
    %v896 = vcombine.low %v800, %v807
    %v898 = vunpack.c.l.s4 1983009808
    %v899 = vunpack.c.0.s8 %v898
    %v900 = vlaneseq
    %v901 = vshrl.u32 %v900, 7
    %v902 = vsub.s32 %v899, %v901
    %v903 = vrot.slane %v896, %v902
    %v904 = vcombine.low %v810, %v811
    %v906 = vunpack.c.l.s4 1983009808
    %v907 = vunpack.c.0.s8 %v906
    %v908 = vlaneseq
    %v909 = vshrl.u32 %v908, 7
    %v910 = vsub.s32 %v907, %v909
    %v911 = vrot.slane %v904, %v910
    %v912 = vcombine.low %v887, %v895
    %v913 = vcombine.high %v887, %v895
    %v915 = vunpack.c.l.s4 1934713408
    %v916 = vunpack.c.0.s8 %v915
    %v917 = vlaneseq
    %v918 = vshrl.u32 %v917, 7
    %v919 = vsub.s32 %v916, %v918
    %v920 = vrot.slane %v912, %v919
    %v922 = vunpack.c.l.s4 1934713408
    %v923 = vunpack.c.0.s8 %v922
    %v924 = vlaneseq
    %v925 = vshrl.u32 %v924, 7
    %v926 = vsub.s32 %v923, %v925
    %v927 = vrot.slane %v913, %v926
    %v928 = vcombine.low %v903, %v911
    %v929 = vcombine.high %v903, %v911
    %v931 = vunpack.c.l.s4 1934713408
    %v932 = vunpack.c.0.s8 %v931
    %v933 = vlaneseq
    %v934 = vshrl.u32 %v933, 7
    %v935 = vsub.s32 %v932, %v934
    %v936 = vrot.slane %v928, %v935
    %v938 = vunpack.c.l.s4 1934713408
    %v939 = vunpack.c.0.s8 %v938
    %v940 = vlaneseq
    %v941 = vshrl.u32 %v940, 7
    %v942 = vsub.s32 %v939, %v941
    %v943 = vrot.slane %v929, %v942
    %v944 = vcombine.low %v920, %v936
    %v945 = vcombine.high %v920, %v936
    %v946 = vcombine.low %v927, %v943
    %v947 = vcombine.high %v927, %v943
    %v949 = vlaneseq
    %v950 = vshrl.u32 %v949, 7
    %v951 = vsub.s32 0, %v950
    %v952 = vrot.slane %v235, %v951
    %v958 = vunpack.c.l.b16 %v229
    %v959 = vunpack.c.l.b16 %v230
    %v960 = vunpack.c.l.b16 %v231
    %v961 = vunpack.c.l.b16 %v232
    %v962 = vpack.c.b16 %v959, %v958
    %v963 = vpack.c.b16 %v961, %v960
    %966 = vmatprep.subr.bf16.mxu0 0
    %967 = vmatpush1.bf16.msra.mxu0 %v962
    %968 = vmatprep.subr.bf16.mxu0 0
    %969 = vmatpush1.bf16.msra.mxu0 %v963
    %970 = vmatprep.subr.bf16.mxu0 0
    %971 = vmatpush1.bf16.msra.mxu0 0
    %972 = vmatprep.subr.bf16.mxu0 0
    %973 = vmatpush1.bf16.msra.mxu0 0
    %974 = vmatprep.subr.bf16.mxu0 0
    %975 = vmatpush1.bf16.msra.mxu0 0
    %976 = vmatprep.subr.bf16.mxu0 0
    %977 = vmatpush1.bf16.msra.mxu0 0
    %978 = vmatprep.subr.bf16.mxu0 0
    %979 = vmatpush1.bf16.msra.mxu0 0
    %980 = vmatprep.subr.bf16.mxu0 0
    %981 = vmatpush1.bf16.msra.mxu0 0
    %982 = vmatprep.subr.bf16.mxu0 0
    %983 = vmatpush1.bf16.msra.mxu0 0
    %984 = vmatprep.subr.bf16.mxu0 0
    %985 = vmatpush1.bf16.msra.mxu0 0
    %986 = vmatprep.subr.bf16.mxu0 0
    %987 = vmatpush1.bf16.msra.mxu0 0
    %988 = vmatprep.subr.bf16.mxu0 0
    %989 = vmatpush1.bf16.msra.mxu0 0
    %990 = vmatprep.subr.bf16.mxu0 0
    %991 = vmatpush1.bf16.msra.mxu0 0
    %992 = vmatprep.subr.bf16.mxu0 0
    %993 = vmatpush1.bf16.msra.mxu0 0
    %994 = vmatprep.subr.bf16.mxu0 0
    %995 = vmatpush1.bf16.msra.mxu0 0
    %996 = vmatprep.subr.bf16.mxu0 0
    %997 = vmatpush1.bf16.msra.mxu0 0
    %998 = vmatprep.mubr.bf16.mxu0 0
    %999 = vmatmul.mubr.bf16.gmra.mrb[0].mxu0 %v262
    %v1000 = vpop.f32.mrb[0].mxu0
    %v1001 = vadd.f32 %v952, %v1000
    %v1002 = vpop.f32.mrb[0].mxu0
    %v1003 = vpop.f32.mrb[0].mxu0
    %v1004 = vadd.f32 %v952, %v1003
    %v1005 = vpop.f32.mrb[0].mxu0
    %1006 = vdwg.mxu0
    %1009 = vrot.lane.b32.xlu0 %v1001, 120
    %v1010 = vpop.permute.xlu0 %1009
    %1011 = vrot.lane.b32.xlu0 %v1004, 120
    %v1012 = vpop.permute.xlu0 %1011
    %1015 = vrot.lane.b32.xlu0 %v1001, 112
    %v1016 = vpop.permute.xlu0 %1015
    %1017 = vrot.lane.b32.xlu0 %v1004, 112
    %v1018 = vpop.permute.xlu0 %1017
    %1021 = vrot.lane.b32.xlu0 %v1001, 104
    %v1022 = vpop.permute.xlu0 %1021
    %1023 = vrot.lane.b32.xlu0 %v1004, 104
    %v1024 = vpop.permute.xlu0 %1023
    %v1027 = vcombine.low %v1001, %v1016
    %v1028 = vcombine.high %v1001, %v1016
    %v1030 = vunpack.c.l.s4 1983009808
    %v1031 = vunpack.c.0.s8 %v1030
    %v1032 = vlaneseq
    %v1033 = vshrl.u32 %v1032, 7
    %v1034 = vsub.s32 %v1031, %v1033
    %v1035 = vrot.slane %v1027, %v1034
    %v1037 = vunpack.c.l.s4 1983009808
    %v1038 = vunpack.c.0.s8 %v1037
    %v1039 = vlaneseq
    %v1040 = vshrl.u32 %v1039, 7
    %v1041 = vsub.s32 %v1038, %v1040
    %v1042 = vrot.slane %v1028, %v1041
    %v1043 = vcombine.low %v1010, %v1022
    %v1044 = vcombine.high %v1010, %v1022
    %v1046 = vunpack.c.l.s4 1983009808
    %v1047 = vunpack.c.0.s8 %v1046
    %v1048 = vlaneseq
    %v1049 = vshrl.u32 %v1048, 7
    %v1050 = vsub.s32 %v1047, %v1049
    %v1051 = vrot.slane %v1043, %v1050
    %v1053 = vunpack.c.l.s4 1983009808
    %v1054 = vunpack.c.0.s8 %v1053
    %v1055 = vlaneseq
    %v1056 = vshrl.u32 %v1055, 7
    %v1057 = vsub.s32 %v1054, %v1056
    %v1058 = vrot.slane %v1044, %v1057
    %v1059 = vcombine.low %v1035, %v1051
    %v1060 = vcombine.high %v1035, %v1051
    %v1062 = vunpack.c.l.s4 1934713408
    %v1063 = vunpack.c.0.s8 %v1062
    %v1064 = vlaneseq
    %v1065 = vshrl.u32 %v1064, 7
    %v1066 = vsub.s32 %v1063, %v1065
    %v1067 = vrot.slane %v1059, %v1066
    %v1069 = vunpack.c.l.s4 1934713408
    %v1070 = vunpack.c.0.s8 %v1069
    %v1071 = vlaneseq
    %v1072 = vshrl.u32 %v1071, 7
    %v1073 = vsub.s32 %v1070, %v1072
    %v1074 = vrot.slane %v1060, %v1073
    %v1075 = vcombine.low %v1042, %v1058
    %v1076 = vcombine.high %v1042, %v1058
    %v1078 = vunpack.c.l.s4 1934713408
    %v1079 = vunpack.c.0.s8 %v1078
    %v1080 = vlaneseq
    %v1081 = vshrl.u32 %v1080, 7
    %v1082 = vsub.s32 %v1079, %v1081
    %v1083 = vrot.slane %v1075, %v1082
    %v1085 = vunpack.c.l.s4 1934713408
    %v1086 = vunpack.c.0.s8 %v1085
    %v1087 = vlaneseq
    %v1088 = vshrl.u32 %v1087, 7
    %v1089 = vsub.s32 %v1086, %v1088
    %v1090 = vrot.slane %v1076, %v1089
    %v1091 = vcombine.high %v1067, 0.0
    %v1092 = vcombine.high %v1074, 0.0
    %v1093 = vcombine.high %v1083, 0.0
    %v1094 = vcombine.high %v1090, 0.0
    %v1095 = vcombine.low %v1004, %v1018
    %v1096 = vcombine.high %v1004, %v1018
    %v1098 = vunpack.c.l.s4 1983009808
    %v1099 = vunpack.c.0.s8 %v1098
    %v1100 = vlaneseq
    %v1101 = vshrl.u32 %v1100, 7
    %v1102 = vsub.s32 %v1099, %v1101
    %v1103 = vrot.slane %v1095, %v1102
    %v1105 = vunpack.c.l.s4 1983009808
    %v1106 = vunpack.c.0.s8 %v1105
    %v1107 = vlaneseq
    %v1108 = vshrl.u32 %v1107, 7
    %v1109 = vsub.s32 %v1106, %v1108
    %v1110 = vrot.slane %v1096, %v1109
    %v1111 = vcombine.low %v1012, %v1024
    %v1112 = vcombine.high %v1012, %v1024
    %v1114 = vunpack.c.l.s4 1983009808
    %v1115 = vunpack.c.0.s8 %v1114
    %v1116 = vlaneseq
    %v1117 = vshrl.u32 %v1116, 7
    %v1118 = vsub.s32 %v1115, %v1117
    %v1119 = vrot.slane %v1111, %v1118
    %v1121 = vunpack.c.l.s4 1983009808
    %v1122 = vunpack.c.0.s8 %v1121
    %v1123 = vlaneseq
    %v1124 = vshrl.u32 %v1123, 7
    %v1125 = vsub.s32 %v1122, %v1124
    %v1126 = vrot.slane %v1112, %v1125
    %v1127 = vcombine.low %v1103, %v1119
    %v1128 = vcombine.high %v1103, %v1119
    %v1130 = vunpack.c.l.s4 1934713408
    %v1131 = vunpack.c.0.s8 %v1130
    %v1132 = vlaneseq
    %v1133 = vshrl.u32 %v1132, 7
    %v1134 = vsub.s32 %v1131, %v1133
    %v1135 = vrot.slane %v1127, %v1134
    %v1137 = vunpack.c.l.s4 1934713408
    %v1138 = vunpack.c.0.s8 %v1137
    %v1139 = vlaneseq
    %v1140 = vshrl.u32 %v1139, 7
    %v1141 = vsub.s32 %v1138, %v1140
    %v1142 = vrot.slane %v1128, %v1141
    %v1143 = vcombine.low %v1110, %v1126
    %v1144 = vcombine.high %v1110, %v1126
    %v1146 = vunpack.c.l.s4 1934713408
    %v1147 = vunpack.c.0.s8 %v1146
    %v1148 = vlaneseq
    %v1149 = vshrl.u32 %v1148, 7
    %v1150 = vsub.s32 %v1147, %v1149
    %v1151 = vrot.slane %v1143, %v1150
    %v1153 = vunpack.c.l.s4 1934713408
    %v1154 = vunpack.c.0.s8 %v1153
    %v1155 = vlaneseq
    %v1156 = vshrl.u32 %v1155, 7
    %v1157 = vsub.s32 %v1154, %v1156
    %v1158 = vrot.slane %v1144, %v1157
    %v1159 = vcombine.high %v1135, 0.0
    %v1160 = vcombine.high %v1142, 0.0
    %v1161 = vcombine.high %v1151, 0.0
    %v1162 = vcombine.high %v1158, 0.0
    %v1163 = vcombine.low %v1067, %v1074
    %v1165 = vunpack.c.l.s4 1983009808
    %v1166 = vunpack.c.0.s8 %v1165
    %v1167 = vlaneseq
    %v1168 = vshrl.u32 %v1167, 7
    %v1169 = vsub.s32 %v1166, %v1168
    %v1170 = vrot.slane %v1163, %v1169
    %v1171 = vcombine.low %v1091, %v1092
    %v1173 = vunpack.c.l.s4 1983009808
    %v1174 = vunpack.c.0.s8 %v1173
    %v1175 = vlaneseq
    %v1176 = vshrl.u32 %v1175, 7
    %v1177 = vsub.s32 %v1174, %v1176
    %v1178 = vrot.slane %v1171, %v1177
    %v1179 = vcombine.low %v1083, %v1090
    %v1181 = vunpack.c.l.s4 1983009808
    %v1182 = vunpack.c.0.s8 %v1181
    %v1183 = vlaneseq
    %v1184 = vshrl.u32 %v1183, 7
    %v1185 = vsub.s32 %v1182, %v1184
    %v1186 = vrot.slane %v1179, %v1185
    %v1187 = vcombine.low %v1093, %v1094
    %v1189 = vunpack.c.l.s4 1983009808
    %v1190 = vunpack.c.0.s8 %v1189
    %v1191 = vlaneseq
    %v1192 = vshrl.u32 %v1191, 7
    %v1193 = vsub.s32 %v1190, %v1192
    %v1194 = vrot.slane %v1187, %v1193
    %v1195 = vcombine.low %v1170, %v1178
    %v1196 = vcombine.high %v1170, %v1178
    %v1198 = vunpack.c.l.s4 1934713408
    %v1199 = vunpack.c.0.s8 %v1198
    %v1200 = vlaneseq
    %v1201 = vshrl.u32 %v1200, 7
    %v1202 = vsub.s32 %v1199, %v1201
    %v1203 = vrot.slane %v1195, %v1202
    %v1205 = vunpack.c.l.s4 1934713408
    %v1206 = vunpack.c.0.s8 %v1205
    %v1207 = vlaneseq
    %v1208 = vshrl.u32 %v1207, 7
    %v1209 = vsub.s32 %v1206, %v1208
    %v1210 = vrot.slane %v1196, %v1209
    %v1211 = vcombine.low %v1186, %v1194
    %v1212 = vcombine.high %v1186, %v1194
    %v1214 = vunpack.c.l.s4 1934713408
    %v1215 = vunpack.c.0.s8 %v1214
    %v1216 = vlaneseq
    %v1217 = vshrl.u32 %v1216, 7
    %v1218 = vsub.s32 %v1215, %v1217
    %v1219 = vrot.slane %v1211, %v1218
    %v1221 = vunpack.c.l.s4 1934713408
    %v1222 = vunpack.c.0.s8 %v1221
    %v1223 = vlaneseq
    %v1224 = vshrl.u32 %v1223, 7
    %v1225 = vsub.s32 %v1222, %v1224
    %v1226 = vrot.slane %v1212, %v1225
    %v1227 = vcombine.low %v1203, %v1219
    %v1228 = vcombine.high %v1203, %v1219
    %v1229 = vcombine.low %v1210, %v1226
    %v1230 = vcombine.high %v1210, %v1226
    %v1231 = vcombine.low %v1135, %v1142
    %v1233 = vunpack.c.l.s4 1983009808
    %v1234 = vunpack.c.0.s8 %v1233
    %v1235 = vlaneseq
    %v1236 = vshrl.u32 %v1235, 7
    %v1237 = vsub.s32 %v1234, %v1236
    %v1238 = vrot.slane %v1231, %v1237
    %v1239 = vcombine.low %v1159, %v1160
    %v1241 = vunpack.c.l.s4 1983009808
    %v1242 = vunpack.c.0.s8 %v1241
    %v1243 = vlaneseq
    %v1244 = vshrl.u32 %v1243, 7
    %v1245 = vsub.s32 %v1242, %v1244
    %v1246 = vrot.slane %v1239, %v1245
    %v1247 = vcombine.low %v1151, %v1158
    %v1249 = vunpack.c.l.s4 1983009808
    %v1250 = vunpack.c.0.s8 %v1249
    %v1251 = vlaneseq
    %v1252 = vshrl.u32 %v1251, 7
    %v1253 = vsub.s32 %v1250, %v1252
    %v1254 = vrot.slane %v1247, %v1253
    %v1255 = vcombine.low %v1161, %v1162
    %v1257 = vunpack.c.l.s4 1983009808
    %v1258 = vunpack.c.0.s8 %v1257
    %v1259 = vlaneseq
    %v1260 = vshrl.u32 %v1259, 7
    %v1261 = vsub.s32 %v1258, %v1260
    %v1262 = vrot.slane %v1255, %v1261
    %v1263 = vcombine.low %v1238, %v1246
    %v1264 = vcombine.high %v1238, %v1246
    %v1266 = vunpack.c.l.s4 1934713408
    %v1267 = vunpack.c.0.s8 %v1266
    %v1268 = vlaneseq
    %v1269 = vshrl.u32 %v1268, 7
    %v1270 = vsub.s32 %v1267, %v1269
    %v1271 = vrot.slane %v1263, %v1270
    %v1273 = vunpack.c.l.s4 1934713408
    %v1274 = vunpack.c.0.s8 %v1273
    %v1275 = vlaneseq
    %v1276 = vshrl.u32 %v1275, 7
    %v1277 = vsub.s32 %v1274, %v1276
    %v1278 = vrot.slane %v1264, %v1277
    %v1279 = vcombine.low %v1254, %v1262
    %v1280 = vcombine.high %v1254, %v1262
    %v1282 = vunpack.c.l.s4 1934713408
    %v1283 = vunpack.c.0.s8 %v1282
    %v1284 = vlaneseq
    %v1285 = vshrl.u32 %v1284, 7
    %v1286 = vsub.s32 %v1283, %v1285
    %v1287 = vrot.slane %v1279, %v1286
    %v1289 = vunpack.c.l.s4 1934713408
    %v1290 = vunpack.c.0.s8 %v1289
    %v1291 = vlaneseq
    %v1292 = vshrl.u32 %v1291, 7
    %v1293 = vsub.s32 %v1290, %v1292
    %v1294 = vrot.slane %v1280, %v1293
    %v1295 = vcombine.low %v1271, %v1287
    %v1296 = vcombine.high %v1271, %v1287
    %v1297 = vcombine.low %v1278, %v1294
    %v1298 = vcombine.high %v1278, %v1294
    %v1299 = vpack.c.bf16 %v525, %v525
    %v1300 = vpack.c.bf16 %v526, %v526
    %v1301 = vpack.c.bf16 %v527, %v527
    %v1302 = vpack.c.bf16 %v528, %v528
    %v1303 = vpack.c.bf16 %v593, %v593
    %v1304 = vpack.c.bf16 %v594, %v594
    %v1305 = vpack.c.bf16 %v595, %v595
    %v1306 = vpack.c.bf16 %v596, %v596
    %v1307 = vpack.c.bf16 %v876, %v876
    %v1308 = vpack.c.bf16 %v877, %v877
    %v1309 = vpack.c.bf16 %v878, %v878
    %v1310 = vpack.c.bf16 %v879, %v879
    %v1311 = vpack.c.bf16 %v944, %v944
    %v1312 = vpack.c.bf16 %v945, %v945
    %v1313 = vpack.c.bf16 %v946, %v946
    %v1314 = vpack.c.bf16 %v947, %v947
    %vm1315 = vcmask 64512
    %v1317 = vsel %vm1315, %v1299, 0
    %v1320 = vsel %vm1315, %v1307, 0
    %1322 = vmatprep.subr.bf16.mxu0 0
    %1323 = vmatpush1.bf16.xpose.msra.mxu0 %v1320
    %1324 = vmatprep.subr.bf16.mxu0 0
    %1325 = vmatpush1.bf16.xpose.msra.mxu0 0
    %1326 = vmatprep.subr.bf16.mxu0 0
    %1327 = vmatpush1.bf16.xpose.msra.mxu0 0
    %1328 = vmatprep.subr.bf16.mxu0 0
    %1329 = vmatpush1.bf16.xpose.msra.mxu0 0
    %1330 = vmatprep.subr.bf16.mxu0 0
    %1331 = vmatpush1.bf16.xpose.msra.mxu0 0
    %1332 = vmatprep.subr.bf16.mxu0 0
    %1333 = vmatpush1.bf16.xpose.msra.mxu0 0
    %1334 = vmatprep.subr.bf16.mxu0 0
    %1335 = vmatpush1.bf16.xpose.msra.mxu0 0
    %1336 = vmatprep.subr.bf16.mxu0 0
    %1337 = vmatpush1.bf16.xpose.msra.mxu0 0
    %1338 = vmatprep.subr.bf16.mxu0 0
    %1339 = vmatpush1.bf16.xpose.msra.mxu0 0
    %1340 = vmatprep.subr.bf16.mxu0 0
    %1341 = vmatpush1.bf16.xpose.msra.mxu0 0
    %1342 = vmatprep.subr.bf16.mxu0 0
    %1343 = vmatpush1.bf16.xpose.msra.mxu0 0
    %1344 = vmatprep.subr.bf16.mxu0 0
    %1345 = vmatpush1.bf16.xpose.msra.mxu0 0
    %1346 = vmatprep.subr.bf16.mxu0 0
    %1347 = vmatpush1.bf16.xpose.msra.mxu0 0
    %1348 = vmatprep.subr.bf16.mxu0 0
    %1349 = vmatpush1.bf16.xpose.msra.mxu0 0
    %1350 = vmatprep.subr.bf16.mxu0 0
    %1351 = vmatpush1.bf16.xpose.msra.mxu0 0
    %1352 = vmatprep.subr.bf16.mxu0 0
    %1353 = vmatpush1.bf16.xpose.msra.mxu0 0
    %1354 = vmatprep.mubr.bf16.mxu0 0
    %1355 = vmatmul.mubr.bf16.gmra.mrb[0].mxu0 %v1317
    %v1356 = vpop.f32.mrb[0].mxu0
    %v1357 = vadd.f32 %v214, %v1356
    %v1358 = vpop.f32.mrb[0].mxu0
    %v1359 = vpop.f32.mrb[0].mxu0
    %v1360 = vpop.f32.mrb[0].mxu0
    %1361 = vdwg.mxu0
    %v1363 = vsel %vm1315, %v1300, 0
    %v1366 = vsel %vm1315, %v1308, 0
    %1368 = vmatprep.subr.bf16.mxu0 0
    %1369 = vmatpush1.bf16.xpose.msra.mxu0 %v1366
    %1370 = vmatprep.subr.bf16.mxu0 0
    %1371 = vmatpush1.bf16.xpose.msra.mxu0 0
    %1372 = vmatprep.subr.bf16.mxu0 0
    %1373 = vmatpush1.bf16.xpose.msra.mxu0 0
    %1374 = vmatprep.subr.bf16.mxu0 0
    %1375 = vmatpush1.bf16.xpose.msra.mxu0 0
    %1376 = vmatprep.subr.bf16.mxu0 0
    %1377 = vmatpush1.bf16.xpose.msra.mxu0 0
    %1378 = vmatprep.subr.bf16.mxu0 0
    %1379 = vmatpush1.bf16.xpose.msra.mxu0 0
    %1380 = vmatprep.subr.bf16.mxu0 0
    %1381 = vmatpush1.bf16.xpose.msra.mxu0 0
    %1382 = vmatprep.subr.bf16.mxu0 0
    %1383 = vmatpush1.bf16.xpose.msra.mxu0 0
    %1384 = vmatprep.subr.bf16.mxu0 0
    %1385 = vmatpush1.bf16.xpose.msra.mxu0 0
    %1386 = vmatprep.subr.bf16.mxu0 0
    %1387 = vmatpush1.bf16.xpose.msra.mxu0 0
    %1388 = vmatprep.subr.bf16.mxu0 0
    %1389 = vmatpush1.bf16.xpose.msra.mxu0 0
    %1390 = vmatprep.subr.bf16.mxu0 0
    %1391 = vmatpush1.bf16.xpose.msra.mxu0 0
    %1392 = vmatprep.subr.bf16.mxu0 0
    %1393 = vmatpush1.bf16.xpose.msra.mxu0 0
    %1394 = vmatprep.subr.bf16.mxu0 0
    %1395 = vmatpush1.bf16.xpose.msra.mxu0 0
    %1396 = vmatprep.subr.bf16.mxu0 0
    %1397 = vmatpush1.bf16.xpose.msra.mxu0 0
    %1398 = vmatprep.subr.bf16.mxu0 0
    %1399 = vmatpush1.bf16.xpose.msra.mxu0 0
    %1400 = vmatprep.mubr.bf16.mxu0 0
    %1401 = vmatmul.mubr.bf16.gmra.mrb[0].mxu0 %v1363
    %v1402 = vpop.f32.mrb[0].mxu0
    %v1403 = vadd.f32 %v214, %v1402
    %v1404 = vpop.f32.mrb[0].mxu0
    %v1405 = vpop.f32.mrb[0].mxu0
    %v1406 = vpop.f32.mrb[0].mxu0
    %1407 = vdwg.mxu0
    %v1409 = vsel %vm1315, %v1301, 0
    %v1412 = vsel %vm1315, %v1309, 0
    %1414 = vmatprep.subr.bf16.mxu0 0
    %1415 = vmatpush1.bf16.xpose.msra.mxu0 %v1412
    %1416 = vmatprep.subr.bf16.mxu0 0
    %1417 = vmatpush1.bf16.xpose.msra.mxu0 0
    %1418 = vmatprep.subr.bf16.mxu0 0
    %1419 = vmatpush1.bf16.xpose.msra.mxu0 0
    %1420 = vmatprep.subr.bf16.mxu0 0
    %1421 = vmatpush1.bf16.xpose.msra.mxu0 0
    %1422 = vmatprep.subr.bf16.mxu0 0
    %1423 = vmatpush1.bf16.xpose.msra.mxu0 0
    %1424 = vmatprep.subr.bf16.mxu0 0
    %1425 = vmatpush1.bf16.xpose.msra.mxu0 0
    %1426 = vmatprep.subr.bf16.mxu0 0
    %1427 = vmatpush1.bf16.xpose.msra.mxu0 0
    %1428 = vmatprep.subr.bf16.mxu0 0
    %1429 = vmatpush1.bf16.xpose.msra.mxu0 0
    %1430 = vmatprep.subr.bf16.mxu0 0
    %1431 = vmatpush1.bf16.xpose.msra.mxu0 0
    %1432 = vmatprep.subr.bf16.mxu0 0
    %1433 = vmatpush1.bf16.xpose.msra.mxu0 0
    %1434 = vmatprep.subr.bf16.mxu0 0
    %1435 = vmatpush1.bf16.xpose.msra.mxu0 0
    %1436 = vmatprep.subr.bf16.mxu0 0
    %1437 = vmatpush1.bf16.xpose.msra.mxu0 0
    %1438 = vmatprep.subr.bf16.mxu0 0
    %1439 = vmatpush1.bf16.xpose.msra.mxu0 0
    %1440 = vmatprep.subr.bf16.mxu0 0
    %1441 = vmatpush1.bf16.xpose.msra.mxu0 0
    %1442 = vmatprep.subr.bf16.mxu0 0
    %1443 = vmatpush1.bf16.xpose.msra.mxu0 0
    %1444 = vmatprep.subr.bf16.mxu0 0
    %1445 = vmatpush1.bf16.xpose.msra.mxu0 0
    %1446 = vmatprep.mubr.bf16.mxu0 0
    %1447 = vmatmul.mubr.bf16.gmra.mrb[0].mxu0 %v1409
    %v1448 = vpop.f32.mrb[0].mxu0
    %v1449 = vadd.f32 %v214, %v1448
    %v1450 = vpop.f32.mrb[0].mxu0
    %v1451 = vpop.f32.mrb[0].mxu0
    %v1452 = vpop.f32.mrb[0].mxu0
    %1453 = vdwg.mxu0
    %v1455 = vsel %vm1315, %v1302, 0
    %v1458 = vsel %vm1315, %v1310, 0
    %1460 = vmatprep.subr.bf16.mxu0 0
    %1461 = vmatpush1.bf16.xpose.msra.mxu0 %v1458
    %1462 = vmatprep.subr.bf16.mxu0 0
    %1463 = vmatpush1.bf16.xpose.msra.mxu0 0
    %1464 = vmatprep.subr.bf16.mxu0 0
    %1465 = vmatpush1.bf16.xpose.msra.mxu0 0
    %1466 = vmatprep.subr.bf16.mxu0 0
    %1467 = vmatpush1.bf16.xpose.msra.mxu0 0
    %1468 = vmatprep.subr.bf16.mxu0 0
    %1469 = vmatpush1.bf16.xpose.msra.mxu0 0
    %1470 = vmatprep.subr.bf16.mxu0 0
    %1471 = vmatpush1.bf16.xpose.msra.mxu0 0
    %1472 = vmatprep.subr.bf16.mxu0 0
    %1473 = vmatpush1.bf16.xpose.msra.mxu0 0
    %1474 = vmatprep.subr.bf16.mxu0 0
    %1475 = vmatpush1.bf16.xpose.msra.mxu0 0
    %1476 = vmatprep.subr.bf16.mxu0 0
    %1477 = vmatpush1.bf16.xpose.msra.mxu0 0
    %1478 = vmatprep.subr.bf16.mxu0 0
    %1479 = vmatpush1.bf16.xpose.msra.mxu0 0
    %1480 = vmatprep.subr.bf16.mxu0 0
    %1481 = vmatpush1.bf16.xpose.msra.mxu0 0
    %1482 = vmatprep.subr.bf16.mxu0 0
    %1483 = vmatpush1.bf16.xpose.msra.mxu0 0
    %1484 = vmatprep.subr.bf16.mxu0 0
    %1485 = vmatpush1.bf16.xpose.msra.mxu0 0
    %1486 = vmatprep.subr.bf16.mxu0 0
    %1487 = vmatpush1.bf16.xpose.msra.mxu0 0
    %1488 = vmatprep.subr.bf16.mxu0 0
    %1489 = vmatpush1.bf16.xpose.msra.mxu0 0
    %1490 = vmatprep.subr.bf16.mxu0 0
    %1491 = vmatpush1.bf16.xpose.msra.mxu0 0
    %1492 = vmatprep.mubr.bf16.mxu0 0
    %1493 = vmatmul.mubr.bf16.gmra.mrb[0].mxu0 %v1455
    %v1494 = vpop.f32.mrb[0].mxu0
    %v1495 = vadd.f32 %v214, %v1494
    %v1496 = vpop.f32.mrb[0].mxu0
    %v1497 = vpop.f32.mrb[0].mxu0
    %v1498 = vpop.f32.mrb[0].mxu0
    %1499 = vdwg.mxu0
    %v1501 = vsel %vm1315, %v1303, 0
    %v1504 = vsel %vm1315, %v1311, 0
    %1506 = vmatprep.subr.bf16.mxu0 0
    %1507 = vmatpush1.bf16.xpose.msra.mxu0 %v1504
    %1508 = vmatprep.subr.bf16.mxu0 0
    %1509 = vmatpush1.bf16.xpose.msra.mxu0 0
    %1510 = vmatprep.subr.bf16.mxu0 0
    %1511 = vmatpush1.bf16.xpose.msra.mxu0 0
    %1512 = vmatprep.subr.bf16.mxu0 0
    %1513 = vmatpush1.bf16.xpose.msra.mxu0 0
    %1514 = vmatprep.subr.bf16.mxu0 0
    %1515 = vmatpush1.bf16.xpose.msra.mxu0 0
    %1516 = vmatprep.subr.bf16.mxu0 0
    %1517 = vmatpush1.bf16.xpose.msra.mxu0 0
    %1518 = vmatprep.subr.bf16.mxu0 0
    %1519 = vmatpush1.bf16.xpose.msra.mxu0 0
    %1520 = vmatprep.subr.bf16.mxu0 0
    %1521 = vmatpush1.bf16.xpose.msra.mxu0 0
    %1522 = vmatprep.subr.bf16.mxu0 0
    %1523 = vmatpush1.bf16.xpose.msra.mxu0 0
    %1524 = vmatprep.subr.bf16.mxu0 0
    %1525 = vmatpush1.bf16.xpose.msra.mxu0 0
    %1526 = vmatprep.subr.bf16.mxu0 0
    %1527 = vmatpush1.bf16.xpose.msra.mxu0 0
    %1528 = vmatprep.subr.bf16.mxu0 0
    %1529 = vmatpush1.bf16.xpose.msra.mxu0 0
    %1530 = vmatprep.subr.bf16.mxu0 0
    %1531 = vmatpush1.bf16.xpose.msra.mxu0 0
    %1532 = vmatprep.subr.bf16.mxu0 0
    %1533 = vmatpush1.bf16.xpose.msra.mxu0 0
    %1534 = vmatprep.subr.bf16.mxu0 0
    %1535 = vmatpush1.bf16.xpose.msra.mxu0 0
    %1536 = vmatprep.subr.bf16.mxu0 0
    %1537 = vmatpush1.bf16.xpose.msra.mxu0 0
    %1538 = vmatprep.mubr.bf16.mxu0 0
    %1539 = vmatmul.mubr.bf16.gmra.mrb[0].mxu0 %v1501
    %v1540 = vpop.f32.mrb[0].mxu0
    %v1541 = vadd.f32 %v218, %v1540
    %v1542 = vpop.f32.mrb[0].mxu0
    %v1543 = vpop.f32.mrb[0].mxu0
    %v1544 = vpop.f32.mrb[0].mxu0
    %1545 = vdwg.mxu0
    %v1547 = vsel %vm1315, %v1304, 0
    %v1550 = vsel %vm1315, %v1312, 0
    %1552 = vmatprep.subr.bf16.mxu0 0
    %1553 = vmatpush1.bf16.xpose.msra.mxu0 %v1550
    %1554 = vmatprep.subr.bf16.mxu0 0
    %1555 = vmatpush1.bf16.xpose.msra.mxu0 0
    %1556 = vmatprep.subr.bf16.mxu0 0
    %1557 = vmatpush1.bf16.xpose.msra.mxu0 0
    %1558 = vmatprep.subr.bf16.mxu0 0
    %1559 = vmatpush1.bf16.xpose.msra.mxu0 0
    %1560 = vmatprep.subr.bf16.mxu0 0
    %1561 = vmatpush1.bf16.xpose.msra.mxu0 0
    %1562 = vmatprep.subr.bf16.mxu0 0
    %1563 = vmatpush1.bf16.xpose.msra.mxu0 0
    %1564 = vmatprep.subr.bf16.mxu0 0
    %1565 = vmatpush1.bf16.xpose.msra.mxu0 0
    %1566 = vmatprep.subr.bf16.mxu0 0
    %1567 = vmatpush1.bf16.xpose.msra.mxu0 0
    %1568 = vmatprep.subr.bf16.mxu0 0
    %1569 = vmatpush1.bf16.xpose.msra.mxu0 0
    %1570 = vmatprep.subr.bf16.mxu0 0
    %1571 = vmatpush1.bf16.xpose.msra.mxu0 0
    %1572 = vmatprep.subr.bf16.mxu0 0
    %1573 = vmatpush1.bf16.xpose.msra.mxu0 0
    %1574 = vmatprep.subr.bf16.mxu0 0
    %1575 = vmatpush1.bf16.xpose.msra.mxu0 0
    %1576 = vmatprep.subr.bf16.mxu0 0
    %1577 = vmatpush1.bf16.xpose.msra.mxu0 0
    %1578 = vmatprep.subr.bf16.mxu0 0
    %1579 = vmatpush1.bf16.xpose.msra.mxu0 0
    %1580 = vmatprep.subr.bf16.mxu0 0
    %1581 = vmatpush1.bf16.xpose.msra.mxu0 0
    %1582 = vmatprep.subr.bf16.mxu0 0
    %1583 = vmatpush1.bf16.xpose.msra.mxu0 0
    %1584 = vmatprep.mubr.bf16.mxu0 0
    %1585 = vmatmul.mubr.bf16.gmra.mrb[0].mxu0 %v1547
    %v1586 = vpop.f32.mrb[0].mxu0
    %v1587 = vadd.f32 %v218, %v1586
    %v1588 = vpop.f32.mrb[0].mxu0
    %v1589 = vpop.f32.mrb[0].mxu0
    %v1590 = vpop.f32.mrb[0].mxu0
    %1591 = vdwg.mxu0
    %v1593 = vsel %vm1315, %v1305, 0
    %v1596 = vsel %vm1315, %v1313, 0
    %1598 = vmatprep.subr.bf16.mxu0 0
    %1599 = vmatpush1.bf16.xpose.msra.mxu0 %v1596
    %1600 = vmatprep.subr.bf16.mxu0 0
    %1601 = vmatpush1.bf16.xpose.msra.mxu0 0
    %1602 = vmatprep.subr.bf16.mxu0 0
    %1603 = vmatpush1.bf16.xpose.msra.mxu0 0
    %1604 = vmatprep.subr.bf16.mxu0 0
    %1605 = vmatpush1.bf16.xpose.msra.mxu0 0
    %1606 = vmatprep.subr.bf16.mxu0 0
    %1607 = vmatpush1.bf16.xpose.msra.mxu0 0
    %1608 = vmatprep.subr.bf16.mxu0 0
    %1609 = vmatpush1.bf16.xpose.msra.mxu0 0
    %1610 = vmatprep.subr.bf16.mxu0 0
    %1611 = vmatpush1.bf16.xpose.msra.mxu0 0
    %1612 = vmatprep.subr.bf16.mxu0 0
    %1613 = vmatpush1.bf16.xpose.msra.mxu0 0
    %1614 = vmatprep.subr.bf16.mxu0 0
    %1615 = vmatpush1.bf16.xpose.msra.mxu0 0
    %1616 = vmatprep.subr.bf16.mxu0 0
    %1617 = vmatpush1.bf16.xpose.msra.mxu0 0
    %1618 = vmatprep.subr.bf16.mxu0 0
    %1619 = vmatpush1.bf16.xpose.msra.mxu0 0
    %1620 = vmatprep.subr.bf16.mxu0 0
    %1621 = vmatpush1.bf16.xpose.msra.mxu0 0
    %1622 = vmatprep.subr.bf16.mxu0 0
    %1623 = vmatpush1.bf16.xpose.msra.mxu0 0
    %1624 = vmatprep.subr.bf16.mxu0 0
    %1625 = vmatpush1.bf16.xpose.msra.mxu0 0
    %1626 = vmatprep.subr.bf16.mxu0 0
    %1627 = vmatpush1.bf16.xpose.msra.mxu0 0
    %1628 = vmatprep.subr.bf16.mxu0 0
    %1629 = vmatpush1.bf16.xpose.msra.mxu0 0
    %1630 = vmatprep.mubr.bf16.mxu0 0
    %1631 = vmatmul.mubr.bf16.gmra.mrb[0].mxu0 %v1593
    %v1632 = vpop.f32.mrb[0].mxu0
    %v1633 = vadd.f32 %v218, %v1632
    %v1634 = vpop.f32.mrb[0].mxu0
    %v1635 = vpop.f32.mrb[0].mxu0
    %v1636 = vpop.f32.mrb[0].mxu0
    %1637 = vdwg.mxu0
    %v1639 = vsel %vm1315, %v1306, 0
    %v1642 = vsel %vm1315, %v1314, 0
    %1644 = vmatprep.subr.bf16.mxu0 0
    %1645 = vmatpush1.bf16.xpose.msra.mxu0 %v1642
    %1646 = vmatprep.subr.bf16.mxu0 0
    %1647 = vmatpush1.bf16.xpose.msra.mxu0 0
    %1648 = vmatprep.subr.bf16.mxu0 0
    %1649 = vmatpush1.bf16.xpose.msra.mxu0 0
    %1650 = vmatprep.subr.bf16.mxu0 0
    %1651 = vmatpush1.bf16.xpose.msra.mxu0 0
    %1652 = vmatprep.subr.bf16.mxu0 0
    %1653 = vmatpush1.bf16.xpose.msra.mxu0 0
    %1654 = vmatprep.subr.bf16.mxu0 0
    %1655 = vmatpush1.bf16.xpose.msra.mxu0 0
    %1656 = vmatprep.subr.bf16.mxu0 0
    %1657 = vmatpush1.bf16.xpose.msra.mxu0 0
    %1658 = vmatprep.subr.bf16.mxu0 0
    %1659 = vmatpush1.bf16.xpose.msra.mxu0 0
    %1660 = vmatprep.subr.bf16.mxu0 0
    %1661 = vmatpush1.bf16.xpose.msra.mxu0 0
    %1662 = vmatprep.subr.bf16.mxu0 0
    %1663 = vmatpush1.bf16.xpose.msra.mxu0 0
    %1664 = vmatprep.subr.bf16.mxu0 0
    %1665 = vmatpush1.bf16.xpose.msra.mxu0 0
    %1666 = vmatprep.subr.bf16.mxu0 0
    %1667 = vmatpush1.bf16.xpose.msra.mxu0 0
    %1668 = vmatprep.subr.bf16.mxu0 0
    %1669 = vmatpush1.bf16.xpose.msra.mxu0 0
    %1670 = vmatprep.subr.bf16.mxu0 0
    %1671 = vmatpush1.bf16.xpose.msra.mxu0 0
    %1672 = vmatprep.subr.bf16.mxu0 0
    %1673 = vmatpush1.bf16.xpose.msra.mxu0 0
    %1674 = vmatprep.subr.bf16.mxu0 0
    %1675 = vmatpush1.bf16.xpose.msra.mxu0 0
    %1676 = vmatprep.mubr.bf16.mxu0 0
    %1677 = vmatmul.mubr.bf16.gmra.mrb[0].mxu0 %v1639
    %v1678 = vpop.f32.mrb[0].mxu0
    %v1679 = vadd.f32 %v218, %v1678
    %v1680 = vpop.f32.mrb[0].mxu0
    %v1681 = vpop.f32.mrb[0].mxu0
    %v1682 = vpop.f32.mrb[0].mxu0
    %1683 = vdwg.mxu0
    %v1684 = vsel %vm1315, %v1357, -inf
    %1685 = vmax.xlane.f32.xlu0 %v1684
    %v1686 = vpop.xlane.xlu0 %1685
    %v1687 = vsel %vm1315, %v1403, -inf
    %1688 = vmax.xlane.f32.xlu0 %v1687
    %v1689 = vpop.xlane.xlu0 %1688
    %v1690 = vsel %vm1315, %v1449, -inf
    %1691 = vmax.xlane.f32.xlu0 %v1690
    %v1692 = vpop.xlane.xlu0 %1691
    %v1693 = vsel %vm1315, %v1495, -inf
    %1694 = vmax.xlane.f32.xlu0 %v1693
    %v1695 = vpop.xlane.xlu0 %1694
    %v1696 = vsel %vm1315, %v1541, -inf
    %1697 = vmax.xlane.f32.xlu0 %v1696
    %v1698 = vpop.xlane.xlu0 %1697
    %v1699 = vsel %vm1315, %v1587, -inf
    %1700 = vmax.xlane.f32.xlu0 %v1699
    %v1701 = vpop.xlane.xlu0 %1700
    %v1702 = vsel %vm1315, %v1633, -inf
    %1703 = vmax.xlane.f32.xlu0 %v1702
    %v1704 = vpop.xlane.xlu0 %1703
    %v1705 = vsel %vm1315, %v1679, -inf
    %1706 = vmax.xlane.f32.xlu0 %v1705
    %v1707 = vpop.xlane.xlu0 %1706
    %v1708 = vsub.f32 %v1357, %v1686
    %v1709 = vsub.f32 %v1403, %v1689
    %v1710 = vsub.f32 %v1449, %v1692
    %v1711 = vsub.f32 %v1495, %v1695
    %v1712 = vsub.f32 %v1541, %v1698
    %v1713 = vsub.f32 %v1587, %v1701
    %v1714 = vsub.f32 %v1633, %v1704
    %v1715 = vsub.f32 %v1679, %v1707
    %v1716 = vmul.f32 %v1708, 1.442695
    %v1717 = vpow.pop %v1716
    %v1718 = vmul.f32 %v1709, 1.442695
    %v1719 = vpow.pop %v1718
    %v1720 = vmul.f32 %v1710, 1.442695
    %v1721 = vpow.pop %v1720
    %v1722 = vmul.f32 %v1711, 1.442695
    %v1723 = vpow.pop %v1722
    %v1724 = vmul.f32 %v1712, 1.442695
    %v1725 = vpow.pop %v1724
    %v1726 = vmul.f32 %v1713, 1.442695
    %v1727 = vpow.pop %v1726
    %v1728 = vmul.f32 %v1714, 1.442695
    %v1729 = vpow.pop %v1728
    %v1730 = vmul.f32 %v1715, 1.442695
    %v1731 = vpow.pop %v1730
    %v1732 = vsel %vm1315, %v1717, 0.0
    %1733 = vadd.xlane.f32.xlu0 %v1732
    %v1734 = vpop.xlane.xlu0 %1733
    %v1735 = vsel %vm1315, %v1719, 0.0
    %1736 = vadd.xlane.f32.xlu0 %v1735
    %v1737 = vpop.xlane.xlu0 %1736
    %v1738 = vsel %vm1315, %v1721, 0.0
    %1739 = vadd.xlane.f32.xlu0 %v1738
    %v1740 = vpop.xlane.xlu0 %1739
    %v1741 = vsel %vm1315, %v1723, 0.0
    %1742 = vadd.xlane.f32.xlu0 %v1741
    %v1743 = vpop.xlane.xlu0 %1742
    %v1744 = vsel %vm1315, %v1725, 0.0
    %1745 = vadd.xlane.f32.xlu0 %v1744
    %v1746 = vpop.xlane.xlu0 %1745
    %v1747 = vsel %vm1315, %v1727, 0.0
    %1748 = vadd.xlane.f32.xlu0 %v1747
    %v1749 = vpop.xlane.xlu0 %1748
    %v1750 = vsel %vm1315, %v1729, 0.0
    %1751 = vadd.xlane.f32.xlu0 %v1750
    %v1752 = vpop.xlane.xlu0 %1751
    %v1753 = vsel %vm1315, %v1731, 0.0
    %1754 = vadd.xlane.f32.xlu0 %v1753
    %v1755 = vpop.xlane.xlu0 %1754
    %v1756 = vrcp.pop %v1734
    %v1757 = vrcp.pop %v1737
    %v1758 = vrcp.pop %v1740
    %v1759 = vrcp.pop %v1743
    %v1760 = vrcp.pop %v1746
    %v1761 = vrcp.pop %v1749
    %v1762 = vrcp.pop %v1752
    %v1763 = vrcp.pop %v1755
    %v1764 = vmul.f32 %v1717, %v1756
    %v1765 = vmul.f32 %v1719, %v1757
    %v1766 = vmul.f32 %v1721, %v1758
    %v1767 = vmul.f32 %v1723, %v1759
    %v1768 = vmul.f32 %v1725, %v1760
    %v1769 = vmul.f32 %v1727, %v1761
    %v1770 = vmul.f32 %v1729, %v1762
    %v1771 = vmul.f32 %v1731, %v1763
    %v1772 = vpack.c.bf16 %v1764, %v1764
    %v1773 = vpack.c.bf16 %v1765, %v1765
    %v1774 = vpack.c.bf16 %v1766, %v1766
    %v1775 = vpack.c.bf16 %v1767, %v1767
    %v1776 = vpack.c.bf16 %v1768, %v1768
    %v1777 = vpack.c.bf16 %v1769, %v1769
    %v1778 = vpack.c.bf16 %v1770, %v1770
    %v1779 = vpack.c.bf16 %v1771, %v1771
    %v1780 = vpack.c.bf16 %v1227, %v1227
    %v1781 = vpack.c.bf16 %v1228, %v1228
    %v1782 = vpack.c.bf16 %v1229, %v1229
    %v1783 = vpack.c.bf16 %v1230, %v1230
    %v1784 = vpack.c.bf16 %v1295, %v1295
    %v1785 = vpack.c.bf16 %v1296, %v1296
    %v1786 = vpack.c.bf16 %v1297, %v1297
    %v1787 = vpack.c.bf16 %v1298, %v1298
    %v1789 = vsel %vm1315, %v1772, 0
    %vm1791 = vcmask 1043456
    %v1793 = vsel %vm1791, %v1780, 0
    %1795 = vmatprep.subr.bf16.mxu0 0
    %1796 = vmatpush1.bf16.msra.mxu0 %v1793
    %1797 = vmatprep.subr.bf16.mxu0 0
    %1798 = vmatpush1.bf16.msra.mxu0 0
    %1799 = vmatprep.subr.bf16.mxu0 0
    %1800 = vmatpush1.bf16.msra.mxu0 0
    %1801 = vmatprep.subr.bf16.mxu0 0
    %1802 = vmatpush1.bf16.msra.mxu0 0
    %1803 = vmatprep.subr.bf16.mxu0 0
    %1804 = vmatpush1.bf16.msra.mxu0 0
    %1805 = vmatprep.subr.bf16.mxu0 0
    %1806 = vmatpush1.bf16.msra.mxu0 0
    %1807 = vmatprep.subr.bf16.mxu0 0
    %1808 = vmatpush1.bf16.msra.mxu0 0
    %1809 = vmatprep.subr.bf16.mxu0 0
    %1810 = vmatpush1.bf16.msra.mxu0 0
    %1811 = vmatprep.subr.bf16.mxu0 0
    %1812 = vmatpush1.bf16.msra.mxu0 0
    %1813 = vmatprep.subr.bf16.mxu0 0
    %1814 = vmatpush1.bf16.msra.mxu0 0
    %1815 = vmatprep.subr.bf16.mxu0 0
    %1816 = vmatpush1.bf16.msra.mxu0 0
    %1817 = vmatprep.subr.bf16.mxu0 0
    %1818 = vmatpush1.bf16.msra.mxu0 0
    %1819 = vmatprep.subr.bf16.mxu0 0
    %1820 = vmatpush1.bf16.msra.mxu0 0
    %1821 = vmatprep.subr.bf16.mxu0 0
    %1822 = vmatpush1.bf16.msra.mxu0 0
    %1823 = vmatprep.subr.bf16.mxu0 0
    %1824 = vmatpush1.bf16.msra.mxu0 0
    %1825 = vmatprep.subr.bf16.mxu0 0
    %1826 = vmatpush1.bf16.msra.mxu0 0
    %1827 = vmatprep.mubr.bf16.mxu0 0
    %1828 = vmatmul.mubr.bf16.gmra.mrb[0].mxu0 %v1789
    %v1829 = vpop.f32.mrb[0].mxu0
    %v1830 = vadd.f32 0.0, %v1829
    %v1831 = vpop.f32.mrb[0].mxu0
    %v1832 = vpop.f32.mrb[0].mxu0
    %v1833 = vpop.f32.mrb[0].mxu0
    %1834 = vdwg.mxu0
    %v1836 = vsel %vm1315, %v1773, 0
    %v1839 = vsel %vm1791, %v1781, 0
    %1841 = vmatprep.subr.bf16.mxu0 0
    %1842 = vmatpush1.bf16.msra.mxu0 %v1839
    %1843 = vmatprep.subr.bf16.mxu0 0
    %1844 = vmatpush1.bf16.msra.mxu0 0
    %1845 = vmatprep.subr.bf16.mxu0 0
    %1846 = vmatpush1.bf16.msra.mxu0 0
    %1847 = vmatprep.subr.bf16.mxu0 0
    %1848 = vmatpush1.bf16.msra.mxu0 0
    %1849 = vmatprep.subr.bf16.mxu0 0
    %1850 = vmatpush1.bf16.msra.mxu0 0
    %1851 = vmatprep.subr.bf16.mxu0 0
    %1852 = vmatpush1.bf16.msra.mxu0 0
    %1853 = vmatprep.subr.bf16.mxu0 0
    %1854 = vmatpush1.bf16.msra.mxu0 0
    %1855 = vmatprep.subr.bf16.mxu0 0
    %1856 = vmatpush1.bf16.msra.mxu0 0
    %1857 = vmatprep.subr.bf16.mxu0 0
    %1858 = vmatpush1.bf16.msra.mxu0 0
    %1859 = vmatprep.subr.bf16.mxu0 0
    %1860 = vmatpush1.bf16.msra.mxu0 0
    %1861 = vmatprep.subr.bf16.mxu0 0
    %1862 = vmatpush1.bf16.msra.mxu0 0
    %1863 = vmatprep.subr.bf16.mxu0 0
    %1864 = vmatpush1.bf16.msra.mxu0 0
    %1865 = vmatprep.subr.bf16.mxu0 0
    %1866 = vmatpush1.bf16.msra.mxu0 0
    %1867 = vmatprep.subr.bf16.mxu0 0
    %1868 = vmatpush1.bf16.msra.mxu0 0
    %1869 = vmatprep.subr.bf16.mxu0 0
    %1870 = vmatpush1.bf16.msra.mxu0 0
    %1871 = vmatprep.subr.bf16.mxu0 0
    %1872 = vmatpush1.bf16.msra.mxu0 0
    %1873 = vmatprep.mubr.bf16.mxu0 0
    %1874 = vmatmul.mubr.bf16.gmra.mrb[0].mxu0 %v1836
    %v1875 = vpop.f32.mrb[0].mxu0
    %v1876 = vadd.f32 0.0, %v1875
    %v1877 = vpop.f32.mrb[0].mxu0
    %v1878 = vpop.f32.mrb[0].mxu0
    %v1879 = vpop.f32.mrb[0].mxu0
    %1880 = vdwg.mxu0
    %v1882 = vsel %vm1315, %v1774, 0
    %v1885 = vsel %vm1791, %v1782, 0
    %1887 = vmatprep.subr.bf16.mxu0 0
    %1888 = vmatpush1.bf16.msra.mxu0 %v1885
    %1889 = vmatprep.subr.bf16.mxu0 0
    %1890 = vmatpush1.bf16.msra.mxu0 0
    %1891 = vmatprep.subr.bf16.mxu0 0
    %1892 = vmatpush1.bf16.msra.mxu0 0
    %1893 = vmatprep.subr.bf16.mxu0 0
    %1894 = vmatpush1.bf16.msra.mxu0 0
    %1895 = vmatprep.subr.bf16.mxu0 0
    %1896 = vmatpush1.bf16.msra.mxu0 0
    %1897 = vmatprep.subr.bf16.mxu0 0
    %1898 = vmatpush1.bf16.msra.mxu0 0
    %1899 = vmatprep.subr.bf16.mxu0 0
    %1900 = vmatpush1.bf16.msra.mxu0 0
    %1901 = vmatprep.subr.bf16.mxu0 0
    %1902 = vmatpush1.bf16.msra.mxu0 0
    %1903 = vmatprep.subr.bf16.mxu0 0
    %1904 = vmatpush1.bf16.msra.mxu0 0
    %1905 = vmatprep.subr.bf16.mxu0 0
    %1906 = vmatpush1.bf16.msra.mxu0 0
    %1907 = vmatprep.subr.bf16.mxu0 0
    %1908 = vmatpush1.bf16.msra.mxu0 0
    %1909 = vmatprep.subr.bf16.mxu0 0
    %1910 = vmatpush1.bf16.msra.mxu0 0
    %1911 = vmatprep.subr.bf16.mxu0 0
    %1912 = vmatpush1.bf16.msra.mxu0 0
    %1913 = vmatprep.subr.bf16.mxu0 0
    %1914 = vmatpush1.bf16.msra.mxu0 0
    %1915 = vmatprep.subr.bf16.mxu0 0
    %1916 = vmatpush1.bf16.msra.mxu0 0
    %1917 = vmatprep.subr.bf16.mxu0 0
    %1918 = vmatpush1.bf16.msra.mxu0 0
    %1919 = vmatprep.mubr.bf16.mxu0 0
    %1920 = vmatmul.mubr.bf16.gmra.mrb[0].mxu0 %v1882
    %v1921 = vpop.f32.mrb[0].mxu0
    %v1922 = vadd.f32 0.0, %v1921
    %v1923 = vpop.f32.mrb[0].mxu0
    %v1924 = vpop.f32.mrb[0].mxu0
    %v1925 = vpop.f32.mrb[0].mxu0
    %1926 = vdwg.mxu0
    %v1928 = vsel %vm1315, %v1775, 0
    %v1931 = vsel %vm1791, %v1783, 0
    %1933 = vmatprep.subr.bf16.mxu0 0
    %1934 = vmatpush1.bf16.msra.mxu0 %v1931
    %1935 = vmatprep.subr.bf16.mxu0 0
    %1936 = vmatpush1.bf16.msra.mxu0 0
    %1937 = vmatprep.subr.bf16.mxu0 0
    %1938 = vmatpush1.bf16.msra.mxu0 0
    %1939 = vmatprep.subr.bf16.mxu0 0
    %1940 = vmatpush1.bf16.msra.mxu0 0
    %1941 = vmatprep.subr.bf16.mxu0 0
    %1942 = vmatpush1.bf16.msra.mxu0 0
    %1943 = vmatprep.subr.bf16.mxu0 0
    %1944 = vmatpush1.bf16.msra.mxu0 0
    %1945 = vmatprep.subr.bf16.mxu0 0
    %1946 = vmatpush1.bf16.msra.mxu0 0
    %1947 = vmatprep.subr.bf16.mxu0 0
    %1948 = vmatpush1.bf16.msra.mxu0 0
    %1949 = vmatprep.subr.bf16.mxu0 0
    %1950 = vmatpush1.bf16.msra.mxu0 0
    %1951 = vmatprep.subr.bf16.mxu0 0
    %1952 = vmatpush1.bf16.msra.mxu0 0
    %1953 = vmatprep.subr.bf16.mxu0 0
    %1954 = vmatpush1.bf16.msra.mxu0 0
    %1955 = vmatprep.subr.bf16.mxu0 0
    %1956 = vmatpush1.bf16.msra.mxu0 0
    %1957 = vmatprep.subr.bf16.mxu0 0
    %1958 = vmatpush1.bf16.msra.mxu0 0
    %1959 = vmatprep.subr.bf16.mxu0 0
    %1960 = vmatpush1.bf16.msra.mxu0 0
    %1961 = vmatprep.subr.bf16.mxu0 0
    %1962 = vmatpush1.bf16.msra.mxu0 0
    %1963 = vmatprep.subr.bf16.mxu0 0
    %1964 = vmatpush1.bf16.msra.mxu0 0
    %1965 = vmatprep.mubr.bf16.mxu0 0
    %1966 = vmatmul.mubr.bf16.gmra.mrb[0].mxu0 %v1928
    %v1967 = vpop.f32.mrb[0].mxu0
    %v1968 = vadd.f32 0.0, %v1967
    %v1969 = vpop.f32.mrb[0].mxu0
    %v1970 = vpop.f32.mrb[0].mxu0
    %v1971 = vpop.f32.mrb[0].mxu0
    %1972 = vdwg.mxu0
    %v1974 = vsel %vm1315, %v1776, 0
    %v1977 = vsel %vm1791, %v1784, 0
    %1979 = vmatprep.subr.bf16.mxu0 0
    %1980 = vmatpush1.bf16.msra.mxu0 %v1977
    %1981 = vmatprep.subr.bf16.mxu0 0
    %1982 = vmatpush1.bf16.msra.mxu0 0
    %1983 = vmatprep.subr.bf16.mxu0 0
    %1984 = vmatpush1.bf16.msra.mxu0 0
    %1985 = vmatprep.subr.bf16.mxu0 0
    %1986 = vmatpush1.bf16.msra.mxu0 0
    %1987 = vmatprep.subr.bf16.mxu0 0
    %1988 = vmatpush1.bf16.msra.mxu0 0
    %1989 = vmatprep.subr.bf16.mxu0 0
    %1990 = vmatpush1.bf16.msra.mxu0 0
    %1991 = vmatprep.subr.bf16.mxu0 0
    %1992 = vmatpush1.bf16.msra.mxu0 0
    %1993 = vmatprep.subr.bf16.mxu0 0
    %1994 = vmatpush1.bf16.msra.mxu0 0
    %1995 = vmatprep.subr.bf16.mxu0 0
    %1996 = vmatpush1.bf16.msra.mxu0 0
    %1997 = vmatprep.subr.bf16.mxu0 0
    %1998 = vmatpush1.bf16.msra.mxu0 0
    %1999 = vmatprep.subr.bf16.mxu0 0
    %2000 = vmatpush1.bf16.msra.mxu0 0
    %2001 = vmatprep.subr.bf16.mxu0 0
    %2002 = vmatpush1.bf16.msra.mxu0 0
    %2003 = vmatprep.subr.bf16.mxu0 0
    %2004 = vmatpush1.bf16.msra.mxu0 0
    %2005 = vmatprep.subr.bf16.mxu0 0
    %2006 = vmatpush1.bf16.msra.mxu0 0
    %2007 = vmatprep.subr.bf16.mxu0 0
    %2008 = vmatpush1.bf16.msra.mxu0 0
    %2009 = vmatprep.subr.bf16.mxu0 0
    %2010 = vmatpush1.bf16.msra.mxu0 0
    %2011 = vmatprep.mubr.bf16.mxu0 0
    %2012 = vmatmul.mubr.bf16.gmra.mrb[0].mxu0 %v1974
    %v2013 = vpop.f32.mrb[0].mxu0
    %v2014 = vadd.f32 0.0, %v2013
    %v2015 = vpop.f32.mrb[0].mxu0
    %v2016 = vpop.f32.mrb[0].mxu0
    %v2017 = vpop.f32.mrb[0].mxu0
    %2018 = vdwg.mxu0
    %v2020 = vsel %vm1315, %v1777, 0
    %v2023 = vsel %vm1791, %v1785, 0
    %2025 = vmatprep.subr.bf16.mxu0 0
    %2026 = vmatpush1.bf16.msra.mxu0 %v2023
    %2027 = vmatprep.subr.bf16.mxu0 0
    %2028 = vmatpush1.bf16.msra.mxu0 0
    %2029 = vmatprep.subr.bf16.mxu0 0
    %2030 = vmatpush1.bf16.msra.mxu0 0
    %2031 = vmatprep.subr.bf16.mxu0 0
    %2032 = vmatpush1.bf16.msra.mxu0 0
    %2033 = vmatprep.subr.bf16.mxu0 0
    %2034 = vmatpush1.bf16.msra.mxu0 0
    %2035 = vmatprep.subr.bf16.mxu0 0
    %2036 = vmatpush1.bf16.msra.mxu0 0
    %2037 = vmatprep.subr.bf16.mxu0 0
    %2038 = vmatpush1.bf16.msra.mxu0 0
    %2039 = vmatprep.subr.bf16.mxu0 0
    %2040 = vmatpush1.bf16.msra.mxu0 0
    %2041 = vmatprep.subr.bf16.mxu0 0
    %2042 = vmatpush1.bf16.msra.mxu0 0
    %2043 = vmatprep.subr.bf16.mxu0 0
    %2044 = vmatpush1.bf16.msra.mxu0 0
    %2045 = vmatprep.subr.bf16.mxu0 0
    %2046 = vmatpush1.bf16.msra.mxu0 0
    %2047 = vmatprep.subr.bf16.mxu0 0
    %2048 = vmatpush1.bf16.msra.mxu0 0
    %2049 = vmatprep.subr.bf16.mxu0 0
    %2050 = vmatpush1.bf16.msra.mxu0 0
    %2051 = vmatprep.subr.bf16.mxu0 0
    %2052 = vmatpush1.bf16.msra.mxu0 0
    %2053 = vmatprep.subr.bf16.mxu0 0
    %2054 = vmatpush1.bf16.msra.mxu0 0
    %2055 = vmatprep.subr.bf16.mxu0 0
    %2056 = vmatpush1.bf16.msra.mxu0 0
    %2057 = vmatprep.mubr.bf16.mxu0 0
    %2058 = vmatmul.mubr.bf16.gmra.mrb[0].mxu0 %v2020
    %v2059 = vpop.f32.mrb[0].mxu0
    %v2060 = vadd.f32 0.0, %v2059
    %v2061 = vpop.f32.mrb[0].mxu0
    %v2062 = vpop.f32.mrb[0].mxu0
    %v2063 = vpop.f32.mrb[0].mxu0
    %2064 = vdwg.mxu0
    %v2066 = vsel %vm1315, %v1778, 0
    %v2069 = vsel %vm1791, %v1786, 0
    %2071 = vmatprep.subr.bf16.mxu0 0
    %2072 = vmatpush1.bf16.msra.mxu0 %v2069
    %2073 = vmatprep.subr.bf16.mxu0 0
    %2074 = vmatpush1.bf16.msra.mxu0 0
    %2075 = vmatprep.subr.bf16.mxu0 0
    %2076 = vmatpush1.bf16.msra.mxu0 0
    %2077 = vmatprep.subr.bf16.mxu0 0
    %2078 = vmatpush1.bf16.msra.mxu0 0
    %2079 = vmatprep.subr.bf16.mxu0 0
    %2080 = vmatpush1.bf16.msra.mxu0 0
    %2081 = vmatprep.subr.bf16.mxu0 0
    %2082 = vmatpush1.bf16.msra.mxu0 0
    %2083 = vmatprep.subr.bf16.mxu0 0
    %2084 = vmatpush1.bf16.msra.mxu0 0
    %2085 = vmatprep.subr.bf16.mxu0 0
    %2086 = vmatpush1.bf16.msra.mxu0 0
    %2087 = vmatprep.subr.bf16.mxu0 0
    %2088 = vmatpush1.bf16.msra.mxu0 0
    %2089 = vmatprep.subr.bf16.mxu0 0
    %2090 = vmatpush1.bf16.msra.mxu0 0
    %2091 = vmatprep.subr.bf16.mxu0 0
    %2092 = vmatpush1.bf16.msra.mxu0 0
    %2093 = vmatprep.subr.bf16.mxu0 0
    %2094 = vmatpush1.bf16.msra.mxu0 0
    %2095 = vmatprep.subr.bf16.mxu0 0
    %2096 = vmatpush1.bf16.msra.mxu0 0
    %2097 = vmatprep.subr.bf16.mxu0 0
    %2098 = vmatpush1.bf16.msra.mxu0 0
    %2099 = vmatprep.subr.bf16.mxu0 0
    %2100 = vmatpush1.bf16.msra.mxu0 0
    %2101 = vmatprep.subr.bf16.mxu0 0
    %2102 = vmatpush1.bf16.msra.mxu0 0
    %2103 = vmatprep.mubr.bf16.mxu0 0
    %2104 = vmatmul.mubr.bf16.gmra.mrb[0].mxu0 %v2066
    %v2105 = vpop.f32.mrb[0].mxu0
    %v2106 = vadd.f32 0.0, %v2105
    %v2107 = vpop.f32.mrb[0].mxu0
    %v2108 = vpop.f32.mrb[0].mxu0
    %v2109 = vpop.f32.mrb[0].mxu0
    %2110 = vdwg.mxu0
    %v2112 = vsel %vm1315, %v1779, 0
    %v2115 = vsel %vm1791, %v1787, 0
    %2117 = vmatprep.subr.bf16.mxu0 0
    %2118 = vmatpush1.bf16.msra.mxu0 %v2115
    %2119 = vmatprep.subr.bf16.mxu0 0
    %2120 = vmatpush1.bf16.msra.mxu0 0
    %2121 = vmatprep.subr.bf16.mxu0 0
    %2122 = vmatpush1.bf16.msra.mxu0 0
    %2123 = vmatprep.subr.bf16.mxu0 0
    %2124 = vmatpush1.bf16.msra.mxu0 0
    %2125 = vmatprep.subr.bf16.mxu0 0
    %2126 = vmatpush1.bf16.msra.mxu0 0
    %2127 = vmatprep.subr.bf16.mxu0 0
    %2128 = vmatpush1.bf16.msra.mxu0 0
    %2129 = vmatprep.subr.bf16.mxu0 0
    %2130 = vmatpush1.bf16.msra.mxu0 0
    %2131 = vmatprep.subr.bf16.mxu0 0
    %2132 = vmatpush1.bf16.msra.mxu0 0
    %2133 = vmatprep.subr.bf16.mxu0 0
    %2134 = vmatpush1.bf16.msra.mxu0 0
    %2135 = vmatprep.subr.bf16.mxu0 0
    %2136 = vmatpush1.bf16.msra.mxu0 0
    %2137 = vmatprep.subr.bf16.mxu0 0
    %2138 = vmatpush1.bf16.msra.mxu0 0
    %2139 = vmatprep.subr.bf16.mxu0 0
    %2140 = vmatpush1.bf16.msra.mxu0 0
    %2141 = vmatprep.subr.bf16.mxu0 0
    %2142 = vmatpush1.bf16.msra.mxu0 0
    %2143 = vmatprep.subr.bf16.mxu0 0
    %2144 = vmatpush1.bf16.msra.mxu0 0
    %2145 = vmatprep.subr.bf16.mxu0 0
    %2146 = vmatpush1.bf16.msra.mxu0 0
    %2147 = vmatprep.subr.bf16.mxu0 0
    %2148 = vmatpush1.bf16.msra.mxu0 0
    %2149 = vmatprep.mubr.bf16.mxu0 0
    %2150 = vmatmul.mubr.bf16.gmra.mrb[0].mxu0 %v2112
    %v2151 = vpop.f32.mrb[0].mxu0
    %v2152 = vadd.f32 0.0, %v2151
    %v2153 = vpop.f32.mrb[0].mxu0
    %v2154 = vpop.f32.mrb[0].mxu0
    %v2155 = vpop.f32.mrb[0].mxu0
    %2156 = vdwg.mxu0
    %v2157 = vcombine.low %v1830, %v1922
    %v2158 = vcombine.high %v1830, %v1922
    %v2160 = vunpack.c.l.s4 1983009808
    %v2161 = vunpack.c.0.s8 %v2160
    %v2162 = vlaneseq
    %v2163 = vshrl.u32 %v2162, 7
    %v2164 = vsub.s32 %v2161, %v2163
    %v2165 = vrot.slane %v2157, %v2164
    %v2167 = vunpack.c.l.s4 1983009808
    %v2168 = vunpack.c.0.s8 %v2167
    %v2169 = vlaneseq
    %v2170 = vshrl.u32 %v2169, 7
    %v2171 = vsub.s32 %v2168, %v2170
    %v2172 = vrot.slane %v2158, %v2171
    %v2173 = vcombine.low %v1876, %v1968
    %v2174 = vcombine.high %v1876, %v1968
    %v2176 = vunpack.c.l.s4 1983009808
    %v2177 = vunpack.c.0.s8 %v2176
    %v2178 = vlaneseq
    %v2179 = vshrl.u32 %v2178, 7
    %v2180 = vsub.s32 %v2177, %v2179
    %v2181 = vrot.slane %v2173, %v2180
    %v2183 = vunpack.c.l.s4 1983009808
    %v2184 = vunpack.c.0.s8 %v2183
    %v2185 = vlaneseq
    %v2186 = vshrl.u32 %v2185, 7
    %v2187 = vsub.s32 %v2184, %v2186
    %v2188 = vrot.slane %v2174, %v2187
    %v2189 = vcombine.low %v2165, %v2181
    %v2190 = vcombine.high %v2165, %v2181
    %v2192 = vunpack.c.l.s4 1934713408
    %v2193 = vunpack.c.0.s8 %v2192
    %v2194 = vlaneseq
    %v2195 = vshrl.u32 %v2194, 7
    %v2196 = vsub.s32 %v2193, %v2195
    %v2197 = vrot.slane %v2189, %v2196
    %v2199 = vunpack.c.l.s4 1934713408
    %v2200 = vunpack.c.0.s8 %v2199
    %v2201 = vlaneseq
    %v2202 = vshrl.u32 %v2201, 7
    %v2203 = vsub.s32 %v2200, %v2202
    %v2204 = vrot.slane %v2190, %v2203
    %v2205 = vcombine.low %v2172, %v2188
    %v2206 = vcombine.high %v2172, %v2188
    %v2208 = vunpack.c.l.s4 1934713408
    %v2209 = vunpack.c.0.s8 %v2208
    %v2210 = vlaneseq
    %v2211 = vshrl.u32 %v2210, 7
    %v2212 = vsub.s32 %v2209, %v2211
    %v2213 = vrot.slane %v2205, %v2212
    %v2215 = vunpack.c.l.s4 1934713408
    %v2216 = vunpack.c.0.s8 %v2215
    %v2217 = vlaneseq
    %v2218 = vshrl.u32 %v2217, 7
    %v2219 = vsub.s32 %v2216, %v2218
    %v2220 = vrot.slane %v2206, %v2219
    %v2221 = vcombine.high %v2197, 0.0
    %v2222 = vcombine.high %v2204, 0.0
    %v2223 = vcombine.high %v2213, 0.0
    %v2224 = vcombine.high %v2220, 0.0
    %v2225 = vcombine.low %v2014, %v2106
    %v2226 = vcombine.high %v2014, %v2106
    %v2228 = vunpack.c.l.s4 1983009808
    %v2229 = vunpack.c.0.s8 %v2228
    %v2230 = vlaneseq
    %v2231 = vshrl.u32 %v2230, 7
    %v2232 = vsub.s32 %v2229, %v2231
    %v2233 = vrot.slane %v2225, %v2232
    %v2235 = vunpack.c.l.s4 1983009808
    %v2236 = vunpack.c.0.s8 %v2235
    %v2237 = vlaneseq
    %v2238 = vshrl.u32 %v2237, 7
    %v2239 = vsub.s32 %v2236, %v2238
    %v2240 = vrot.slane %v2226, %v2239
    %v2241 = vcombine.low %v2060, %v2152
    %v2242 = vcombine.high %v2060, %v2152
    %v2244 = vunpack.c.l.s4 1983009808
    %v2245 = vunpack.c.0.s8 %v2244
    %v2246 = vlaneseq
    %v2247 = vshrl.u32 %v2246, 7
    %v2248 = vsub.s32 %v2245, %v2247
    %v2249 = vrot.slane %v2241, %v2248
    %v2251 = vunpack.c.l.s4 1983009808
    %v2252 = vunpack.c.0.s8 %v2251
    %v2253 = vlaneseq
    %v2254 = vshrl.u32 %v2253, 7
    %v2255 = vsub.s32 %v2252, %v2254
    %v2256 = vrot.slane %v2242, %v2255
    %v2257 = vcombine.low %v2233, %v2249
    %v2258 = vcombine.high %v2233, %v2249
    %v2260 = vunpack.c.l.s4 1934713408
    %v2261 = vunpack.c.0.s8 %v2260
    %v2262 = vlaneseq
    %v2263 = vshrl.u32 %v2262, 7
    %v2264 = vsub.s32 %v2261, %v2263
    %v2265 = vrot.slane %v2257, %v2264
    %v2267 = vunpack.c.l.s4 1934713408
    %v2268 = vunpack.c.0.s8 %v2267
    %v2269 = vlaneseq
    %v2270 = vshrl.u32 %v2269, 7
    %v2271 = vsub.s32 %v2268, %v2270
    %v2272 = vrot.slane %v2258, %v2271
    %v2273 = vcombine.low %v2240, %v2256
    %v2274 = vcombine.high %v2240, %v2256
    %v2276 = vunpack.c.l.s4 1934713408
    %v2277 = vunpack.c.0.s8 %v2276
    %v2278 = vlaneseq
    %v2279 = vshrl.u32 %v2278, 7
    %v2280 = vsub.s32 %v2277, %v2279
    %v2281 = vrot.slane %v2273, %v2280
    %v2283 = vunpack.c.l.s4 1934713408
    %v2284 = vunpack.c.0.s8 %v2283
    %v2285 = vlaneseq
    %v2286 = vshrl.u32 %v2285, 7
    %v2287 = vsub.s32 %v2284, %v2286
    %v2288 = vrot.slane %v2274, %v2287
    %v2289 = vcombine.high %v2265, 0.0
    %v2290 = vcombine.high %v2272, 0.0
    %v2291 = vcombine.high %v2281, 0.0
    %v2292 = vcombine.high %v2288, 0.0
    %v2293 = vcombine.low %v2197, %v2204
    %v2295 = vunpack.c.l.s4 1983009808
    %v2296 = vunpack.c.0.s8 %v2295
    %v2297 = vlaneseq
    %v2298 = vshrl.u32 %v2297, 7
    %v2299 = vsub.s32 %v2296, %v2298
    %v2300 = vrot.slane %v2293, %v2299
    %v2301 = vcombine.low %v2221, %v2222
    %v2303 = vunpack.c.l.s4 1983009808
    %v2304 = vunpack.c.0.s8 %v2303
    %v2305 = vlaneseq
    %v2306 = vshrl.u32 %v2305, 7
    %v2307 = vsub.s32 %v2304, %v2306
    %v2308 = vrot.slane %v2301, %v2307
    %v2309 = vcombine.low %v2213, %v2220
    %v2311 = vunpack.c.l.s4 1983009808
    %v2312 = vunpack.c.0.s8 %v2311
    %v2313 = vlaneseq
    %v2314 = vshrl.u32 %v2313, 7
    %v2315 = vsub.s32 %v2312, %v2314
    %v2316 = vrot.slane %v2309, %v2315
    %v2317 = vcombine.low %v2223, %v2224
    %v2319 = vunpack.c.l.s4 1983009808
    %v2320 = vunpack.c.0.s8 %v2319
    %v2321 = vlaneseq
    %v2322 = vshrl.u32 %v2321, 7
    %v2323 = vsub.s32 %v2320, %v2322
    %v2324 = vrot.slane %v2317, %v2323
    %v2325 = vcombine.low %v2300, %v2308
    %v2326 = vcombine.high %v2300, %v2308
    %v2328 = vunpack.c.l.s4 1934713408
    %v2329 = vunpack.c.0.s8 %v2328
    %v2330 = vlaneseq
    %v2331 = vshrl.u32 %v2330, 7
    %v2332 = vsub.s32 %v2329, %v2331
    %v2333 = vrot.slane %v2325, %v2332
    %v2335 = vunpack.c.l.s4 1934713408
    %v2336 = vunpack.c.0.s8 %v2335
    %v2337 = vlaneseq
    %v2338 = vshrl.u32 %v2337, 7
    %v2339 = vsub.s32 %v2336, %v2338
    %v2340 = vrot.slane %v2326, %v2339
    %v2341 = vcombine.low %v2316, %v2324
    %v2342 = vcombine.high %v2316, %v2324
    %v2344 = vunpack.c.l.s4 1934713408
    %v2345 = vunpack.c.0.s8 %v2344
    %v2346 = vlaneseq
    %v2347 = vshrl.u32 %v2346, 7
    %v2348 = vsub.s32 %v2345, %v2347
    %v2349 = vrot.slane %v2341, %v2348
    %v2351 = vunpack.c.l.s4 1934713408
    %v2352 = vunpack.c.0.s8 %v2351
    %v2353 = vlaneseq
    %v2354 = vshrl.u32 %v2353, 7
    %v2355 = vsub.s32 %v2352, %v2354
    %v2356 = vrot.slane %v2342, %v2355
    %v2357 = vcombine.low %v2333, %v2349
    %v2358 = vcombine.high %v2333, %v2349
    %v2359 = vcombine.low %v2340, %v2356
    %v2360 = vcombine.high %v2340, %v2356
    %v2361 = vcombine.low %v2265, %v2272
    %v2363 = vunpack.c.l.s4 1983009808
    %v2364 = vunpack.c.0.s8 %v2363
    %v2365 = vlaneseq
    %v2366 = vshrl.u32 %v2365, 7
    %v2367 = vsub.s32 %v2364, %v2366
    %v2368 = vrot.slane %v2361, %v2367
    %v2369 = vcombine.low %v2289, %v2290
    %v2371 = vunpack.c.l.s4 1983009808
    %v2372 = vunpack.c.0.s8 %v2371
    %v2373 = vlaneseq
    %v2374 = vshrl.u32 %v2373, 7
    %v2375 = vsub.s32 %v2372, %v2374
    %v2376 = vrot.slane %v2369, %v2375
    %v2377 = vcombine.low %v2281, %v2288
    %v2379 = vunpack.c.l.s4 1983009808
    %v2380 = vunpack.c.0.s8 %v2379
    %v2381 = vlaneseq
    %v2382 = vshrl.u32 %v2381, 7
    %v2383 = vsub.s32 %v2380, %v2382
    %v2384 = vrot.slane %v2377, %v2383
    %v2385 = vcombine.low %v2291, %v2292
    %v2387 = vunpack.c.l.s4 1983009808
    %v2388 = vunpack.c.0.s8 %v2387
    %v2389 = vlaneseq
    %v2390 = vshrl.u32 %v2389, 7
    %v2391 = vsub.s32 %v2388, %v2390
    %v2392 = vrot.slane %v2385, %v2391
    %v2393 = vcombine.low %v2368, %v2376
    %v2394 = vcombine.high %v2368, %v2376
    %v2396 = vunpack.c.l.s4 1934713408
    %v2397 = vunpack.c.0.s8 %v2396
    %v2398 = vlaneseq
    %v2399 = vshrl.u32 %v2398, 7
    %v2400 = vsub.s32 %v2397, %v2399
    %v2401 = vrot.slane %v2393, %v2400
    %v2403 = vunpack.c.l.s4 1934713408
    %v2404 = vunpack.c.0.s8 %v2403
    %v2405 = vlaneseq
    %v2406 = vshrl.u32 %v2405, 7
    %v2407 = vsub.s32 %v2404, %v2406
    %v2408 = vrot.slane %v2394, %v2407
    %v2409 = vcombine.low %v2384, %v2392
    %v2410 = vcombine.high %v2384, %v2392
    %v2412 = vunpack.c.l.s4 1934713408
    %v2413 = vunpack.c.0.s8 %v2412
    %v2414 = vlaneseq
    %v2415 = vshrl.u32 %v2414, 7
    %v2416 = vsub.s32 %v2413, %v2415
    %v2417 = vrot.slane %v2409, %v2416
    %v2419 = vunpack.c.l.s4 1934713408
    %v2420 = vunpack.c.0.s8 %v2419
    %v2421 = vlaneseq
    %v2422 = vshrl.u32 %v2421, 7
    %v2423 = vsub.s32 %v2420, %v2422
    %v2424 = vrot.slane %v2410, %v2423
    %v2425 = vcombine.low %v2401, %v2417
    %v2426 = vcombine.high %v2401, %v2417
    %v2427 = vcombine.low %v2408, %v2424
    %v2428 = vcombine.high %v2408, %v2424
    %2431 = vrot.lane.b32.xlu0 %v2358, 8
    %v2432 = vpop.permute.xlu0 %2431
    %2433 = vrot.lane.b32.xlu0 %v2426, 8
    %v2434 = vpop.permute.xlu0 %2433
    %2439 = vrot.lane.b32.xlu0 %v2359, 16
    %v2440 = vpop.permute.xlu0 %2439
    %2441 = vrot.lane.b32.xlu0 %v2427, 16
    %v2442 = vpop.permute.xlu0 %2441
    %2447 = vrot.lane.b32.xlu0 %v2360, 24
    %v2448 = vpop.permute.xlu0 %2447
    %2449 = vrot.lane.b32.xlu0 %v2428, 24
    %v2450 = vpop.permute.xlu0 %2449
    %v2453 = vsel %vm1315, %v2357, %v2432
    %v2454 = vsel %vm1315, %v2425, %v2434
    %vm2455 = vcmask 130048
    %v2456 = vsel %vm2455, %v2453, %v2440
    %v2457 = vsel %vm2455, %v2454, %v2442
    %vm2458 = vcmask 195584
    %v2459 = vsel %vm2458, %v2456, %v2448
    %v2460 = vsel %vm2458, %v2457, %v2450
    %v2461 = vld [vmem:[#allocation8] sm:$0xf]
    %v2462 = vld [vmem:[#allocation8 + $0x4] sm:$0xf]
    %v2463 = vld [vmem:[#allocation8 + $0x8] sm:$0xf]
    %v2464 = vld [vmem:[#allocation8 + $0xc] sm:$0xf]
    %v2465 = vpack.c.bf16 %v2460, %v2459
    %v2467 = vlaneseq
    %v2468 = vshrl.u32 %v2467, 7
    %v2469 = vsub.s32 0, %v2468
    %v2470 = vrot.slane %v236, %v2469
    %v2476 = vunpack.c.l.b16 %v2461
    %v2477 = vunpack.c.l.b16 %v2462
    %v2478 = vunpack.c.l.b16 %v2463
    %v2479 = vunpack.c.l.b16 %v2464
    %v2480 = vpack.c.b16 %v2477, %v2476
    %v2481 = vpack.c.b16 %v2479, %v2478
    %v2485 = vsel %vm141, %v2465, 0
    %2487 = vmatprep.subr.bf16.mxu0 0
    %2488 = vmatpush1.bf16.msra.mxu0 %v2480
    %2489 = vmatprep.subr.bf16.mxu0 0
    %2490 = vmatpush1.bf16.msra.mxu0 %v2481
    %2491 = vmatprep.subr.bf16.mxu0 0
    %2492 = vmatpush1.bf16.msra.mxu0 0
    %2493 = vmatprep.subr.bf16.mxu0 0
    %2494 = vmatpush1.bf16.msra.mxu0 0
    %2495 = vmatprep.subr.bf16.mxu0 0
    %2496 = vmatpush1.bf16.msra.mxu0 0
    %2497 = vmatprep.subr.bf16.mxu0 0
    %2498 = vmatpush1.bf16.msra.mxu0 0
    %2499 = vmatprep.subr.bf16.mxu0 0
    %2500 = vmatpush1.bf16.msra.mxu0 0
    %2501 = vmatprep.subr.bf16.mxu0 0
    %2502 = vmatpush1.bf16.msra.mxu0 0
    %2503 = vmatprep.subr.bf16.mxu0 0
    %2504 = vmatpush1.bf16.msra.mxu0 0
    %2505 = vmatprep.subr.bf16.mxu0 0
    %2506 = vmatpush1.bf16.msra.mxu0 0
    %2507 = vmatprep.subr.bf16.mxu0 0
    %2508 = vmatpush1.bf16.msra.mxu0 0
    %2509 = vmatprep.subr.bf16.mxu0 0
    %2510 = vmatpush1.bf16.msra.mxu0 0
    %2511 = vmatprep.subr.bf16.mxu0 0
    %2512 = vmatpush1.bf16.msra.mxu0 0
    %2513 = vmatprep.subr.bf16.mxu0 0
    %2514 = vmatpush1.bf16.msra.mxu0 0
    %2515 = vmatprep.subr.bf16.mxu0 0
    %2516 = vmatpush1.bf16.msra.mxu0 0
    %2517 = vmatprep.subr.bf16.mxu0 0
    %2518 = vmatpush1.bf16.msra.mxu0 0
    %2519 = vmatprep.mubr.bf16.mxu0 0
    %2520 = vmatmul.mubr.bf16.gmra.mrb[0].mxu0 %v2485
    %v2521 = vpop.f32.mrb[0].mxu0
    %v2522 = vadd.f32 %v2470, %v2521
    %v2523 = vpop.f32.mrb[0].mxu0
    %v2524 = vpop.f32.mrb[0].mxu0
    %v2525 = vadd.f32 %v2470, %v2524
    %v2526 = vpop.f32.mrb[0].mxu0
    %2527 = vdwg.mxu0
    %v2528 = vadd.f32 %v183, %v2522
    %v2529 = vadd.f32 %v184, %v2525
    %v2530 = vsel %vm141, %v2528, 0.0
    %2531 = vadd.xlane.f32.xlu0 %v2530
    %v2532 = vpop.xlane.xlu0 %2531
    %v2533 = vsel %vm141, %v2529, 0.0
    %2534 = vadd.xlane.f32.xlu0 %v2533
    %v2535 = vpop.xlane.xlu0 %2534
    %v2536 = vmul.f32 %v2532, %v148
    %v2537 = vmul.f32 %v2535, %v148
    %v2538 = vsub.f32 %v2528, %v2536
    %v2539 = vsub.f32 %v2529, %v2537
    %v2540 = vmul.f32 %v2538, %v2538
    %v2541 = vmul.f32 %v2539, %v2539
    %v2542 = vsel %vm141, %v2540, 0.0
    %2543 = vadd.xlane.f32.xlu0 %v2542
    %v2544 = vpop.xlane.xlu0 %2543
    %v2545 = vsel %vm141, %v2541, 0.0
    %2546 = vadd.xlane.f32.xlu0 %v2545
    %v2547 = vpop.xlane.xlu0 %2546
    %v2548 = vmul.f32 %v2544, %v148
    %v2549 = vmul.f32 %v2547, %v148
    %v2550 = vadd.f32 %v2548, 1e-12
    %v2551 = vadd.f32 %v2549, 1e-12
    %v2552 = vrsqrt.pop %v2550
    %v2553 = vrsqrt.pop %v2551
    %v2554 = vmul.f32 %v2538, %v2552
    %v2555 = vmul.f32 %v2539, %v2553
    %v2557 = vlaneseq
    %v2558 = vshrl.u32 %v2557, 7
    %v2559 = vsub.s32 0, %v2558
    %v2560 = vrot.slane %v237, %v2559
    %v2562 = vmul.f32 %v2554, %v2560
    %v2563 = vmul.f32 %v2555, %v2560
    %v2565 = vlaneseq
    %v2566 = vshrl.u32 %v2565, 7
    %v2567 = vsub.s32 0, %v2566
    %v2568 = vrot.slane %v238, %v2567
    %v2570 = vadd.f32 %v2562, %v2568
    %v2571 = vadd.f32 %v2563, %v2568
    %v2572 = vld [vmem:[#allocation10] sm:$0xf]
    %v2573 = vld [vmem:[#allocation10 + $0x4] sm:$0xf]
    %v2574 = vld [vmem:[#allocation10 + $0x8] sm:$0xf]
    %v2575 = vld [vmem:[#allocation10 + $0xc] sm:$0xf]
    %v2576 = vpack.c.bf16 %v2571, %v2570
    %v2577 = vld [vmem:[#allocation11] sm:$0x1]
    %v2579 = vlaneseq
    %v2580 = vshrl.u32 %v2579, 7
    %v2581 = vsub.s32 0, %v2580
    %v2582 = vrot.slane %v2577, %v2581
    %v2588 = vunpack.c.l.b16 %v2572
    %v2589 = vunpack.c.l.b16 %v2573
    %v2590 = vunpack.c.l.b16 %v2574
    %v2591 = vunpack.c.l.b16 %v2575
    %v2592 = vpack.c.b16 %v2589, %v2588
    %v2593 = vpack.c.b16 %v2591, %v2590
    %v2597 = vsel %vm141, %v2576, 0
    %2599 = vmatprep.subr.bf16.mxu0 0
    %2600 = vmatpush1.bf16.msra.mxu0 %v2592
    %2601 = vmatprep.subr.bf16.mxu0 0
    %2602 = vmatpush1.bf16.msra.mxu0 %v2593
    %2603 = vmatprep.subr.bf16.mxu0 0
    %2604 = vmatpush1.bf16.msra.mxu0 0
    %2605 = vmatprep.subr.bf16.mxu0 0
    %2606 = vmatpush1.bf16.msra.mxu0 0
    %2607 = vmatprep.subr.bf16.mxu0 0
    %2608 = vmatpush1.bf16.msra.mxu0 0
    %2609 = vmatprep.subr.bf16.mxu0 0
    %2610 = vmatpush1.bf16.msra.mxu0 0
    %2611 = vmatprep.subr.bf16.mxu0 0
    %2612 = vmatpush1.bf16.msra.mxu0 0
    %2613 = vmatprep.subr.bf16.mxu0 0
    %2614 = vmatpush1.bf16.msra.mxu0 0
    %2615 = vmatprep.subr.bf16.mxu0 0
    %2616 = vmatpush1.bf16.msra.mxu0 0
    %2617 = vmatprep.subr.bf16.mxu0 0
    %2618 = vmatpush1.bf16.msra.mxu0 0
    %2619 = vmatprep.subr.bf16.mxu0 0
    %2620 = vmatpush1.bf16.msra.mxu0 0
    %2621 = vmatprep.subr.bf16.mxu0 0
    %2622 = vmatpush1.bf16.msra.mxu0 0
    %2623 = vmatprep.subr.bf16.mxu0 0
    %2624 = vmatpush1.bf16.msra.mxu0 0
    %2625 = vmatprep.subr.bf16.mxu0 0
    %2626 = vmatpush1.bf16.msra.mxu0 0
    %2627 = vmatprep.subr.bf16.mxu0 0
    %2628 = vmatpush1.bf16.msra.mxu0 0
    %2629 = vmatprep.subr.bf16.mxu0 0
    %2630 = vmatpush1.bf16.msra.mxu0 0
    %2631 = vmatprep.mubr.bf16.mxu0 0
    %2632 = vmatmul.mubr.bf16.gmra.mrb[0].mxu0 %v2597
    %v2633 = vpop.f32.mrb[0].mxu0
    %v2634 = vadd.f32 %v2582, %v2633
    %v2635 = vpop.f32.mrb[0].mxu0
    %v2636 = vpop.f32.mrb[0].mxu0
    %v2637 = vadd.f32 %v2582, %v2636
    %v2638 = vpop.f32.mrb[0].mxu0
    %2639 = vdwg.mxu0
    %v2640 = vmul.f32 %v2634, %v2634
    %v2641 = vmul.f32 %v2637, %v2637
    %v2642 = vmul.f32 %v2634, %v2640
    %v2643 = vmul.f32 %v2637, %v2641
    %v2644 = vmul.f32 %v2642, 0.044715
    %v2645 = vmul.f32 %v2643, 0.044715
    %v2646 = vadd.f32 %v2634, %v2644
    %v2647 = vadd.f32 %v2637, %v2645
    %v2648 = vmul.f32 %v2646, 0.7978846
    %v2649 = vmul.f32 %v2647, 0.7978846
    %v2650 = vtanh.pop %v2648
    %v2651 = vtanh.pop %v2649
    %v2652 = vadd.f32 %v2650, 1.0
    %v2653 = vadd.f32 %v2651, 1.0
    %v2654 = vmul.f32 %v2652, 0.5
    %v2655 = vmul.f32 %v2653, 0.5
    %v2656 = vmul.f32 %v2634, %v2654
    %v2657 = vmul.f32 %v2637, %v2655
    %v2658 = vld [vmem:[%s8] sm:$0xf]
    %v2659 = vld [vmem:[%s8 + $0x4] sm:$0xf]
    %v2660 = vld [vmem:[%s8 + $0x8] sm:$0xf]
    %v2661 = vld [vmem:[%s8 + $0xc] sm:$0xf]
    %v2662 = vld [vmem:[%s8 + $0x10] sm:$0xf]
    %v2663 = vld [vmem:[%s8 + $0x14] sm:$0xf]
    %v2664 = vld [vmem:[%s8 + $0x18] sm:$0xf]
    %v2665 = vld [vmem:[%s8 + $0x1c] sm:$0xf]
    %v2666 = vpack.c.bf16 %v2657, %v2656
    %v2668 = vlaneseq
    %v2669 = vshrl.u32 %v2668, 7
    %v2670 = vsub.s32 0, %v2669
    %v2671 = vrot.slane %v239, %v2670
    %v2681 = vunpack.c.l.b16 %v2658
    %v2682 = vunpack.c.l.b16 %v2659
    %v2683 = vunpack.c.l.b16 %v2660
    %v2684 = vunpack.c.l.b16 %v2661
    %v2685 = vunpack.c.l.b16 %v2662
    %v2686 = vunpack.c.l.b16 %v2663
    %v2687 = vunpack.c.l.b16 %v2664
    %v2688 = vunpack.c.l.b16 %v2665
    %v2689 = vpack.c.b16 %v2682, %v2681
    %v2690 = vpack.c.b16 %v2684, %v2683
    %v2691 = vpack.c.b16 %v2686, %v2685
    %v2692 = vpack.c.b16 %v2688, %v2687
    %vm2697 = vcmask 523264
    %v2699 = vsel %vm2697, %v2666, 0
    %2701 = vmatprep.subr.bf16.mxu0 0
    %2702 = vmatpush1.bf16.msra.mxu0 %v2689
    %2703 = vmatprep.subr.bf16.mxu0 0
    %2704 = vmatpush1.bf16.msra.mxu0 %v2690
    %2705 = vmatprep.subr.bf16.mxu0 0
    %2706 = vmatpush1.bf16.msra.mxu0 %v2691
    %2707 = vmatprep.subr.bf16.mxu0 0
    %2708 = vmatpush1.bf16.msra.mxu0 %v2692
    %2709 = vmatprep.subr.bf16.mxu0 0
    %2710 = vmatpush1.bf16.msra.mxu0 0
    %2711 = vmatprep.subr.bf16.mxu0 0
    %2712 = vmatpush1.bf16.msra.mxu0 0
    %2713 = vmatprep.subr.bf16.mxu0 0
    %2714 = vmatpush1.bf16.msra.mxu0 0
    %2715 = vmatprep.subr.bf16.mxu0 0
    %2716 = vmatpush1.bf16.msra.mxu0 0
    %2717 = vmatprep.subr.bf16.mxu0 0
    %2718 = vmatpush1.bf16.msra.mxu0 0
    %2719 = vmatprep.subr.bf16.mxu0 0
    %2720 = vmatpush1.bf16.msra.mxu0 0
    %2721 = vmatprep.subr.bf16.mxu0 0
    %2722 = vmatpush1.bf16.msra.mxu0 0
    %2723 = vmatprep.subr.bf16.mxu0 0
    %2724 = vmatpush1.bf16.msra.mxu0 0
    %2725 = vmatprep.subr.bf16.mxu0 0
    %2726 = vmatpush1.bf16.msra.mxu0 0
    %2727 = vmatprep.subr.bf16.mxu0 0
    %2728 = vmatpush1.bf16.msra.mxu0 0
    %2729 = vmatprep.subr.bf16.mxu0 0
    %2730 = vmatpush1.bf16.msra.mxu0 0
    %2731 = vmatprep.subr.bf16.mxu0 0
    %2732 = vmatpush1.bf16.msra.mxu0 0
    %2733 = vmatprep.mubr.bf16.mxu0 0
    %2734 = vmatmul.mubr.bf16.gmra.mrb[0].mxu0 %v2699
    %v2735 = vpop.f32.mrb[0].mxu0
    %v2736 = vadd.f32 %v2671, %v2735
    %v2737 = vpop.f32.mrb[0].mxu0
    %v2738 = vpop.f32.mrb[0].mxu0
    %v2739 = vadd.f32 %v2671, %v2738
    %v2740 = vpop.f32.mrb[0].mxu0
    %2741 = vdwg.mxu0
    %v2742 = vadd.f32 %v2570, %v2736
    %v2743 = vadd.f32 %v2571, %v2739
    %v2744 = vsel %vm141, %v2742, 0.0
    %2745 = vadd.xlane.f32.xlu0 %v2744
    %v2746 = vpop.xlane.xlu0 %2745
    %v2747 = vsel %vm141, %v2743, 0.0
    %2748 = vadd.xlane.f32.xlu0 %v2747
    %v2749 = vpop.xlane.xlu0 %2748
    %v2750 = vmul.f32 %v2746, %v148
    %v2751 = vmul.f32 %v2749, %v148
    %v2752 = vsub.f32 %v2742, %v2750
    %v2753 = vsub.f32 %v2743, %v2751
    %v2754 = vmul.f32 %v2752, %v2752
    %v2755 = vmul.f32 %v2753, %v2753
    %v2756 = vsel %vm141, %v2754, 0.0
    %2757 = vadd.xlane.f32.xlu0 %v2756
    %v2758 = vpop.xlane.xlu0 %2757
    %v2759 = vsel %vm141, %v2755, 0.0
    %2760 = vadd.xlane.f32.xlu0 %v2759
    %v2761 = vpop.xlane.xlu0 %2760
    %v2762 = vmul.f32 %v2758, %v148
    %v2763 = vmul.f32 %v2761, %v148
    %v2764 = vadd.f32 %v2762, 1e-12
    %v2765 = vadd.f32 %v2763, 1e-12
    %v2766 = vrsqrt.pop %v2764
    %v2767 = vrsqrt.pop %v2765
    %v2768 = vmul.f32 %v2752, %v2766
    %v2769 = vmul.f32 %v2753, %v2767
    %v2771 = vlaneseq
    %v2772 = vshrl.u32 %v2771, 7
    %v2773 = vsub.s32 0, %v2772
    %v2774 = vrot.slane %v240, %v2773
    %v2776 = vmul.f32 %v2768, %v2774
    %v2777 = vmul.f32 %v2769, %v2774
    %v2779 = vlaneseq
    %v2780 = vshrl.u32 %v2779, 7
    %v2781 = vsub.s32 0, %v2780
    %v2782 = vrot.slane %v241, %v2781
    %v2784 = vadd.f32 %v2776, %v2782
    %v2785 = vadd.f32 %v2777, %v2782
    %s2786 = scalar_lea.vmem %s3, 48
    %v2787 = vld [vmem:[%s2786] sm:$0xf]
    %v2788 = vld [vmem:[%s2786 + $0x4] sm:$0xf]
    %v2789 = vld [vmem:[%s2786 + $0x8] sm:$0xf]
    %v2790 = vld [vmem:[%s2786 + $0xc] sm:$0xf]
    %v2791 = vld [vmem:[%s2786 + $0x10] sm:$0xf]
    %v2792 = vld [vmem:[%s2786 + $0x14] sm:$0xf]
    %v2793 = vld [vmem:[%s2786 + $0x18] sm:$0xf]
    %v2794 = vld [vmem:[%s2786 + $0x1c] sm:$0xf]
    %v2795 = vld [vmem:[%s2786 + $0x20] sm:$0xf]
    %v2796 = vld [vmem:[%s2786 + $0x24] sm:$0xf]
    %v2797 = vld [vmem:[%s2786 + $0x28] sm:$0xf]
    %v2798 = vld [vmem:[%s2786 + $0x2c] sm:$0xf]
    %s2799 = scalar_lea.vmem %s5, 9
    %v2800 = vld [vmem:[%s2799] sm:$0x1]
    %v2801 = vld [vmem:[%s2799 + $0x1] sm:$0x1]
    %v2802 = vld [vmem:[%s2799 + $0x2] sm:$0x1]
    %v2803 = vld [vmem:[%s2799 + $0x3] sm:$0x1]
    %v2804 = vld [vmem:[%s2799 + $0x4] sm:$0x1]
    %v2805 = vld [vmem:[%s2799 + $0x5] sm:$0x1]
    %v2806 = vld [vmem:[%s2799 + $0x6] sm:$0x1]
    %v2807 = vld [vmem:[%s2799 + $0x7] sm:$0x1]
    %v2808 = vld [vmem:[%s2799 + $0x8] sm:$0x1]
    %v2809 = vpack.c.bf16 %v2785, %v2784
    %v2811 = vlaneseq
    %v2812 = vshrl.u32 %v2811, 7
    %v2813 = vsub.s32 0, %v2812
    %v2814 = vrot.slane %v2800, %v2813
    %v2820 = vunpack.c.l.b16 %v2787
    %v2821 = vunpack.c.l.b16 %v2788
    %v2822 = vunpack.c.l.b16 %v2789
    %v2823 = vunpack.c.l.b16 %v2790
    %v2824 = vpack.c.b16 %v2821, %v2820
    %v2825 = vpack.c.b16 %v2823, %v2822
    %v2829 = vsel %vm141, %v2809, 0
    %2831 = vmatprep.subr.bf16.mxu0 0
    %2832 = vmatpush1.bf16.msra.mxu0 %v2824
    %2833 = vmatprep.subr.bf16.mxu0 0
    %2834 = vmatpush1.bf16.msra.mxu0 %v2825
    %2835 = vmatprep.subr.bf16.mxu0 0
    %2836 = vmatpush1.bf16.msra.mxu0 0
    %2837 = vmatprep.subr.bf16.mxu0 0
    %2838 = vmatpush1.bf16.msra.mxu0 0
    %2839 = vmatprep.subr.bf16.mxu0 0
    %2840 = vmatpush1.bf16.msra.mxu0 0
    %2841 = vmatprep.subr.bf16.mxu0 0
    %2842 = vmatpush1.bf16.msra.mxu0 0
    %2843 = vmatprep.subr.bf16.mxu0 0
    %2844 = vmatpush1.bf16.msra.mxu0 0
    %2845 = vmatprep.subr.bf16.mxu0 0
    %2846 = vmatpush1.bf16.msra.mxu0 0
    %2847 = vmatprep.subr.bf16.mxu0 0
    %2848 = vmatpush1.bf16.msra.mxu0 0
    %2849 = vmatprep.subr.bf16.mxu0 0
    %2850 = vmatpush1.bf16.msra.mxu0 0
    %2851 = vmatprep.subr.bf16.mxu0 0
    %2852 = vmatpush1.bf16.msra.mxu0 0
    %2853 = vmatprep.subr.bf16.mxu0 0
    %2854 = vmatpush1.bf16.msra.mxu0 0
    %2855 = vmatprep.subr.bf16.mxu0 0
    %2856 = vmatpush1.bf16.msra.mxu0 0
    %2857 = vmatprep.subr.bf16.mxu0 0
    %2858 = vmatpush1.bf16.msra.mxu0 0
    %2859 = vmatprep.subr.bf16.mxu0 0
    %2860 = vmatpush1.bf16.msra.mxu0 0
    %2861 = vmatprep.subr.bf16.mxu0 0
    %2862 = vmatpush1.bf16.msra.mxu0 0
    %2863 = vmatprep.mubr.bf16.mxu0 0
    %2864 = vmatmul.mubr.bf16.gmra.mrb[0].mxu0 %v2829
    %v2865 = vpop.f32.mrb[0].mxu0
    %v2866 = vadd.f32 %v2814, %v2865
    %v2867 = vpop.f32.mrb[0].mxu0
    %v2868 = vpop.f32.mrb[0].mxu0
    %v2869 = vadd.f32 %v2814, %v2868
    %v2870 = vpop.f32.mrb[0].mxu0
    %2871 = vdwg.mxu0
    %2874 = vrot.lane.b32.xlu0 %v2866, 120
    %v2875 = vpop.permute.xlu0 %2874
    %2876 = vrot.lane.b32.xlu0 %v2869, 120
    %v2877 = vpop.permute.xlu0 %2876
    %2880 = vrot.lane.b32.xlu0 %v2866, 112
    %v2881 = vpop.permute.xlu0 %2880
    %2882 = vrot.lane.b32.xlu0 %v2869, 112
    %v2883 = vpop.permute.xlu0 %2882
    %2886 = vrot.lane.b32.xlu0 %v2866, 104
    %v2887 = vpop.permute.xlu0 %2886
    %2888 = vrot.lane.b32.xlu0 %v2869, 104
    %v2889 = vpop.permute.xlu0 %2888
    %v2892 = vcombine.low %v2866, %v2881
    %v2893 = vcombine.high %v2866, %v2881
    %v2895 = vunpack.c.l.s4 1983009808
    %v2896 = vunpack.c.0.s8 %v2895
    %v2897 = vlaneseq
    %v2898 = vshrl.u32 %v2897, 7
    %v2899 = vsub.s32 %v2896, %v2898
    %v2900 = vrot.slane %v2892, %v2899
    %v2902 = vunpack.c.l.s4 1983009808
    %v2903 = vunpack.c.0.s8 %v2902
    %v2904 = vlaneseq
    %v2905 = vshrl.u32 %v2904, 7
    %v2906 = vsub.s32 %v2903, %v2905
    %v2907 = vrot.slane %v2893, %v2906
    %v2908 = vcombine.low %v2875, %v2887
    %v2909 = vcombine.high %v2875, %v2887
    %v2911 = vunpack.c.l.s4 1983009808
    %v2912 = vunpack.c.0.s8 %v2911
    %v2913 = vlaneseq
    %v2914 = vshrl.u32 %v2913, 7
    %v2915 = vsub.s32 %v2912, %v2914
    %v2916 = vrot.slane %v2908, %v2915
    %v2918 = vunpack.c.l.s4 1983009808
    %v2919 = vunpack.c.0.s8 %v2918
    %v2920 = vlaneseq
    %v2921 = vshrl.u32 %v2920, 7
    %v2922 = vsub.s32 %v2919, %v2921
    %v2923 = vrot.slane %v2909, %v2922
    %v2924 = vcombine.low %v2900, %v2916
    %v2925 = vcombine.high %v2900, %v2916
    %v2927 = vunpack.c.l.s4 1934713408
    %v2928 = vunpack.c.0.s8 %v2927
    %v2929 = vlaneseq
    %v2930 = vshrl.u32 %v2929, 7
    %v2931 = vsub.s32 %v2928, %v2930
    %v2932 = vrot.slane %v2924, %v2931
    %v2934 = vunpack.c.l.s4 1934713408
    %v2935 = vunpack.c.0.s8 %v2934
    %v2936 = vlaneseq
    %v2937 = vshrl.u32 %v2936, 7
    %v2938 = vsub.s32 %v2935, %v2937
    %v2939 = vrot.slane %v2925, %v2938
    %v2940 = vcombine.low %v2907, %v2923
    %v2941 = vcombine.high %v2907, %v2923
    %v2943 = vunpack.c.l.s4 1934713408
    %v2944 = vunpack.c.0.s8 %v2943
    %v2945 = vlaneseq
    %v2946 = vshrl.u32 %v2945, 7
    %v2947 = vsub.s32 %v2944, %v2946
    %v2948 = vrot.slane %v2940, %v2947
    %v2950 = vunpack.c.l.s4 1934713408
    %v2951 = vunpack.c.0.s8 %v2950
    %v2952 = vlaneseq
    %v2953 = vshrl.u32 %v2952, 7
    %v2954 = vsub.s32 %v2951, %v2953
    %v2955 = vrot.slane %v2941, %v2954
    %v2956 = vcombine.high %v2932, 0.0
    %v2957 = vcombine.high %v2939, 0.0
    %v2958 = vcombine.high %v2948, 0.0
    %v2959 = vcombine.high %v2955, 0.0
    %v2960 = vcombine.low %v2869, %v2883
    %v2961 = vcombine.high %v2869, %v2883
    %v2963 = vunpack.c.l.s4 1983009808
    %v2964 = vunpack.c.0.s8 %v2963
    %v2965 = vlaneseq
    %v2966 = vshrl.u32 %v2965, 7
    %v2967 = vsub.s32 %v2964, %v2966
    %v2968 = vrot.slane %v2960, %v2967
    %v2970 = vunpack.c.l.s4 1983009808
    %v2971 = vunpack.c.0.s8 %v2970
    %v2972 = vlaneseq
    %v2973 = vshrl.u32 %v2972, 7
    %v2974 = vsub.s32 %v2971, %v2973
    %v2975 = vrot.slane %v2961, %v2974
    %v2976 = vcombine.low %v2877, %v2889
    %v2977 = vcombine.high %v2877, %v2889
    %v2979 = vunpack.c.l.s4 1983009808
    %v2980 = vunpack.c.0.s8 %v2979
    %v2981 = vlaneseq
    %v2982 = vshrl.u32 %v2981, 7
    %v2983 = vsub.s32 %v2980, %v2982
    %v2984 = vrot.slane %v2976, %v2983
    %v2986 = vunpack.c.l.s4 1983009808
    %v2987 = vunpack.c.0.s8 %v2986
    %v2988 = vlaneseq
    %v2989 = vshrl.u32 %v2988, 7
    %v2990 = vsub.s32 %v2987, %v2989
    %v2991 = vrot.slane %v2977, %v2990
    %v2992 = vcombine.low %v2968, %v2984
    %v2993 = vcombine.high %v2968, %v2984
    %v2995 = vunpack.c.l.s4 1934713408
    %v2996 = vunpack.c.0.s8 %v2995
    %v2997 = vlaneseq
    %v2998 = vshrl.u32 %v2997, 7
    %v2999 = vsub.s32 %v2996, %v2998
    %v3000 = vrot.slane %v2992, %v2999
    %v3002 = vunpack.c.l.s4 1934713408
    %v3003 = vunpack.c.0.s8 %v3002
    %v3004 = vlaneseq
    %v3005 = vshrl.u32 %v3004, 7
    %v3006 = vsub.s32 %v3003, %v3005
    %v3007 = vrot.slane %v2993, %v3006
    %v3008 = vcombine.low %v2975, %v2991
    %v3009 = vcombine.high %v2975, %v2991
    %v3011 = vunpack.c.l.s4 1934713408
    %v3012 = vunpack.c.0.s8 %v3011
    %v3013 = vlaneseq
    %v3014 = vshrl.u32 %v3013, 7
    %v3015 = vsub.s32 %v3012, %v3014
    %v3016 = vrot.slane %v3008, %v3015
    %v3018 = vunpack.c.l.s4 1934713408
    %v3019 = vunpack.c.0.s8 %v3018
    %v3020 = vlaneseq
    %v3021 = vshrl.u32 %v3020, 7
    %v3022 = vsub.s32 %v3019, %v3021
    %v3023 = vrot.slane %v3009, %v3022
    %v3024 = vcombine.high %v3000, 0.0
    %v3025 = vcombine.high %v3007, 0.0
    %v3026 = vcombine.high %v3016, 0.0
    %v3027 = vcombine.high %v3023, 0.0
    %v3028 = vcombine.low %v2932, %v2939
    %v3030 = vunpack.c.l.s4 1983009808
    %v3031 = vunpack.c.0.s8 %v3030
    %v3032 = vlaneseq
    %v3033 = vshrl.u32 %v3032, 7
    %v3034 = vsub.s32 %v3031, %v3033
    %v3035 = vrot.slane %v3028, %v3034
    %v3036 = vcombine.low %v2956, %v2957
    %v3038 = vunpack.c.l.s4 1983009808
    %v3039 = vunpack.c.0.s8 %v3038
    %v3040 = vlaneseq
    %v3041 = vshrl.u32 %v3040, 7
    %v3042 = vsub.s32 %v3039, %v3041
    %v3043 = vrot.slane %v3036, %v3042
    %v3044 = vcombine.low %v2948, %v2955
    %v3046 = vunpack.c.l.s4 1983009808
    %v3047 = vunpack.c.0.s8 %v3046
    %v3048 = vlaneseq
    %v3049 = vshrl.u32 %v3048, 7
    %v3050 = vsub.s32 %v3047, %v3049
    %v3051 = vrot.slane %v3044, %v3050
    %v3052 = vcombine.low %v2958, %v2959
    %v3054 = vunpack.c.l.s4 1983009808
    %v3055 = vunpack.c.0.s8 %v3054
    %v3056 = vlaneseq
    %v3057 = vshrl.u32 %v3056, 7
    %v3058 = vsub.s32 %v3055, %v3057
    %v3059 = vrot.slane %v3052, %v3058
    %v3060 = vcombine.low %v3035, %v3043
    %v3061 = vcombine.high %v3035, %v3043
    %v3063 = vunpack.c.l.s4 1934713408
    %v3064 = vunpack.c.0.s8 %v3063
    %v3065 = vlaneseq
    %v3066 = vshrl.u32 %v3065, 7
    %v3067 = vsub.s32 %v3064, %v3066
    %v3068 = vrot.slane %v3060, %v3067
    %v3070 = vunpack.c.l.s4 1934713408
    %v3071 = vunpack.c.0.s8 %v3070
    %v3072 = vlaneseq
    %v3073 = vshrl.u32 %v3072, 7
    %v3074 = vsub.s32 %v3071, %v3073
    %v3075 = vrot.slane %v3061, %v3074
    %v3076 = vcombine.low %v3051, %v3059
    %v3077 = vcombine.high %v3051, %v3059
    %v3079 = vunpack.c.l.s4 1934713408
    %v3080 = vunpack.c.0.s8 %v3079
    %v3081 = vlaneseq
    %v3082 = vshrl.u32 %v3081, 7
    %v3083 = vsub.s32 %v3080, %v3082
    %v3084 = vrot.slane %v3076, %v3083
    %v3086 = vunpack.c.l.s4 1934713408
    %v3087 = vunpack.c.0.s8 %v3086
    %v3088 = vlaneseq
    %v3089 = vshrl.u32 %v3088, 7
    %v3090 = vsub.s32 %v3087, %v3089
    %v3091 = vrot.slane %v3077, %v3090
    %v3092 = vcombine.low %v3068, %v3084
    %v3093 = vcombine.high %v3068, %v3084
    %v3094 = vcombine.low %v3075, %v3091
    %v3095 = vcombine.high %v3075, %v3091
    %v3096 = vcombine.low %v3000, %v3007
    %v3098 = vunpack.c.l.s4 1983009808
    %v3099 = vunpack.c.0.s8 %v3098
    %v3100 = vlaneseq
    %v3101 = vshrl.u32 %v3100, 7
    %v3102 = vsub.s32 %v3099, %v3101
    %v3103 = vrot.slane %v3096, %v3102
    %v3104 = vcombine.low %v3024, %v3025
    %v3106 = vunpack.c.l.s4 1983009808
    %v3107 = vunpack.c.0.s8 %v3106
    %v3108 = vlaneseq
    %v3109 = vshrl.u32 %v3108, 7
    %v3110 = vsub.s32 %v3107, %v3109
    %v3111 = vrot.slane %v3104, %v3110
    %v3112 = vcombine.low %v3016, %v3023
    %v3114 = vunpack.c.l.s4 1983009808
    %v3115 = vunpack.c.0.s8 %v3114
    %v3116 = vlaneseq
    %v3117 = vshrl.u32 %v3116, 7
    %v3118 = vsub.s32 %v3115, %v3117
    %v3119 = vrot.slane %v3112, %v3118
    %v3120 = vcombine.low %v3026, %v3027
    %v3122 = vunpack.c.l.s4 1983009808
    %v3123 = vunpack.c.0.s8 %v3122
    %v3124 = vlaneseq
    %v3125 = vshrl.u32 %v3124, 7
    %v3126 = vsub.s32 %v3123, %v3125
    %v3127 = vrot.slane %v3120, %v3126
    %v3128 = vcombine.low %v3103, %v3111
    %v3129 = vcombine.high %v3103, %v3111
    %v3131 = vunpack.c.l.s4 1934713408
    %v3132 = vunpack.c.0.s8 %v3131
    %v3133 = vlaneseq
    %v3134 = vshrl.u32 %v3133, 7
    %v3135 = vsub.s32 %v3132, %v3134
    %v3136 = vrot.slane %v3128, %v3135
    %v3138 = vunpack.c.l.s4 1934713408
    %v3139 = vunpack.c.0.s8 %v3138
    %v3140 = vlaneseq
    %v3141 = vshrl.u32 %v3140, 7
    %v3142 = vsub.s32 %v3139, %v3141
    %v3143 = vrot.slane %v3129, %v3142
    %v3144 = vcombine.low %v3119, %v3127
    %v3145 = vcombine.high %v3119, %v3127
    %v3147 = vunpack.c.l.s4 1934713408
    %v3148 = vunpack.c.0.s8 %v3147
    %v3149 = vlaneseq
    %v3150 = vshrl.u32 %v3149, 7
    %v3151 = vsub.s32 %v3148, %v3150
    %v3152 = vrot.slane %v3144, %v3151
    %v3154 = vunpack.c.l.s4 1934713408
    %v3155 = vunpack.c.0.s8 %v3154
    %v3156 = vlaneseq
    %v3157 = vshrl.u32 %v3156, 7
    %v3158 = vsub.s32 %v3155, %v3157
    %v3159 = vrot.slane %v3145, %v3158
    %v3160 = vcombine.low %v3136, %v3152
    %v3161 = vcombine.high %v3136, %v3152
    %v3162 = vcombine.low %v3143, %v3159
    %v3163 = vcombine.high %v3143, %v3159
    %v3165 = vlaneseq
    %v3166 = vshrl.u32 %v3165, 7
    %v3167 = vsub.s32 0, %v3166
    %v3168 = vrot.slane %v2801, %v3167
    %v3174 = vunpack.c.l.b16 %v2791
    %v3175 = vunpack.c.l.b16 %v2792
    %v3176 = vunpack.c.l.b16 %v2793
    %v3177 = vunpack.c.l.b16 %v2794
    %v3178 = vpack.c.b16 %v3175, %v3174
    %v3179 = vpack.c.b16 %v3177, %v3176
    %3182 = vmatprep.subr.bf16.mxu0 0
    %3183 = vmatpush1.bf16.msra.mxu0 %v3178
    %3184 = vmatprep.subr.bf16.mxu0 0
    %3185 = vmatpush1.bf16.msra.mxu0 %v3179
    %3186 = vmatprep.subr.bf16.mxu0 0
    %3187 = vmatpush1.bf16.msra.mxu0 0
    %3188 = vmatprep.subr.bf16.mxu0 0
    %3189 = vmatpush1.bf16.msra.mxu0 0
    %3190 = vmatprep.subr.bf16.mxu0 0
    %3191 = vmatpush1.bf16.msra.mxu0 0
    %3192 = vmatprep.subr.bf16.mxu0 0
    %3193 = vmatpush1.bf16.msra.mxu0 0
    %3194 = vmatprep.subr.bf16.mxu0 0
    %3195 = vmatpush1.bf16.msra.mxu0 0
    %3196 = vmatprep.subr.bf16.mxu0 0
    %3197 = vmatpush1.bf16.msra.mxu0 0
    %3198 = vmatprep.subr.bf16.mxu0 0
    %3199 = vmatpush1.bf16.msra.mxu0 0
    %3200 = vmatprep.subr.bf16.mxu0 0
    %3201 = vmatpush1.bf16.msra.mxu0 0
    %3202 = vmatprep.subr.bf16.mxu0 0
    %3203 = vmatpush1.bf16.msra.mxu0 0
    %3204 = vmatprep.subr.bf16.mxu0 0
    %3205 = vmatpush1.bf16.msra.mxu0 0
    %3206 = vmatprep.subr.bf16.mxu0 0
    %3207 = vmatpush1.bf16.msra.mxu0 0
    %3208 = vmatprep.subr.bf16.mxu0 0
    %3209 = vmatpush1.bf16.msra.mxu0 0
    %3210 = vmatprep.subr.bf16.mxu0 0
    %3211 = vmatpush1.bf16.msra.mxu0 0
    %3212 = vmatprep.subr.bf16.mxu0 0
    %3213 = vmatpush1.bf16.msra.mxu0 0
    %3214 = vmatprep.mubr.bf16.mxu0 0
    %3215 = vmatmul.mubr.bf16.gmra.mrb[0].mxu0 %v2829
    %v3216 = vpop.f32.mrb[0].mxu0
    %v3217 = vadd.f32 %v3168, %v3216
    %v3218 = vpop.f32.mrb[0].mxu0
    %v3219 = vpop.f32.mrb[0].mxu0
    %v3220 = vadd.f32 %v3168, %v3219
    %v3221 = vpop.f32.mrb[0].mxu0
    %3222 = vdwg.mxu0
    %3225 = vrot.lane.b32.xlu0 %v3217, 120
    %v3226 = vpop.permute.xlu0 %3225
    %3227 = vrot.lane.b32.xlu0 %v3220, 120
    %v3228 = vpop.permute.xlu0 %3227
    %3231 = vrot.lane.b32.xlu0 %v3217, 112
    %v3232 = vpop.permute.xlu0 %3231
    %3233 = vrot.lane.b32.xlu0 %v3220, 112
    %v3234 = vpop.permute.xlu0 %3233
    %3237 = vrot.lane.b32.xlu0 %v3217, 104
    %v3238 = vpop.permute.xlu0 %3237
    %3239 = vrot.lane.b32.xlu0 %v3220, 104
    %v3240 = vpop.permute.xlu0 %3239
    %v3243 = vcombine.low %v3217, %v3232
    %v3244 = vcombine.high %v3217, %v3232
    %v3246 = vunpack.c.l.s4 1983009808
    %v3247 = vunpack.c.0.s8 %v3246
    %v3248 = vlaneseq
    %v3249 = vshrl.u32 %v3248, 7
    %v3250 = vsub.s32 %v3247, %v3249
    %v3251 = vrot.slane %v3243, %v3250
    %v3253 = vunpack.c.l.s4 1983009808
    %v3254 = vunpack.c.0.s8 %v3253
    %v3255 = vlaneseq
    %v3256 = vshrl.u32 %v3255, 7
    %v3257 = vsub.s32 %v3254, %v3256
    %v3258 = vrot.slane %v3244, %v3257
    %v3259 = vcombine.low %v3226, %v3238
    %v3260 = vcombine.high %v3226, %v3238
    %v3262 = vunpack.c.l.s4 1983009808
    %v3263 = vunpack.c.0.s8 %v3262
    %v3264 = vlaneseq
    %v3265 = vshrl.u32 %v3264, 7
    %v3266 = vsub.s32 %v3263, %v3265
    %v3267 = vrot.slane %v3259, %v3266
    %v3269 = vunpack.c.l.s4 1983009808
    %v3270 = vunpack.c.0.s8 %v3269
    %v3271 = vlaneseq
    %v3272 = vshrl.u32 %v3271, 7
    %v3273 = vsub.s32 %v3270, %v3272
    %v3274 = vrot.slane %v3260, %v3273
    %v3275 = vcombine.low %v3251, %v3267
    %v3276 = vcombine.high %v3251, %v3267
    %v3278 = vunpack.c.l.s4 1934713408
    %v3279 = vunpack.c.0.s8 %v3278
    %v3280 = vlaneseq
    %v3281 = vshrl.u32 %v3280, 7
    %v3282 = vsub.s32 %v3279, %v3281
    %v3283 = vrot.slane %v3275, %v3282
    %v3285 = vunpack.c.l.s4 1934713408
    %v3286 = vunpack.c.0.s8 %v3285
    %v3287 = vlaneseq
    %v3288 = vshrl.u32 %v3287, 7
    %v3289 = vsub.s32 %v3286, %v3288
    %v3290 = vrot.slane %v3276, %v3289
    %v3291 = vcombine.low %v3258, %v3274
    %v3292 = vcombine.high %v3258, %v3274
    %v3294 = vunpack.c.l.s4 1934713408
    %v3295 = vunpack.c.0.s8 %v3294
    %v3296 = vlaneseq
    %v3297 = vshrl.u32 %v3296, 7
    %v3298 = vsub.s32 %v3295, %v3297
    %v3299 = vrot.slane %v3291, %v3298
    %v3301 = vunpack.c.l.s4 1934713408
    %v3302 = vunpack.c.0.s8 %v3301
    %v3303 = vlaneseq
    %v3304 = vshrl.u32 %v3303, 7
    %v3305 = vsub.s32 %v3302, %v3304
    %v3306 = vrot.slane %v3292, %v3305
    %v3307 = vcombine.high %v3283, 0.0
    %v3308 = vcombine.high %v3290, 0.0
    %v3309 = vcombine.high %v3299, 0.0
    %v3310 = vcombine.high %v3306, 0.0
    %v3311 = vcombine.low %v3220, %v3234
    %v3312 = vcombine.high %v3220, %v3234
    %v3314 = vunpack.c.l.s4 1983009808
    %v3315 = vunpack.c.0.s8 %v3314
    %v3316 = vlaneseq
    %v3317 = vshrl.u32 %v3316, 7
    %v3318 = vsub.s32 %v3315, %v3317
    %v3319 = vrot.slane %v3311, %v3318
    %v3321 = vunpack.c.l.s4 1983009808
    %v3322 = vunpack.c.0.s8 %v3321
    %v3323 = vlaneseq
    %v3324 = vshrl.u32 %v3323, 7
    %v3325 = vsub.s32 %v3322, %v3324
    %v3326 = vrot.slane %v3312, %v3325
    %v3327 = vcombine.low %v3228, %v3240
    %v3328 = vcombine.high %v3228, %v3240
    %v3330 = vunpack.c.l.s4 1983009808
    %v3331 = vunpack.c.0.s8 %v3330
    %v3332 = vlaneseq
    %v3333 = vshrl.u32 %v3332, 7
    %v3334 = vsub.s32 %v3331, %v3333
    %v3335 = vrot.slane %v3327, %v3334
    %v3337 = vunpack.c.l.s4 1983009808
    %v3338 = vunpack.c.0.s8 %v3337
    %v3339 = vlaneseq
    %v3340 = vshrl.u32 %v3339, 7
    %v3341 = vsub.s32 %v3338, %v3340
    %v3342 = vrot.slane %v3328, %v3341
    %v3343 = vcombine.low %v3319, %v3335
    %v3344 = vcombine.high %v3319, %v3335
    %v3346 = vunpack.c.l.s4 1934713408
    %v3347 = vunpack.c.0.s8 %v3346
    %v3348 = vlaneseq
    %v3349 = vshrl.u32 %v3348, 7
    %v3350 = vsub.s32 %v3347, %v3349
    %v3351 = vrot.slane %v3343, %v3350
    %v3353 = vunpack.c.l.s4 1934713408
    %v3354 = vunpack.c.0.s8 %v3353
    %v3355 = vlaneseq
    %v3356 = vshrl.u32 %v3355, 7
    %v3357 = vsub.s32 %v3354, %v3356
    %v3358 = vrot.slane %v3344, %v3357
    %v3359 = vcombine.low %v3326, %v3342
    %v3360 = vcombine.high %v3326, %v3342
    %v3362 = vunpack.c.l.s4 1934713408
    %v3363 = vunpack.c.0.s8 %v3362
    %v3364 = vlaneseq
    %v3365 = vshrl.u32 %v3364, 7
    %v3366 = vsub.s32 %v3363, %v3365
    %v3367 = vrot.slane %v3359, %v3366
    %v3369 = vunpack.c.l.s4 1934713408
    %v3370 = vunpack.c.0.s8 %v3369
    %v3371 = vlaneseq
    %v3372 = vshrl.u32 %v3371, 7
    %v3373 = vsub.s32 %v3370, %v3372
    %v3374 = vrot.slane %v3360, %v3373
    %v3375 = vcombine.high %v3351, 0.0
    %v3376 = vcombine.high %v3358, 0.0
    %v3377 = vcombine.high %v3367, 0.0
    %v3378 = vcombine.high %v3374, 0.0
    %v3379 = vcombine.low %v3283, %v3290
    %v3381 = vunpack.c.l.s4 1983009808
    %v3382 = vunpack.c.0.s8 %v3381
    %v3383 = vlaneseq
    %v3384 = vshrl.u32 %v3383, 7
    %v3385 = vsub.s32 %v3382, %v3384
    %v3386 = vrot.slane %v3379, %v3385
    %v3387 = vcombine.low %v3307, %v3308
    %v3389 = vunpack.c.l.s4 1983009808
    %v3390 = vunpack.c.0.s8 %v3389
    %v3391 = vlaneseq
    %v3392 = vshrl.u32 %v3391, 7
    %v3393 = vsub.s32 %v3390, %v3392
    %v3394 = vrot.slane %v3387, %v3393
    %v3395 = vcombine.low %v3299, %v3306
    %v3397 = vunpack.c.l.s4 1983009808
    %v3398 = vunpack.c.0.s8 %v3397
    %v3399 = vlaneseq
    %v3400 = vshrl.u32 %v3399, 7
    %v3401 = vsub.s32 %v3398, %v3400
    %v3402 = vrot.slane %v3395, %v3401
    %v3403 = vcombine.low %v3309, %v3310
    %v3405 = vunpack.c.l.s4 1983009808
    %v3406 = vunpack.c.0.s8 %v3405
    %v3407 = vlaneseq
    %v3408 = vshrl.u32 %v3407, 7
    %v3409 = vsub.s32 %v3406, %v3408
    %v3410 = vrot.slane %v3403, %v3409
    %v3411 = vcombine.low %v3386, %v3394
    %v3412 = vcombine.high %v3386, %v3394
    %v3414 = vunpack.c.l.s4 1934713408
    %v3415 = vunpack.c.0.s8 %v3414
    %v3416 = vlaneseq
    %v3417 = vshrl.u32 %v3416, 7
    %v3418 = vsub.s32 %v3415, %v3417
    %v3419 = vrot.slane %v3411, %v3418
    %v3421 = vunpack.c.l.s4 1934713408
    %v3422 = vunpack.c.0.s8 %v3421
    %v3423 = vlaneseq
    %v3424 = vshrl.u32 %v3423, 7
    %v3425 = vsub.s32 %v3422, %v3424
    %v3426 = vrot.slane %v3412, %v3425
    %v3427 = vcombine.low %v3402, %v3410
    %v3428 = vcombine.high %v3402, %v3410
    %v3430 = vunpack.c.l.s4 1934713408
    %v3431 = vunpack.c.0.s8 %v3430
    %v3432 = vlaneseq
    %v3433 = vshrl.u32 %v3432, 7
    %v3434 = vsub.s32 %v3431, %v3433
    %v3435 = vrot.slane %v3427, %v3434
    %v3437 = vunpack.c.l.s4 1934713408
    %v3438 = vunpack.c.0.s8 %v3437
    %v3439 = vlaneseq
    %v3440 = vshrl.u32 %v3439, 7
    %v3441 = vsub.s32 %v3438, %v3440
    %v3442 = vrot.slane %v3428, %v3441
    %v3443 = vcombine.low %v3419, %v3435
    %v3444 = vcombine.high %v3419, %v3435
    %v3445 = vcombine.low %v3426, %v3442
    %v3446 = vcombine.high %v3426, %v3442
    %v3447 = vcombine.low %v3351, %v3358
    %v3449 = vunpack.c.l.s4 1983009808
    %v3450 = vunpack.c.0.s8 %v3449
    %v3451 = vlaneseq
    %v3452 = vshrl.u32 %v3451, 7
    %v3453 = vsub.s32 %v3450, %v3452
    %v3454 = vrot.slane %v3447, %v3453
    %v3455 = vcombine.low %v3375, %v3376
    %v3457 = vunpack.c.l.s4 1983009808
    %v3458 = vunpack.c.0.s8 %v3457
    %v3459 = vlaneseq
    %v3460 = vshrl.u32 %v3459, 7
    %v3461 = vsub.s32 %v3458, %v3460
    %v3462 = vrot.slane %v3455, %v3461
    %v3463 = vcombine.low %v3367, %v3374
    %v3465 = vunpack.c.l.s4 1983009808
    %v3466 = vunpack.c.0.s8 %v3465
    %v3467 = vlaneseq
    %v3468 = vshrl.u32 %v3467, 7
    %v3469 = vsub.s32 %v3466, %v3468
    %v3470 = vrot.slane %v3463, %v3469
    %v3471 = vcombine.low %v3377, %v3378
    %v3473 = vunpack.c.l.s4 1983009808
    %v3474 = vunpack.c.0.s8 %v3473
    %v3475 = vlaneseq
    %v3476 = vshrl.u32 %v3475, 7
    %v3477 = vsub.s32 %v3474, %v3476
    %v3478 = vrot.slane %v3471, %v3477
    %v3479 = vcombine.low %v3454, %v3462
    %v3480 = vcombine.high %v3454, %v3462
    %v3482 = vunpack.c.l.s4 1934713408
    %v3483 = vunpack.c.0.s8 %v3482
    %v3484 = vlaneseq
    %v3485 = vshrl.u32 %v3484, 7
    %v3486 = vsub.s32 %v3483, %v3485
    %v3487 = vrot.slane %v3479, %v3486
    %v3489 = vunpack.c.l.s4 1934713408
    %v3490 = vunpack.c.0.s8 %v3489
    %v3491 = vlaneseq
    %v3492 = vshrl.u32 %v3491, 7
    %v3493 = vsub.s32 %v3490, %v3492
    %v3494 = vrot.slane %v3480, %v3493
    %v3495 = vcombine.low %v3470, %v3478
    %v3496 = vcombine.high %v3470, %v3478
    %v3498 = vunpack.c.l.s4 1934713408
    %v3499 = vunpack.c.0.s8 %v3498
    %v3500 = vlaneseq
    %v3501 = vshrl.u32 %v3500, 7
    %v3502 = vsub.s32 %v3499, %v3501
    %v3503 = vrot.slane %v3495, %v3502
    %v3505 = vunpack.c.l.s4 1934713408
    %v3506 = vunpack.c.0.s8 %v3505
    %v3507 = vlaneseq
    %v3508 = vshrl.u32 %v3507, 7
    %v3509 = vsub.s32 %v3506, %v3508
    %v3510 = vrot.slane %v3496, %v3509
    %v3511 = vcombine.low %v3487, %v3503
    %v3512 = vcombine.high %v3487, %v3503
    %v3513 = vcombine.low %v3494, %v3510
    %v3514 = vcombine.high %v3494, %v3510
    %v3516 = vlaneseq
    %v3517 = vshrl.u32 %v3516, 7
    %v3518 = vsub.s32 0, %v3517
    %v3519 = vrot.slane %v2802, %v3518
    %v3525 = vunpack.c.l.b16 %v2795
    %v3526 = vunpack.c.l.b16 %v2796
    %v3527 = vunpack.c.l.b16 %v2797
    %v3528 = vunpack.c.l.b16 %v2798
    %v3529 = vpack.c.b16 %v3526, %v3525
    %v3530 = vpack.c.b16 %v3528, %v3527
    %3533 = vmatprep.subr.bf16.mxu0 0
    %3534 = vmatpush1.bf16.msra.mxu0 %v3529
    %3535 = vmatprep.subr.bf16.mxu0 0
    %3536 = vmatpush1.bf16.msra.mxu0 %v3530
    %3537 = vmatprep.subr.bf16.mxu0 0
    %3538 = vmatpush1.bf16.msra.mxu0 0
    %3539 = vmatprep.subr.bf16.mxu0 0
    %3540 = vmatpush1.bf16.msra.mxu0 0
    %3541 = vmatprep.subr.bf16.mxu0 0
    %3542 = vmatpush1.bf16.msra.mxu0 0
    %3543 = vmatprep.subr.bf16.mxu0 0
    %3544 = vmatpush1.bf16.msra.mxu0 0
    %3545 = vmatprep.subr.bf16.mxu0 0
    %3546 = vmatpush1.bf16.msra.mxu0 0
    %3547 = vmatprep.subr.bf16.mxu0 0
    %3548 = vmatpush1.bf16.msra.mxu0 0
    %3549 = vmatprep.subr.bf16.mxu0 0
    %3550 = vmatpush1.bf16.msra.mxu0 0
    %3551 = vmatprep.subr.bf16.mxu0 0
    %3552 = vmatpush1.bf16.msra.mxu0 0
    %3553 = vmatprep.subr.bf16.mxu0 0
    %3554 = vmatpush1.bf16.msra.mxu0 0
    %3555 = vmatprep.subr.bf16.mxu0 0
    %3556 = vmatpush1.bf16.msra.mxu0 0
    %3557 = vmatprep.subr.bf16.mxu0 0
    %3558 = vmatpush1.bf16.msra.mxu0 0
    %3559 = vmatprep.subr.bf16.mxu0 0
    %3560 = vmatpush1.bf16.msra.mxu0 0
    %3561 = vmatprep.subr.bf16.mxu0 0
    %3562 = vmatpush1.bf16.msra.mxu0 0
    %3563 = vmatprep.subr.bf16.mxu0 0
    %3564 = vmatpush1.bf16.msra.mxu0 0
    %3565 = vmatprep.mubr.bf16.mxu0 0
    %3566 = vmatmul.mubr.bf16.gmra.mrb[0].mxu0 %v2829
    %v3567 = vpop.f32.mrb[0].mxu0
    %v3568 = vadd.f32 %v3519, %v3567
    %v3569 = vpop.f32.mrb[0].mxu0
    %v3570 = vpop.f32.mrb[0].mxu0
    %v3571 = vadd.f32 %v3519, %v3570
    %v3572 = vpop.f32.mrb[0].mxu0
    %3573 = vdwg.mxu0
    %3576 = vrot.lane.b32.xlu0 %v3568, 120
    %v3577 = vpop.permute.xlu0 %3576
    %3578 = vrot.lane.b32.xlu0 %v3571, 120
    %v3579 = vpop.permute.xlu0 %3578
    %3582 = vrot.lane.b32.xlu0 %v3568, 112
    %v3583 = vpop.permute.xlu0 %3582
    %3584 = vrot.lane.b32.xlu0 %v3571, 112
    %v3585 = vpop.permute.xlu0 %3584
    %3588 = vrot.lane.b32.xlu0 %v3568, 104
    %v3589 = vpop.permute.xlu0 %3588
    %3590 = vrot.lane.b32.xlu0 %v3571, 104
    %v3591 = vpop.permute.xlu0 %3590
    %v3594 = vcombine.low %v3568, %v3583
    %v3595 = vcombine.high %v3568, %v3583
    %v3597 = vunpack.c.l.s4 1983009808
    %v3598 = vunpack.c.0.s8 %v3597
    %v3599 = vlaneseq
    %v3600 = vshrl.u32 %v3599, 7
    %v3601 = vsub.s32 %v3598, %v3600
    %v3602 = vrot.slane %v3594, %v3601
    %v3604 = vunpack.c.l.s4 1983009808
    %v3605 = vunpack.c.0.s8 %v3604
    %v3606 = vlaneseq
    %v3607 = vshrl.u32 %v3606, 7
    %v3608 = vsub.s32 %v3605, %v3607
    %v3609 = vrot.slane %v3595, %v3608
    %v3610 = vcombine.low %v3577, %v3589
    %v3611 = vcombine.high %v3577, %v3589
    %v3613 = vunpack.c.l.s4 1983009808
    %v3614 = vunpack.c.0.s8 %v3613
    %v3615 = vlaneseq
    %v3616 = vshrl.u32 %v3615, 7
    %v3617 = vsub.s32 %v3614, %v3616
    %v3618 = vrot.slane %v3610, %v3617
    %v3620 = vunpack.c.l.s4 1983009808
    %v3621 = vunpack.c.0.s8 %v3620
    %v3622 = vlaneseq
    %v3623 = vshrl.u32 %v3622, 7
    %v3624 = vsub.s32 %v3621, %v3623
    %v3625 = vrot.slane %v3611, %v3624
    %v3626 = vcombine.low %v3602, %v3618
    %v3627 = vcombine.high %v3602, %v3618
    %v3629 = vunpack.c.l.s4 1934713408
    %v3630 = vunpack.c.0.s8 %v3629
    %v3631 = vlaneseq
    %v3632 = vshrl.u32 %v3631, 7
    %v3633 = vsub.s32 %v3630, %v3632
    %v3634 = vrot.slane %v3626, %v3633
    %v3636 = vunpack.c.l.s4 1934713408
    %v3637 = vunpack.c.0.s8 %v3636
    %v3638 = vlaneseq
    %v3639 = vshrl.u32 %v3638, 7
    %v3640 = vsub.s32 %v3637, %v3639
    %v3641 = vrot.slane %v3627, %v3640
    %v3642 = vcombine.low %v3609, %v3625
    %v3643 = vcombine.high %v3609, %v3625
    %v3645 = vunpack.c.l.s4 1934713408
    %v3646 = vunpack.c.0.s8 %v3645
    %v3647 = vlaneseq
    %v3648 = vshrl.u32 %v3647, 7
    %v3649 = vsub.s32 %v3646, %v3648
    %v3650 = vrot.slane %v3642, %v3649
    %v3652 = vunpack.c.l.s4 1934713408
    %v3653 = vunpack.c.0.s8 %v3652
    %v3654 = vlaneseq
    %v3655 = vshrl.u32 %v3654, 7
    %v3656 = vsub.s32 %v3653, %v3655
    %v3657 = vrot.slane %v3643, %v3656
    %v3658 = vcombine.high %v3634, 0.0
    %v3659 = vcombine.high %v3641, 0.0
    %v3660 = vcombine.high %v3650, 0.0
    %v3661 = vcombine.high %v3657, 0.0
    %v3662 = vcombine.low %v3571, %v3585
    %v3663 = vcombine.high %v3571, %v3585
    %v3665 = vunpack.c.l.s4 1983009808
    %v3666 = vunpack.c.0.s8 %v3665
    %v3667 = vlaneseq
    %v3668 = vshrl.u32 %v3667, 7
    %v3669 = vsub.s32 %v3666, %v3668
    %v3670 = vrot.slane %v3662, %v3669
    %v3672 = vunpack.c.l.s4 1983009808
    %v3673 = vunpack.c.0.s8 %v3672
    %v3674 = vlaneseq
    %v3675 = vshrl.u32 %v3674, 7
    %v3676 = vsub.s32 %v3673, %v3675
    %v3677 = vrot.slane %v3663, %v3676
    %v3678 = vcombine.low %v3579, %v3591
    %v3679 = vcombine.high %v3579, %v3591
    %v3681 = vunpack.c.l.s4 1983009808
    %v3682 = vunpack.c.0.s8 %v3681
    %v3683 = vlaneseq
    %v3684 = vshrl.u32 %v3683, 7
    %v3685 = vsub.s32 %v3682, %v3684
    %v3686 = vrot.slane %v3678, %v3685
    %v3688 = vunpack.c.l.s4 1983009808
    %v3689 = vunpack.c.0.s8 %v3688
    %v3690 = vlaneseq
    %v3691 = vshrl.u32 %v3690, 7
    %v3692 = vsub.s32 %v3689, %v3691
    %v3693 = vrot.slane %v3679, %v3692
    %v3694 = vcombine.low %v3670, %v3686
    %v3695 = vcombine.high %v3670, %v3686
    %v3697 = vunpack.c.l.s4 1934713408
    %v3698 = vunpack.c.0.s8 %v3697
    %v3699 = vlaneseq
    %v3700 = vshrl.u32 %v3699, 7
    %v3701 = vsub.s32 %v3698, %v3700
    %v3702 = vrot.slane %v3694, %v3701
    %v3704 = vunpack.c.l.s4 1934713408
    %v3705 = vunpack.c.0.s8 %v3704
    %v3706 = vlaneseq
    %v3707 = vshrl.u32 %v3706, 7
    %v3708 = vsub.s32 %v3705, %v3707
    %v3709 = vrot.slane %v3695, %v3708
    %v3710 = vcombine.low %v3677, %v3693
    %v3711 = vcombine.high %v3677, %v3693
    %v3713 = vunpack.c.l.s4 1934713408
    %v3714 = vunpack.c.0.s8 %v3713
    %v3715 = vlaneseq
    %v3716 = vshrl.u32 %v3715, 7
    %v3717 = vsub.s32 %v3714, %v3716
    %v3718 = vrot.slane %v3710, %v3717
    %v3720 = vunpack.c.l.s4 1934713408
    %v3721 = vunpack.c.0.s8 %v3720
    %v3722 = vlaneseq
    %v3723 = vshrl.u32 %v3722, 7
    %v3724 = vsub.s32 %v3721, %v3723
    %v3725 = vrot.slane %v3711, %v3724
    %v3726 = vcombine.high %v3702, 0.0
    %v3727 = vcombine.high %v3709, 0.0
    %v3728 = vcombine.high %v3718, 0.0
    %v3729 = vcombine.high %v3725, 0.0
    %v3730 = vcombine.low %v3634, %v3641
    %v3732 = vunpack.c.l.s4 1983009808
    %v3733 = vunpack.c.0.s8 %v3732
    %v3734 = vlaneseq
    %v3735 = vshrl.u32 %v3734, 7
    %v3736 = vsub.s32 %v3733, %v3735
    %v3737 = vrot.slane %v3730, %v3736
    %v3738 = vcombine.low %v3658, %v3659
    %v3740 = vunpack.c.l.s4 1983009808
    %v3741 = vunpack.c.0.s8 %v3740
    %v3742 = vlaneseq
    %v3743 = vshrl.u32 %v3742, 7
    %v3744 = vsub.s32 %v3741, %v3743
    %v3745 = vrot.slane %v3738, %v3744
    %v3746 = vcombine.low %v3650, %v3657
    %v3748 = vunpack.c.l.s4 1983009808
    %v3749 = vunpack.c.0.s8 %v3748
    %v3750 = vlaneseq
    %v3751 = vshrl.u32 %v3750, 7
    %v3752 = vsub.s32 %v3749, %v3751
    %v3753 = vrot.slane %v3746, %v3752
    %v3754 = vcombine.low %v3660, %v3661
    %v3756 = vunpack.c.l.s4 1983009808
    %v3757 = vunpack.c.0.s8 %v3756
    %v3758 = vlaneseq
    %v3759 = vshrl.u32 %v3758, 7
    %v3760 = vsub.s32 %v3757, %v3759
    %v3761 = vrot.slane %v3754, %v3760
    %v3762 = vcombine.low %v3737, %v3745
    %v3763 = vcombine.high %v3737, %v3745
    %v3765 = vunpack.c.l.s4 1934713408
    %v3766 = vunpack.c.0.s8 %v3765
    %v3767 = vlaneseq
    %v3768 = vshrl.u32 %v3767, 7
    %v3769 = vsub.s32 %v3766, %v3768
    %v3770 = vrot.slane %v3762, %v3769
    %v3772 = vunpack.c.l.s4 1934713408
    %v3773 = vunpack.c.0.s8 %v3772
    %v3774 = vlaneseq
    %v3775 = vshrl.u32 %v3774, 7
    %v3776 = vsub.s32 %v3773, %v3775
    %v3777 = vrot.slane %v3763, %v3776
    %v3778 = vcombine.low %v3753, %v3761
    %v3779 = vcombine.high %v3753, %v3761
    %v3781 = vunpack.c.l.s4 1934713408
    %v3782 = vunpack.c.0.s8 %v3781
    %v3783 = vlaneseq
    %v3784 = vshrl.u32 %v3783, 7
    %v3785 = vsub.s32 %v3782, %v3784
    %v3786 = vrot.slane %v3778, %v3785
    %v3788 = vunpack.c.l.s4 1934713408
    %v3789 = vunpack.c.0.s8 %v3788
    %v3790 = vlaneseq
    %v3791 = vshrl.u32 %v3790, 7
    %v3792 = vsub.s32 %v3789, %v3791
    %v3793 = vrot.slane %v3779, %v3792
    %v3794 = vcombine.low %v3770, %v3786
    %v3795 = vcombine.high %v3770, %v3786
    %v3796 = vcombine.low %v3777, %v3793
    %v3797 = vcombine.high %v3777, %v3793
    %v3798 = vcombine.low %v3702, %v3709
    %v3800 = vunpack.c.l.s4 1983009808
    %v3801 = vunpack.c.0.s8 %v3800
    %v3802 = vlaneseq
    %v3803 = vshrl.u32 %v3802, 7
    %v3804 = vsub.s32 %v3801, %v3803
    %v3805 = vrot.slane %v3798, %v3804
    %v3806 = vcombine.low %v3726, %v3727
    %v3808 = vunpack.c.l.s4 1983009808
    %v3809 = vunpack.c.0.s8 %v3808
    %v3810 = vlaneseq
    %v3811 = vshrl.u32 %v3810, 7
    %v3812 = vsub.s32 %v3809, %v3811
    %v3813 = vrot.slane %v3806, %v3812
    %v3814 = vcombine.low %v3718, %v3725
    %v3816 = vunpack.c.l.s4 1983009808
    %v3817 = vunpack.c.0.s8 %v3816
    %v3818 = vlaneseq
    %v3819 = vshrl.u32 %v3818, 7
    %v3820 = vsub.s32 %v3817, %v3819
    %v3821 = vrot.slane %v3814, %v3820
    %v3822 = vcombine.low %v3728, %v3729
    %v3824 = vunpack.c.l.s4 1983009808
    %v3825 = vunpack.c.0.s8 %v3824
    %v3826 = vlaneseq
    %v3827 = vshrl.u32 %v3826, 7
    %v3828 = vsub.s32 %v3825, %v3827
    %v3829 = vrot.slane %v3822, %v3828
    %v3830 = vcombine.low %v3805, %v3813
    %v3831 = vcombine.high %v3805, %v3813
    %v3833 = vunpack.c.l.s4 1934713408
    %v3834 = vunpack.c.0.s8 %v3833
    %v3835 = vlaneseq
    %v3836 = vshrl.u32 %v3835, 7
    %v3837 = vsub.s32 %v3834, %v3836
    %v3838 = vrot.slane %v3830, %v3837
    %v3840 = vunpack.c.l.s4 1934713408
    %v3841 = vunpack.c.0.s8 %v3840
    %v3842 = vlaneseq
    %v3843 = vshrl.u32 %v3842, 7
    %v3844 = vsub.s32 %v3841, %v3843
    %v3845 = vrot.slane %v3831, %v3844
    %v3846 = vcombine.low %v3821, %v3829
    %v3847 = vcombine.high %v3821, %v3829
    %v3849 = vunpack.c.l.s4 1934713408
    %v3850 = vunpack.c.0.s8 %v3849
    %v3851 = vlaneseq
    %v3852 = vshrl.u32 %v3851, 7
    %v3853 = vsub.s32 %v3850, %v3852
    %v3854 = vrot.slane %v3846, %v3853
    %v3856 = vunpack.c.l.s4 1934713408
    %v3857 = vunpack.c.0.s8 %v3856
    %v3858 = vlaneseq
    %v3859 = vshrl.u32 %v3858, 7
    %v3860 = vsub.s32 %v3857, %v3859
    %v3861 = vrot.slane %v3847, %v3860
    %v3862 = vcombine.low %v3838, %v3854
    %v3863 = vcombine.high %v3838, %v3854
    %v3864 = vcombine.low %v3845, %v3861
    %v3865 = vcombine.high %v3845, %v3861
    %v3866 = vpack.c.bf16 %v3092, %v3092
    %v3867 = vpack.c.bf16 %v3093, %v3093
    %v3868 = vpack.c.bf16 %v3094, %v3094
    %v3869 = vpack.c.bf16 %v3095, %v3095
    %v3870 = vpack.c.bf16 %v3160, %v3160
    %v3871 = vpack.c.bf16 %v3161, %v3161
    %v3872 = vpack.c.bf16 %v3162, %v3162
    %v3873 = vpack.c.bf16 %v3163, %v3163
    %v3874 = vpack.c.bf16 %v3443, %v3443
    %v3875 = vpack.c.bf16 %v3444, %v3444
    %v3876 = vpack.c.bf16 %v3445, %v3445
    %v3877 = vpack.c.bf16 %v3446, %v3446
    %v3878 = vpack.c.bf16 %v3511, %v3511
    %v3879 = vpack.c.bf16 %v3512, %v3512
    %v3880 = vpack.c.bf16 %v3513, %v3513
    %v3881 = vpack.c.bf16 %v3514, %v3514
    %v3883 = vsel %vm1315, %v3866, 0
    %v3886 = vsel %vm1315, %v3874, 0
    %3888 = vmatprep.subr.bf16.mxu0 0
    %3889 = vmatpush1.bf16.xpose.msra.mxu0 %v3886
    %3890 = vmatprep.subr.bf16.mxu0 0
    %3891 = vmatpush1.bf16.xpose.msra.mxu0 0
    %3892 = vmatprep.subr.bf16.mxu0 0
    %3893 = vmatpush1.bf16.xpose.msra.mxu0 0
    %3894 = vmatprep.subr.bf16.mxu0 0
    %3895 = vmatpush1.bf16.xpose.msra.mxu0 0
    %3896 = vmatprep.subr.bf16.mxu0 0
    %3897 = vmatpush1.bf16.xpose.msra.mxu0 0
    %3898 = vmatprep.subr.bf16.mxu0 0
    %3899 = vmatpush1.bf16.xpose.msra.mxu0 0
    %3900 = vmatprep.subr.bf16.mxu0 0
    %3901 = vmatpush1.bf16.xpose.msra.mxu0 0
    %3902 = vmatprep.subr.bf16.mxu0 0
    %3903 = vmatpush1.bf16.xpose.msra.mxu0 0
    %3904 = vmatprep.subr.bf16.mxu0 0
    %3905 = vmatpush1.bf16.xpose.msra.mxu0 0
    %3906 = vmatprep.subr.bf16.mxu0 0
    %3907 = vmatpush1.bf16.xpose.msra.mxu0 0
    %3908 = vmatprep.subr.bf16.mxu0 0
    %3909 = vmatpush1.bf16.xpose.msra.mxu0 0
    %3910 = vmatprep.subr.bf16.mxu0 0
    %3911 = vmatpush1.bf16.xpose.msra.mxu0 0
    %3912 = vmatprep.subr.bf16.mxu0 0
    %3913 = vmatpush1.bf16.xpose.msra.mxu0 0
    %3914 = vmatprep.subr.bf16.mxu0 0
    %3915 = vmatpush1.bf16.xpose.msra.mxu0 0
    %3916 = vmatprep.subr.bf16.mxu0 0
    %3917 = vmatpush1.bf16.xpose.msra.mxu0 0
    %3918 = vmatprep.subr.bf16.mxu0 0
    %3919 = vmatpush1.bf16.xpose.msra.mxu0 0
    %3920 = vmatprep.mubr.bf16.mxu0 0
    %3921 = vmatmul.mubr.bf16.gmra.mrb[0].mxu0 %v3883
    %v3922 = vpop.f32.mrb[0].mxu0
    %v3923 = vadd.f32 %v214, %v3922
    %v3924 = vpop.f32.mrb[0].mxu0
    %v3925 = vpop.f32.mrb[0].mxu0
    %v3926 = vpop.f32.mrb[0].mxu0
    %3927 = vdwg.mxu0
    %v3929 = vsel %vm1315, %v3867, 0
    %v3932 = vsel %vm1315, %v3875, 0
    %3934 = vmatprep.subr.bf16.mxu0 0
    %3935 = vmatpush1.bf16.xpose.msra.mxu0 %v3932
    %3936 = vmatprep.subr.bf16.mxu0 0
    %3937 = vmatpush1.bf16.xpose.msra.mxu0 0
    %3938 = vmatprep.subr.bf16.mxu0 0
    %3939 = vmatpush1.bf16.xpose.msra.mxu0 0
    %3940 = vmatprep.subr.bf16.mxu0 0
    %3941 = vmatpush1.bf16.xpose.msra.mxu0 0
    %3942 = vmatprep.subr.bf16.mxu0 0
    %3943 = vmatpush1.bf16.xpose.msra.mxu0 0
    %3944 = vmatprep.subr.bf16.mxu0 0
    %3945 = vmatpush1.bf16.xpose.msra.mxu0 0
    %3946 = vmatprep.subr.bf16.mxu0 0
    %3947 = vmatpush1.bf16.xpose.msra.mxu0 0
    %3948 = vmatprep.subr.bf16.mxu0 0
    %3949 = vmatpush1.bf16.xpose.msra.mxu0 0
    %3950 = vmatprep.subr.bf16.mxu0 0
    %3951 = vmatpush1.bf16.xpose.msra.mxu0 0
    %3952 = vmatprep.subr.bf16.mxu0 0
    %3953 = vmatpush1.bf16.xpose.msra.mxu0 0
    %3954 = vmatprep.subr.bf16.mxu0 0
    %3955 = vmatpush1.bf16.xpose.msra.mxu0 0
    %3956 = vmatprep.subr.bf16.mxu0 0
    %3957 = vmatpush1.bf16.xpose.msra.mxu0 0
    %3958 = vmatprep.subr.bf16.mxu0 0
    %3959 = vmatpush1.bf16.xpose.msra.mxu0 0
    %3960 = vmatprep.subr.bf16.mxu0 0
    %3961 = vmatpush1.bf16.xpose.msra.mxu0 0
    %3962 = vmatprep.subr.bf16.mxu0 0
    %3963 = vmatpush1.bf16.xpose.msra.mxu0 0
    %3964 = vmatprep.subr.bf16.mxu0 0
    %3965 = vmatpush1.bf16.xpose.msra.mxu0 0
    %3966 = vmatprep.mubr.bf16.mxu0 0
    %3967 = vmatmul.mubr.bf16.gmra.mrb[0].mxu0 %v3929
    %v3968 = vpop.f32.mrb[0].mxu0
    %v3969 = vadd.f32 %v214, %v3968
    %v3970 = vpop.f32.mrb[0].mxu0
    %v3971 = vpop.f32.mrb[0].mxu0
    %v3972 = vpop.f32.mrb[0].mxu0
    %3973 = vdwg.mxu0
    %v3975 = vsel %vm1315, %v3868, 0
    %v3978 = vsel %vm1315, %v3876, 0
    %3980 = vmatprep.subr.bf16.mxu0 0
    %3981 = vmatpush1.bf16.xpose.msra.mxu0 %v3978
    %3982 = vmatprep.subr.bf16.mxu0 0
    %3983 = vmatpush1.bf16.xpose.msra.mxu0 0
    %3984 = vmatprep.subr.bf16.mxu0 0
    %3985 = vmatpush1.bf16.xpose.msra.mxu0 0
    %3986 = vmatprep.subr.bf16.mxu0 0
    %3987 = vmatpush1.bf16.xpose.msra.mxu0 0
    %3988 = vmatprep.subr.bf16.mxu0 0
    %3989 = vmatpush1.bf16.xpose.msra.mxu0 0
    %3990 = vmatprep.subr.bf16.mxu0 0
    %3991 = vmatpush1.bf16.xpose.msra.mxu0 0
    %3992 = vmatprep.subr.bf16.mxu0 0
    %3993 = vmatpush1.bf16.xpose.msra.mxu0 0
    %3994 = vmatprep.subr.bf16.mxu0 0
    %3995 = vmatpush1.bf16.xpose.msra.mxu0 0
    %3996 = vmatprep.subr.bf16.mxu0 0
    %3997 = vmatpush1.bf16.xpose.msra.mxu0 0
    %3998 = vmatprep.subr.bf16.mxu0 0
    %3999 = vmatpush1.bf16.xpose.msra.mxu0 0
    %4000 = vmatprep.subr.bf16.mxu0 0
    %4001 = vmatpush1.bf16.xpose.msra.mxu0 0
    %4002 = vmatprep.subr.bf16.mxu0 0
    %4003 = vmatpush1.bf16.xpose.msra.mxu0 0
    %4004 = vmatprep.subr.bf16.mxu0 0
    %4005 = vmatpush1.bf16.xpose.msra.mxu0 0
    %4006 = vmatprep.subr.bf16.mxu0 0
    %4007 = vmatpush1.bf16.xpose.msra.mxu0 0
    %4008 = vmatprep.subr.bf16.mxu0 0
    %4009 = vmatpush1.bf16.xpose.msra.mxu0 0
    %4010 = vmatprep.subr.bf16.mxu0 0
    %4011 = vmatpush1.bf16.xpose.msra.mxu0 0
    %4012 = vmatprep.mubr.bf16.mxu0 0
    %4013 = vmatmul.mubr.bf16.gmra.mrb[0].mxu0 %v3975
    %v4014 = vpop.f32.mrb[0].mxu0
    %v4015 = vadd.f32 %v214, %v4014
    %v4016 = vpop.f32.mrb[0].mxu0
    %v4017 = vpop.f32.mrb[0].mxu0
    %v4018 = vpop.f32.mrb[0].mxu0
    %4019 = vdwg.mxu0
    %v4021 = vsel %vm1315, %v3869, 0
    %v4024 = vsel %vm1315, %v3877, 0
    %4026 = vmatprep.subr.bf16.mxu0 0
    %4027 = vmatpush1.bf16.xpose.msra.mxu0 %v4024
    %4028 = vmatprep.subr.bf16.mxu0 0
    %4029 = vmatpush1.bf16.xpose.msra.mxu0 0
    %4030 = vmatprep.subr.bf16.mxu0 0
    %4031 = vmatpush1.bf16.xpose.msra.mxu0 0
    %4032 = vmatprep.subr.bf16.mxu0 0
    %4033 = vmatpush1.bf16.xpose.msra.mxu0 0
    %4034 = vmatprep.subr.bf16.mxu0 0
    %4035 = vmatpush1.bf16.xpose.msra.mxu0 0
    %4036 = vmatprep.subr.bf16.mxu0 0
    %4037 = vmatpush1.bf16.xpose.msra.mxu0 0
    %4038 = vmatprep.subr.bf16.mxu0 0
    %4039 = vmatpush1.bf16.xpose.msra.mxu0 0
    %4040 = vmatprep.subr.bf16.mxu0 0
    %4041 = vmatpush1.bf16.xpose.msra.mxu0 0
    %4042 = vmatprep.subr.bf16.mxu0 0
    %4043 = vmatpush1.bf16.xpose.msra.mxu0 0
    %4044 = vmatprep.subr.bf16.mxu0 0
    %4045 = vmatpush1.bf16.xpose.msra.mxu0 0
    %4046 = vmatprep.subr.bf16.mxu0 0
    %4047 = vmatpush1.bf16.xpose.msra.mxu0 0
    %4048 = vmatprep.subr.bf16.mxu0 0
    %4049 = vmatpush1.bf16.xpose.msra.mxu0 0
    %4050 = vmatprep.subr.bf16.mxu0 0
    %4051 = vmatpush1.bf16.xpose.msra.mxu0 0
    %4052 = vmatprep.subr.bf16.mxu0 0
    %4053 = vmatpush1.bf16.xpose.msra.mxu0 0
    %4054 = vmatprep.subr.bf16.mxu0 0
    %4055 = vmatpush1.bf16.xpose.msra.mxu0 0
    %4056 = vmatprep.subr.bf16.mxu0 0
    %4057 = vmatpush1.bf16.xpose.msra.mxu0 0
    %4058 = vmatprep.mubr.bf16.mxu0 0
    %4059 = vmatmul.mubr.bf16.gmra.mrb[0].mxu0 %v4021
    %v4060 = vpop.f32.mrb[0].mxu0
    %v4061 = vadd.f32 %v214, %v4060
    %v4062 = vpop.f32.mrb[0].mxu0
    %v4063 = vpop.f32.mrb[0].mxu0
    %v4064 = vpop.f32.mrb[0].mxu0
    %4065 = vdwg.mxu0
    %v4067 = vsel %vm1315, %v3870, 0
    %v4070 = vsel %vm1315, %v3878, 0
    %4072 = vmatprep.subr.bf16.mxu0 0
    %4073 = vmatpush1.bf16.xpose.msra.mxu0 %v4070
    %4074 = vmatprep.subr.bf16.mxu0 0
    %4075 = vmatpush1.bf16.xpose.msra.mxu0 0
    %4076 = vmatprep.subr.bf16.mxu0 0
    %4077 = vmatpush1.bf16.xpose.msra.mxu0 0
    %4078 = vmatprep.subr.bf16.mxu0 0
    %4079 = vmatpush1.bf16.xpose.msra.mxu0 0
    %4080 = vmatprep.subr.bf16.mxu0 0
    %4081 = vmatpush1.bf16.xpose.msra.mxu0 0
    %4082 = vmatprep.subr.bf16.mxu0 0
    %4083 = vmatpush1.bf16.xpose.msra.mxu0 0
    %4084 = vmatprep.subr.bf16.mxu0 0
    %4085 = vmatpush1.bf16.xpose.msra.mxu0 0
    %4086 = vmatprep.subr.bf16.mxu0 0
    %4087 = vmatpush1.bf16.xpose.msra.mxu0 0
    %4088 = vmatprep.subr.bf16.mxu0 0
    %4089 = vmatpush1.bf16.xpose.msra.mxu0 0
    %4090 = vmatprep.subr.bf16.mxu0 0
    %4091 = vmatpush1.bf16.xpose.msra.mxu0 0
    %4092 = vmatprep.subr.bf16.mxu0 0
    %4093 = vmatpush1.bf16.xpose.msra.mxu0 0
    %4094 = vmatprep.subr.bf16.mxu0 0
    %4095 = vmatpush1.bf16.xpose.msra.mxu0 0
    %4096 = vmatprep.subr.bf16.mxu0 0
    %4097 = vmatpush1.bf16.xpose.msra.mxu0 0
    %4098 = vmatprep.subr.bf16.mxu0 0
    %4099 = vmatpush1.bf16.xpose.msra.mxu0 0
    %4100 = vmatprep.subr.bf16.mxu0 0
    %4101 = vmatpush1.bf16.xpose.msra.mxu0 0
    %4102 = vmatprep.subr.bf16.mxu0 0
    %4103 = vmatpush1.bf16.xpose.msra.mxu0 0
    %4104 = vmatprep.mubr.bf16.mxu0 0
    %4105 = vmatmul.mubr.bf16.gmra.mrb[0].mxu0 %v4067
    %v4106 = vpop.f32.mrb[0].mxu0
    %v4107 = vadd.f32 %v218, %v4106
    %v4108 = vpop.f32.mrb[0].mxu0
    %v4109 = vpop.f32.mrb[0].mxu0
    %v4110 = vpop.f32.mrb[0].mxu0
    %4111 = vdwg.mxu0
    %v4113 = vsel %vm1315, %v3871, 0
    %v4116 = vsel %vm1315, %v3879, 0
    %4118 = vmatprep.subr.bf16.mxu0 0
    %4119 = vmatpush1.bf16.xpose.msra.mxu0 %v4116
    %4120 = vmatprep.subr.bf16.mxu0 0
    %4121 = vmatpush1.bf16.xpose.msra.mxu0 0
    %4122 = vmatprep.subr.bf16.mxu0 0
    %4123 = vmatpush1.bf16.xpose.msra.mxu0 0
    %4124 = vmatprep.subr.bf16.mxu0 0
    %4125 = vmatpush1.bf16.xpose.msra.mxu0 0
    %4126 = vmatprep.subr.bf16.mxu0 0
    %4127 = vmatpush1.bf16.xpose.msra.mxu0 0
    %4128 = vmatprep.subr.bf16.mxu0 0
    %4129 = vmatpush1.bf16.xpose.msra.mxu0 0
    %4130 = vmatprep.subr.bf16.mxu0 0
    %4131 = vmatpush1.bf16.xpose.msra.mxu0 0
    %4132 = vmatprep.subr.bf16.mxu0 0
    %4133 = vmatpush1.bf16.xpose.msra.mxu0 0
    %4134 = vmatprep.subr.bf16.mxu0 0
    %4135 = vmatpush1.bf16.xpose.msra.mxu0 0
    %4136 = vmatprep.subr.bf16.mxu0 0
    %4137 = vmatpush1.bf16.xpose.msra.mxu0 0
    %4138 = vmatprep.subr.bf16.mxu0 0
    %4139 = vmatpush1.bf16.xpose.msra.mxu0 0
    %4140 = vmatprep.subr.bf16.mxu0 0
    %4141 = vmatpush1.bf16.xpose.msra.mxu0 0
    %4142 = vmatprep.subr.bf16.mxu0 0
    %4143 = vmatpush1.bf16.xpose.msra.mxu0 0
    %4144 = vmatprep.subr.bf16.mxu0 0
    %4145 = vmatpush1.bf16.xpose.msra.mxu0 0
    %4146 = vmatprep.subr.bf16.mxu0 0
    %4147 = vmatpush1.bf16.xpose.msra.mxu0 0
    %4148 = vmatprep.subr.bf16.mxu0 0
    %4149 = vmatpush1.bf16.xpose.msra.mxu0 0
    %4150 = vmatprep.mubr.bf16.mxu0 0
    %4151 = vmatmul.mubr.bf16.gmra.mrb[0].mxu0 %v4113
    %v4152 = vpop.f32.mrb[0].mxu0
    %v4153 = vadd.f32 %v218, %v4152
    %v4154 = vpop.f32.mrb[0].mxu0
    %v4155 = vpop.f32.mrb[0].mxu0
    %v4156 = vpop.f32.mrb[0].mxu0
    %4157 = vdwg.mxu0
    %v4159 = vsel %vm1315, %v3872, 0
    %v4162 = vsel %vm1315, %v3880, 0
    %4164 = vmatprep.subr.bf16.mxu0 0
    %4165 = vmatpush1.bf16.xpose.msra.mxu0 %v4162
    %4166 = vmatprep.subr.bf16.mxu0 0
    %4167 = vmatpush1.bf16.xpose.msra.mxu0 0
    %4168 = vmatprep.subr.bf16.mxu0 0
    %4169 = vmatpush1.bf16.xpose.msra.mxu0 0
    %4170 = vmatprep.subr.bf16.mxu0 0
    %4171 = vmatpush1.bf16.xpose.msra.mxu0 0
    %4172 = vmatprep.subr.bf16.mxu0 0
    %4173 = vmatpush1.bf16.xpose.msra.mxu0 0
    %4174 = vmatprep.subr.bf16.mxu0 0
    %4175 = vmatpush1.bf16.xpose.msra.mxu0 0
    %4176 = vmatprep.subr.bf16.mxu0 0
    %4177 = vmatpush1.bf16.xpose.msra.mxu0 0
    %4178 = vmatprep.subr.bf16.mxu0 0
    %4179 = vmatpush1.bf16.xpose.msra.mxu0 0
    %4180 = vmatprep.subr.bf16.mxu0 0
    %4181 = vmatpush1.bf16.xpose.msra.mxu0 0
    %4182 = vmatprep.subr.bf16.mxu0 0
    %4183 = vmatpush1.bf16.xpose.msra.mxu0 0
    %4184 = vmatprep.subr.bf16.mxu0 0
    %4185 = vmatpush1.bf16.xpose.msra.mxu0 0
    %4186 = vmatprep.subr.bf16.mxu0 0
    %4187 = vmatpush1.bf16.xpose.msra.mxu0 0
    %4188 = vmatprep.subr.bf16.mxu0 0
    %4189 = vmatpush1.bf16.xpose.msra.mxu0 0
    %4190 = vmatprep.subr.bf16.mxu0 0
    %4191 = vmatpush1.bf16.xpose.msra.mxu0 0
    %4192 = vmatprep.subr.bf16.mxu0 0
    %4193 = vmatpush1.bf16.xpose.msra.mxu0 0
    %4194 = vmatprep.subr.bf16.mxu0 0
    %4195 = vmatpush1.bf16.xpose.msra.mxu0 0
    %4196 = vmatprep.mubr.bf16.mxu0 0
    %4197 = vmatmul.mubr.bf16.gmra.mrb[0].mxu0 %v4159
    %v4198 = vpop.f32.mrb[0].mxu0
    %v4199 = vadd.f32 %v218, %v4198
    %v4200 = vpop.f32.mrb[0].mxu0
    %v4201 = vpop.f32.mrb[0].mxu0
    %v4202 = vpop.f32.mrb[0].mxu0
    %4203 = vdwg.mxu0
    %v4205 = vsel %vm1315, %v3873, 0
    %v4208 = vsel %vm1315, %v3881, 0
    %4210 = vmatprep.subr.bf16.mxu0 0
    %4211 = vmatpush1.bf16.xpose.msra.mxu0 %v4208
    %4212 = vmatprep.subr.bf16.mxu0 0
    %4213 = vmatpush1.bf16.xpose.msra.mxu0 0
    %4214 = vmatprep.subr.bf16.mxu0 0
    %4215 = vmatpush1.bf16.xpose.msra.mxu0 0
    %4216 = vmatprep.subr.bf16.mxu0 0
    %4217 = vmatpush1.bf16.xpose.msra.mxu0 0
    %4218 = vmatprep.subr.bf16.mxu0 0
    %4219 = vmatpush1.bf16.xpose.msra.mxu0 0
    %4220 = vmatprep.subr.bf16.mxu0 0
    %4221 = vmatpush1.bf16.xpose.msra.mxu0 0
    %4222 = vmatprep.subr.bf16.mxu0 0
    %4223 = vmatpush1.bf16.xpose.msra.mxu0 0
    %4224 = vmatprep.subr.bf16.mxu0 0
    %4225 = vmatpush1.bf16.xpose.msra.mxu0 0
    %4226 = vmatprep.subr.bf16.mxu0 0
    %4227 = vmatpush1.bf16.xpose.msra.mxu0 0
    %4228 = vmatprep.subr.bf16.mxu0 0
    %4229 = vmatpush1.bf16.xpose.msra.mxu0 0
    %4230 = vmatprep.subr.bf16.mxu0 0
    %4231 = vmatpush1.bf16.xpose.msra.mxu0 0
    %4232 = vmatprep.subr.bf16.mxu0 0
    %4233 = vmatpush1.bf16.xpose.msra.mxu0 0
    %4234 = vmatprep.subr.bf16.mxu0 0
    %4235 = vmatpush1.bf16.xpose.msra.mxu0 0
    %4236 = vmatprep.subr.bf16.mxu0 0
    %4237 = vmatpush1.bf16.xpose.msra.mxu0 0
    %4238 = vmatprep.subr.bf16.mxu0 0
    %4239 = vmatpush1.bf16.xpose.msra.mxu0 0
    %4240 = vmatprep.subr.bf16.mxu0 0
    %4241 = vmatpush1.bf16.xpose.msra.mxu0 0
    %4242 = vmatprep.mubr.bf16.mxu0 0
    %4243 = vmatmul.mubr.bf16.gmra.mrb[0].mxu0 %v4205
    %v4244 = vpop.f32.mrb[0].mxu0
    %v4245 = vadd.f32 %v218, %v4244
    %v4246 = vpop.f32.mrb[0].mxu0
    %v4247 = vpop.f32.mrb[0].mxu0
    %v4248 = vpop.f32.mrb[0].mxu0
    %4249 = vdwg.mxu0
    %v4250 = vsel %vm1315, %v3923, -inf
    %4251 = vmax.xlane.f32.xlu0 %v4250
    %v4252 = vpop.xlane.xlu0 %4251
    %v4253 = vsel %vm1315, %v3969, -inf
    %4254 = vmax.xlane.f32.xlu0 %v4253
    %v4255 = vpop.xlane.xlu0 %4254
    %v4256 = vsel %vm1315, %v4015, -inf
    %4257 = vmax.xlane.f32.xlu0 %v4256
    %v4258 = vpop.xlane.xlu0 %4257
    %v4259 = vsel %vm1315, %v4061, -inf
    %4260 = vmax.xlane.f32.xlu0 %v4259
    %v4261 = vpop.xlane.xlu0 %4260
    %v4262 = vsel %vm1315, %v4107, -inf
    %4263 = vmax.xlane.f32.xlu0 %v4262
    %v4264 = vpop.xlane.xlu0 %4263
    %v4265 = vsel %vm1315, %v4153, -inf
    %4266 = vmax.xlane.f32.xlu0 %v4265
    %v4267 = vpop.xlane.xlu0 %4266
    %v4268 = vsel %vm1315, %v4199, -inf
    %4269 = vmax.xlane.f32.xlu0 %v4268
    %v4270 = vpop.xlane.xlu0 %4269
    %v4271 = vsel %vm1315, %v4245, -inf
    %4272 = vmax.xlane.f32.xlu0 %v4271
    %v4273 = vpop.xlane.xlu0 %4272
    %v4274 = vsub.f32 %v3923, %v4252
    %v4275 = vsub.f32 %v3969, %v4255
    %v4276 = vsub.f32 %v4015, %v4258
    %v4277 = vsub.f32 %v4061, %v4261
    %v4278 = vsub.f32 %v4107, %v4264
    %v4279 = vsub.f32 %v4153, %v4267
    %v4280 = vsub.f32 %v4199, %v4270
    %v4281 = vsub.f32 %v4245, %v4273
    %v4282 = vmul.f32 %v4274, 1.442695
    %v4283 = vpow.pop %v4282
    %v4284 = vmul.f32 %v4275, 1.442695
    %v4285 = vpow.pop %v4284
    %v4286 = vmul.f32 %v4276, 1.442695
    %v4287 = vpow.pop %v4286
    %v4288 = vmul.f32 %v4277, 1.442695
    %v4289 = vpow.pop %v4288
    %v4290 = vmul.f32 %v4278, 1.442695
    %v4291 = vpow.pop %v4290
    %v4292 = vmul.f32 %v4279, 1.442695
    %v4293 = vpow.pop %v4292
    %v4294 = vmul.f32 %v4280, 1.442695
    %v4295 = vpow.pop %v4294
    %v4296 = vmul.f32 %v4281, 1.442695
    %v4297 = vpow.pop %v4296
    %v4298 = vsel %vm1315, %v4283, 0.0
    %4299 = vadd.xlane.f32.xlu0 %v4298
    %v4300 = vpop.xlane.xlu0 %4299
    %v4301 = vsel %vm1315, %v4285, 0.0
    %4302 = vadd.xlane.f32.xlu0 %v4301
    %v4303 = vpop.xlane.xlu0 %4302
    %v4304 = vsel %vm1315, %v4287, 0.0
    %4305 = vadd.xlane.f32.xlu0 %v4304
    %v4306 = vpop.xlane.xlu0 %4305
    %v4307 = vsel %vm1315, %v4289, 0.0
    %4308 = vadd.xlane.f32.xlu0 %v4307
    %v4309 = vpop.xlane.xlu0 %4308
    %v4310 = vsel %vm1315, %v4291, 0.0
    %4311 = vadd.xlane.f32.xlu0 %v4310
    %v4312 = vpop.xlane.xlu0 %4311
    %v4313 = vsel %vm1315, %v4293, 0.0
    %4314 = vadd.xlane.f32.xlu0 %v4313
    %v4315 = vpop.xlane.xlu0 %4314
    %v4316 = vsel %vm1315, %v4295, 0.0
    %4317 = vadd.xlane.f32.xlu0 %v4316
    %v4318 = vpop.xlane.xlu0 %4317
    %v4319 = vsel %vm1315, %v4297, 0.0
    %4320 = vadd.xlane.f32.xlu0 %v4319
    %v4321 = vpop.xlane.xlu0 %4320
    %v4322 = vrcp.pop %v4300
    %v4323 = vrcp.pop %v4303
    %v4324 = vrcp.pop %v4306
    %v4325 = vrcp.pop %v4309
    %v4326 = vrcp.pop %v4312
    %v4327 = vrcp.pop %v4315
    %v4328 = vrcp.pop %v4318
    %v4329 = vrcp.pop %v4321
    %v4330 = vmul.f32 %v4283, %v4322
    %v4331 = vmul.f32 %v4285, %v4323
    %v4332 = vmul.f32 %v4287, %v4324
    %v4333 = vmul.f32 %v4289, %v4325
    %v4334 = vmul.f32 %v4291, %v4326
    %v4335 = vmul.f32 %v4293, %v4327
    %v4336 = vmul.f32 %v4295, %v4328
    %v4337 = vmul.f32 %v4297, %v4329
    %v4338 = vpack.c.bf16 %v4330, %v4330
    %v4339 = vpack.c.bf16 %v4331, %v4331
    %v4340 = vpack.c.bf16 %v4332, %v4332
    %v4341 = vpack.c.bf16 %v4333, %v4333
    %v4342 = vpack.c.bf16 %v4334, %v4334
    %v4343 = vpack.c.bf16 %v4335, %v4335
    %v4344 = vpack.c.bf16 %v4336, %v4336
    %v4345 = vpack.c.bf16 %v4337, %v4337
    %v4346 = vpack.c.bf16 %v3794, %v3794
    %v4347 = vpack.c.bf16 %v3795, %v3795
    %v4348 = vpack.c.bf16 %v3796, %v3796
    %v4349 = vpack.c.bf16 %v3797, %v3797
    %v4350 = vpack.c.bf16 %v3862, %v3862
    %v4351 = vpack.c.bf16 %v3863, %v3863
    %v4352 = vpack.c.bf16 %v3864, %v3864
    %v4353 = vpack.c.bf16 %v3865, %v3865
    %v4355 = vsel %vm1315, %v4338, 0
    %v4358 = vsel %vm1791, %v4346, 0
    %4360 = vmatprep.subr.bf16.mxu0 0
    %4361 = vmatpush1.bf16.msra.mxu0 %v4358
    %4362 = vmatprep.subr.bf16.mxu0 0
    %4363 = vmatpush1.bf16.msra.mxu0 0
    %4364 = vmatprep.subr.bf16.mxu0 0
    %4365 = vmatpush1.bf16.msra.mxu0 0
    %4366 = vmatprep.subr.bf16.mxu0 0
    %4367 = vmatpush1.bf16.msra.mxu0 0
    %4368 = vmatprep.subr.bf16.mxu0 0
    %4369 = vmatpush1.bf16.msra.mxu0 0
    %4370 = vmatprep.subr.bf16.mxu0 0
    %4371 = vmatpush1.bf16.msra.mxu0 0
    %4372 = vmatprep.subr.bf16.mxu0 0
    %4373 = vmatpush1.bf16.msra.mxu0 0
    %4374 = vmatprep.subr.bf16.mxu0 0
    %4375 = vmatpush1.bf16.msra.mxu0 0
    %4376 = vmatprep.subr.bf16.mxu0 0
    %4377 = vmatpush1.bf16.msra.mxu0 0
    %4378 = vmatprep.subr.bf16.mxu0 0
    %4379 = vmatpush1.bf16.msra.mxu0 0
    %4380 = vmatprep.subr.bf16.mxu0 0
    %4381 = vmatpush1.bf16.msra.mxu0 0
    %4382 = vmatprep.subr.bf16.mxu0 0
    %4383 = vmatpush1.bf16.msra.mxu0 0
    %4384 = vmatprep.subr.bf16.mxu0 0
    %4385 = vmatpush1.bf16.msra.mxu0 0
    %4386 = vmatprep.subr.bf16.mxu0 0
    %4387 = vmatpush1.bf16.msra.mxu0 0
    %4388 = vmatprep.subr.bf16.mxu0 0
    %4389 = vmatpush1.bf16.msra.mxu0 0
    %4390 = vmatprep.subr.bf16.mxu0 0
    %4391 = vmatpush1.bf16.msra.mxu0 0
    %4392 = vmatprep.mubr.bf16.mxu0 0
    %4393 = vmatmul.mubr.bf16.gmra.mrb[0].mxu0 %v4355
    %v4394 = vpop.f32.mrb[0].mxu0
    %v4395 = vadd.f32 0.0, %v4394
    %v4396 = vpop.f32.mrb[0].mxu0
    %v4397 = vpop.f32.mrb[0].mxu0
    %v4398 = vpop.f32.mrb[0].mxu0
    %4399 = vdwg.mxu0
    %v4401 = vsel %vm1315, %v4339, 0
    %v4404 = vsel %vm1791, %v4347, 0
    %4406 = vmatprep.subr.bf16.mxu0 0
    %4407 = vmatpush1.bf16.msra.mxu0 %v4404
    %4408 = vmatprep.subr.bf16.mxu0 0
    %4409 = vmatpush1.bf16.msra.mxu0 0
    %4410 = vmatprep.subr.bf16.mxu0 0
    %4411 = vmatpush1.bf16.msra.mxu0 0
    %4412 = vmatprep.subr.bf16.mxu0 0
    %4413 = vmatpush1.bf16.msra.mxu0 0
    %4414 = vmatprep.subr.bf16.mxu0 0
    %4415 = vmatpush1.bf16.msra.mxu0 0
    %4416 = vmatprep.subr.bf16.mxu0 0
    %4417 = vmatpush1.bf16.msra.mxu0 0
    %4418 = vmatprep.subr.bf16.mxu0 0
    %4419 = vmatpush1.bf16.msra.mxu0 0
    %4420 = vmatprep.subr.bf16.mxu0 0
    %4421 = vmatpush1.bf16.msra.mxu0 0
    %4422 = vmatprep.subr.bf16.mxu0 0
    %4423 = vmatpush1.bf16.msra.mxu0 0
    %4424 = vmatprep.subr.bf16.mxu0 0
    %4425 = vmatpush1.bf16.msra.mxu0 0
    %4426 = vmatprep.subr.bf16.mxu0 0
    %4427 = vmatpush1.bf16.msra.mxu0 0
    %4428 = vmatprep.subr.bf16.mxu0 0
    %4429 = vmatpush1.bf16.msra.mxu0 0
    %4430 = vmatprep.subr.bf16.mxu0 0
    %4431 = vmatpush1.bf16.msra.mxu0 0
    %4432 = vmatprep.subr.bf16.mxu0 0
    %4433 = vmatpush1.bf16.msra.mxu0 0
    %4434 = vmatprep.subr.bf16.mxu0 0
    %4435 = vmatpush1.bf16.msra.mxu0 0
    %4436 = vmatprep.subr.bf16.mxu0 0
    %4437 = vmatpush1.bf16.msra.mxu0 0
    %4438 = vmatprep.mubr.bf16.mxu0 0
    %4439 = vmatmul.mubr.bf16.gmra.mrb[0].mxu0 %v4401
    %v4440 = vpop.f32.mrb[0].mxu0
    %v4441 = vadd.f32 0.0, %v4440
    %v4442 = vpop.f32.mrb[0].mxu0
    %v4443 = vpop.f32.mrb[0].mxu0
    %v4444 = vpop.f32.mrb[0].mxu0
    %4445 = vdwg.mxu0
    %v4447 = vsel %vm1315, %v4340, 0
    %v4450 = vsel %vm1791, %v4348, 0
    %4452 = vmatprep.subr.bf16.mxu0 0
    %4453 = vmatpush1.bf16.msra.mxu0 %v4450
    %4454 = vmatprep.subr.bf16.mxu0 0
    %4455 = vmatpush1.bf16.msra.mxu0 0
    %4456 = vmatprep.subr.bf16.mxu0 0
    %4457 = vmatpush1.bf16.msra.mxu0 0
    %4458 = vmatprep.subr.bf16.mxu0 0
    %4459 = vmatpush1.bf16.msra.mxu0 0
    %4460 = vmatprep.subr.bf16.mxu0 0
    %4461 = vmatpush1.bf16.msra.mxu0 0
    %4462 = vmatprep.subr.bf16.mxu0 0
    %4463 = vmatpush1.bf16.msra.mxu0 0
    %4464 = vmatprep.subr.bf16.mxu0 0
    %4465 = vmatpush1.bf16.msra.mxu0 0
    %4466 = vmatprep.subr.bf16.mxu0 0
    %4467 = vmatpush1.bf16.msra.mxu0 0
    %4468 = vmatprep.subr.bf16.mxu0 0
    %4469 = vmatpush1.bf16.msra.mxu0 0
    %4470 = vmatprep.subr.bf16.mxu0 0
    %4471 = vmatpush1.bf16.msra.mxu0 0
    %4472 = vmatprep.subr.bf16.mxu0 0
    %4473 = vmatpush1.bf16.msra.mxu0 0
    %4474 = vmatprep.subr.bf16.mxu0 0
    %4475 = vmatpush1.bf16.msra.mxu0 0
    %4476 = vmatprep.subr.bf16.mxu0 0
    %4477 = vmatpush1.bf16.msra.mxu0 0
    %4478 = vmatprep.subr.bf16.mxu0 0
    %4479 = vmatpush1.bf16.msra.mxu0 0
    %4480 = vmatprep.subr.bf16.mxu0 0
    %4481 = vmatpush1.bf16.msra.mxu0 0
    %4482 = vmatprep.subr.bf16.mxu0 0
    %4483 = vmatpush1.bf16.msra.mxu0 0
    %4484 = vmatprep.mubr.bf16.mxu0 0
    %4485 = vmatmul.mubr.bf16.gmra.mrb[0].mxu0 %v4447
    %v4486 = vpop.f32.mrb[0].mxu0
    %v4487 = vadd.f32 0.0, %v4486
    %v4488 = vpop.f32.mrb[0].mxu0
    %v4489 = vpop.f32.mrb[0].mxu0
    %v4490 = vpop.f32.mrb[0].mxu0
    %4491 = vdwg.mxu0
    %v4493 = vsel %vm1315, %v4341, 0
    %v4496 = vsel %vm1791, %v4349, 0
    %4498 = vmatprep.subr.bf16.mxu0 0
    %4499 = vmatpush1.bf16.msra.mxu0 %v4496
    %4500 = vmatprep.subr.bf16.mxu0 0
    %4501 = vmatpush1.bf16.msra.mxu0 0
    %4502 = vmatprep.subr.bf16.mxu0 0
    %4503 = vmatpush1.bf16.msra.mxu0 0
    %4504 = vmatprep.subr.bf16.mxu0 0
    %4505 = vmatpush1.bf16.msra.mxu0 0
    %4506 = vmatprep.subr.bf16.mxu0 0
    %4507 = vmatpush1.bf16.msra.mxu0 0
    %4508 = vmatprep.subr.bf16.mxu0 0
    %4509 = vmatpush1.bf16.msra.mxu0 0
    %4510 = vmatprep.subr.bf16.mxu0 0
    %4511 = vmatpush1.bf16.msra.mxu0 0
    %4512 = vmatprep.subr.bf16.mxu0 0
    %4513 = vmatpush1.bf16.msra.mxu0 0
    %4514 = vmatprep.subr.bf16.mxu0 0
    %4515 = vmatpush1.bf16.msra.mxu0 0
    %4516 = vmatprep.subr.bf16.mxu0 0
    %4517 = vmatpush1.bf16.msra.mxu0 0
    %4518 = vmatprep.subr.bf16.mxu0 0
    %4519 = vmatpush1.bf16.msra.mxu0 0
    %4520 = vmatprep.subr.bf16.mxu0 0
    %4521 = vmatpush1.bf16.msra.mxu0 0
    %4522 = vmatprep.subr.bf16.mxu0 0
    %4523 = vmatpush1.bf16.msra.mxu0 0
    %4524 = vmatprep.subr.bf16.mxu0 0
    %4525 = vmatpush1.bf16.msra.mxu0 0
    %4526 = vmatprep.subr.bf16.mxu0 0
    %4527 = vmatpush1.bf16.msra.mxu0 0
    %4528 = vmatprep.subr.bf16.mxu0 0
    %4529 = vmatpush1.bf16.msra.mxu0 0
    %4530 = vmatprep.mubr.bf16.mxu0 0
    %4531 = vmatmul.mubr.bf16.gmra.mrb[0].mxu0 %v4493
    %v4532 = vpop.f32.mrb[0].mxu0
    %v4533 = vadd.f32 0.0, %v4532
    %v4534 = vpop.f32.mrb[0].mxu0
    %v4535 = vpop.f32.mrb[0].mxu0
    %v4536 = vpop.f32.mrb[0].mxu0
    %4537 = vdwg.mxu0
    %v4539 = vsel %vm1315, %v4342, 0
    %v4542 = vsel %vm1791, %v4350, 0
    %4544 = vmatprep.subr.bf16.mxu0 0
    %4545 = vmatpush1.bf16.msra.mxu0 %v4542
    %4546 = vmatprep.subr.bf16.mxu0 0
    %4547 = vmatpush1.bf16.msra.mxu0 0
    %4548 = vmatprep.subr.bf16.mxu0 0
    %4549 = vmatpush1.bf16.msra.mxu0 0
    %4550 = vmatprep.subr.bf16.mxu0 0
    %4551 = vmatpush1.bf16.msra.mxu0 0
    %4552 = vmatprep.subr.bf16.mxu0 0
    %4553 = vmatpush1.bf16.msra.mxu0 0
    %4554 = vmatprep.subr.bf16.mxu0 0
    %4555 = vmatpush1.bf16.msra.mxu0 0
    %4556 = vmatprep.subr.bf16.mxu0 0
    %4557 = vmatpush1.bf16.msra.mxu0 0
    %4558 = vmatprep.subr.bf16.mxu0 0
    %4559 = vmatpush1.bf16.msra.mxu0 0
    %4560 = vmatprep.subr.bf16.mxu0 0
    %4561 = vmatpush1.bf16.msra.mxu0 0
    %4562 = vmatprep.subr.bf16.mxu0 0
    %4563 = vmatpush1.bf16.msra.mxu0 0
    %4564 = vmatprep.subr.bf16.mxu0 0
    %4565 = vmatpush1.bf16.msra.mxu0 0
    %4566 = vmatprep.subr.bf16.mxu0 0
    %4567 = vmatpush1.bf16.msra.mxu0 0
    %4568 = vmatprep.subr.bf16.mxu0 0
    %4569 = vmatpush1.bf16.msra.mxu0 0
    %4570 = vmatprep.subr.bf16.mxu0 0
    %4571 = vmatpush1.bf16.msra.mxu0 0
    %4572 = vmatprep.subr.bf16.mxu0 0
    %4573 = vmatpush1.bf16.msra.mxu0 0
    %4574 = vmatprep.subr.bf16.mxu0 0
    %4575 = vmatpush1.bf16.msra.mxu0 0
    %4576 = vmatprep.mubr.bf16.mxu0 0
    %4577 = vmatmul.mubr.bf16.gmra.mrb[0].mxu0 %v4539
    %v4578 = vpop.f32.mrb[0].mxu0
    %v4579 = vadd.f32 0.0, %v4578
    %v4580 = vpop.f32.mrb[0].mxu0
    %v4581 = vpop.f32.mrb[0].mxu0
    %v4582 = vpop.f32.mrb[0].mxu0
    %4583 = vdwg.mxu0
    %v4585 = vsel %vm1315, %v4343, 0
    %v4588 = vsel %vm1791, %v4351, 0
    %4590 = vmatprep.subr.bf16.mxu0 0
    %4591 = vmatpush1.bf16.msra.mxu0 %v4588
    %4592 = vmatprep.subr.bf16.mxu0 0
    %4593 = vmatpush1.bf16.msra.mxu0 0
    %4594 = vmatprep.subr.bf16.mxu0 0
    %4595 = vmatpush1.bf16.msra.mxu0 0
    %4596 = vmatprep.subr.bf16.mxu0 0
    %4597 = vmatpush1.bf16.msra.mxu0 0
    %4598 = vmatprep.subr.bf16.mxu0 0
    %4599 = vmatpush1.bf16.msra.mxu0 0
    %4600 = vmatprep.subr.bf16.mxu0 0
    %4601 = vmatpush1.bf16.msra.mxu0 0
    %4602 = vmatprep.subr.bf16.mxu0 0
    %4603 = vmatpush1.bf16.msra.mxu0 0
    %4604 = vmatprep.subr.bf16.mxu0 0
    %4605 = vmatpush1.bf16.msra.mxu0 0
    %4606 = vmatprep.subr.bf16.mxu0 0
    %4607 = vmatpush1.bf16.msra.mxu0 0
    %4608 = vmatprep.subr.bf16.mxu0 0
    %4609 = vmatpush1.bf16.msra.mxu0 0
    %4610 = vmatprep.subr.bf16.mxu0 0
    %4611 = vmatpush1.bf16.msra.mxu0 0
    %4612 = vmatprep.subr.bf16.mxu0 0
    %4613 = vmatpush1.bf16.msra.mxu0 0
    %4614 = vmatprep.subr.bf16.mxu0 0
    %4615 = vmatpush1.bf16.msra.mxu0 0
    %4616 = vmatprep.subr.bf16.mxu0 0
    %4617 = vmatpush1.bf16.msra.mxu0 0
    %4618 = vmatprep.subr.bf16.mxu0 0
    %4619 = vmatpush1.bf16.msra.mxu0 0
    %4620 = vmatprep.subr.bf16.mxu0 0
    %4621 = vmatpush1.bf16.msra.mxu0 0
    %4622 = vmatprep.mubr.bf16.mxu0 0
    %4623 = vmatmul.mubr.bf16.gmra.mrb[0].mxu0 %v4585
    %v4624 = vpop.f32.mrb[0].mxu0
    %v4625 = vadd.f32 0.0, %v4624
    %v4626 = vpop.f32.mrb[0].mxu0
    %v4627 = vpop.f32.mrb[0].mxu0
    %v4628 = vpop.f32.mrb[0].mxu0
    %4629 = vdwg.mxu0
    %v4631 = vsel %vm1315, %v4344, 0
    %v4634 = vsel %vm1791, %v4352, 0
    %4636 = vmatprep.subr.bf16.mxu0 0
    %4637 = vmatpush1.bf16.msra.mxu0 %v4634
    %4638 = vmatprep.subr.bf16.mxu0 0
    %4639 = vmatpush1.bf16.msra.mxu0 0
    %4640 = vmatprep.subr.bf16.mxu0 0
    %4641 = vmatpush1.bf16.msra.mxu0 0
    %4642 = vmatprep.subr.bf16.mxu0 0
    %4643 = vmatpush1.bf16.msra.mxu0 0
    %4644 = vmatprep.subr.bf16.mxu0 0
    %4645 = vmatpush1.bf16.msra.mxu0 0
    %4646 = vmatprep.subr.bf16.mxu0 0
    %4647 = vmatpush1.bf16.msra.mxu0 0
    %4648 = vmatprep.subr.bf16.mxu0 0
    %4649 = vmatpush1.bf16.msra.mxu0 0
    %4650 = vmatprep.subr.bf16.mxu0 0
    %4651 = vmatpush1.bf16.msra.mxu0 0
    %4652 = vmatprep.subr.bf16.mxu0 0
    %4653 = vmatpush1.bf16.msra.mxu0 0
    %4654 = vmatprep.subr.bf16.mxu0 0
    %4655 = vmatpush1.bf16.msra.mxu0 0
    %4656 = vmatprep.subr.bf16.mxu0 0
    %4657 = vmatpush1.bf16.msra.mxu0 0
    %4658 = vmatprep.subr.bf16.mxu0 0
    %4659 = vmatpush1.bf16.msra.mxu0 0
    %4660 = vmatprep.subr.bf16.mxu0 0
    %4661 = vmatpush1.bf16.msra.mxu0 0
    %4662 = vmatprep.subr.bf16.mxu0 0
    %4663 = vmatpush1.bf16.msra.mxu0 0
    %4664 = vmatprep.subr.bf16.mxu0 0
    %4665 = vmatpush1.bf16.msra.mxu0 0
    %4666 = vmatprep.subr.bf16.mxu0 0
    %4667 = vmatpush1.bf16.msra.mxu0 0
    %4668 = vmatprep.mubr.bf16.mxu0 0
    %4669 = vmatmul.mubr.bf16.gmra.mrb[0].mxu0 %v4631
    %v4670 = vpop.f32.mrb[0].mxu0
    %v4671 = vadd.f32 0.0, %v4670
    %v4672 = vpop.f32.mrb[0].mxu0
    %v4673 = vpop.f32.mrb[0].mxu0
    %v4674 = vpop.f32.mrb[0].mxu0
    %4675 = vdwg.mxu0
    %v4677 = vsel %vm1315, %v4345, 0
    %v4680 = vsel %vm1791, %v4353, 0
    %4682 = vmatprep.subr.bf16.mxu0 0
    %4683 = vmatpush1.bf16.msra.mxu0 %v4680
    %4684 = vmatprep.subr.bf16.mxu0 0
    %4685 = vmatpush1.bf16.msra.mxu0 0
    %4686 = vmatprep.subr.bf16.mxu0 0
    %4687 = vmatpush1.bf16.msra.mxu0 0
    %4688 = vmatprep.subr.bf16.mxu0 0
    %4689 = vmatpush1.bf16.msra.mxu0 0
    %4690 = vmatprep.subr.bf16.mxu0 0
    %4691 = vmatpush1.bf16.msra.mxu0 0
    %4692 = vmatprep.subr.bf16.mxu0 0
    %4693 = vmatpush1.bf16.msra.mxu0 0
    %4694 = vmatprep.subr.bf16.mxu0 0
    %4695 = vmatpush1.bf16.msra.mxu0 0
    %4696 = vmatprep.subr.bf16.mxu0 0
    %4697 = vmatpush1.bf16.msra.mxu0 0
    %4698 = vmatprep.subr.bf16.mxu0 0
    %4699 = vmatpush1.bf16.msra.mxu0 0
    %4700 = vmatprep.subr.bf16.mxu0 0
    %4701 = vmatpush1.bf16.msra.mxu0 0
    %4702 = vmatprep.subr.bf16.mxu0 0
    %4703 = vmatpush1.bf16.msra.mxu0 0
    %4704 = vmatprep.subr.bf16.mxu0 0
    %4705 = vmatpush1.bf16.msra.mxu0 0
    %4706 = vmatprep.subr.bf16.mxu0 0
    %4707 = vmatpush1.bf16.msra.mxu0 0
    %4708 = vmatprep.subr.bf16.mxu0 0
    %4709 = vmatpush1.bf16.msra.mxu0 0
    %4710 = vmatprep.subr.bf16.mxu0 0
    %4711 = vmatpush1.bf16.msra.mxu0 0
    %4712 = vmatprep.subr.bf16.mxu0 0
    %4713 = vmatpush1.bf16.msra.mxu0 0
    %4714 = vmatprep.mubr.bf16.mxu0 0
    %4715 = vmatmul.mubr.bf16.gmra.mrb[0].mxu0 %v4677
    %v4716 = vpop.f32.mrb[0].mxu0
    %v4717 = vadd.f32 0.0, %v4716
    %v4718 = vpop.f32.mrb[0].mxu0
    %v4719 = vpop.f32.mrb[0].mxu0
    %v4720 = vpop.f32.mrb[0].mxu0
    %4721 = vdwg.mxu0
    %v4722 = vcombine.low %v4395, %v4487
    %v4723 = vcombine.high %v4395, %v4487
    %v4725 = vunpack.c.l.s4 1983009808
    %v4726 = vunpack.c.0.s8 %v4725
    %v4727 = vlaneseq
    %v4728 = vshrl.u32 %v4727, 7
    %v4729 = vsub.s32 %v4726, %v4728
    %v4730 = vrot.slane %v4722, %v4729
    %v4732 = vunpack.c.l.s4 1983009808
    %v4733 = vunpack.c.0.s8 %v4732
    %v4734 = vlaneseq
    %v4735 = vshrl.u32 %v4734, 7
    %v4736 = vsub.s32 %v4733, %v4735
    %v4737 = vrot.slane %v4723, %v4736
    %v4738 = vcombine.low %v4441, %v4533
    %v4739 = vcombine.high %v4441, %v4533
    %v4741 = vunpack.c.l.s4 1983009808
    %v4742 = vunpack.c.0.s8 %v4741
    %v4743 = vlaneseq
    %v4744 = vshrl.u32 %v4743, 7
    %v4745 = vsub.s32 %v4742, %v4744
    %v4746 = vrot.slane %v4738, %v4745
    %v4748 = vunpack.c.l.s4 1983009808
    %v4749 = vunpack.c.0.s8 %v4748
    %v4750 = vlaneseq
    %v4751 = vshrl.u32 %v4750, 7
    %v4752 = vsub.s32 %v4749, %v4751
    %v4753 = vrot.slane %v4739, %v4752
    %v4754 = vcombine.low %v4730, %v4746
    %v4755 = vcombine.high %v4730, %v4746
    %v4757 = vunpack.c.l.s4 1934713408
    %v4758 = vunpack.c.0.s8 %v4757
    %v4759 = vlaneseq
    %v4760 = vshrl.u32 %v4759, 7
    %v4761 = vsub.s32 %v4758, %v4760
    %v4762 = vrot.slane %v4754, %v4761
    %v4764 = vunpack.c.l.s4 1934713408
    %v4765 = vunpack.c.0.s8 %v4764
    %v4766 = vlaneseq
    %v4767 = vshrl.u32 %v4766, 7
    %v4768 = vsub.s32 %v4765, %v4767
    %v4769 = vrot.slane %v4755, %v4768
    %v4770 = vcombine.low %v4737, %v4753
    %v4771 = vcombine.high %v4737, %v4753
    %v4773 = vunpack.c.l.s4 1934713408
    %v4774 = vunpack.c.0.s8 %v4773
    %v4775 = vlaneseq
    %v4776 = vshrl.u32 %v4775, 7
    %v4777 = vsub.s32 %v4774, %v4776
    %v4778 = vrot.slane %v4770, %v4777
    %v4780 = vunpack.c.l.s4 1934713408
    %v4781 = vunpack.c.0.s8 %v4780
    %v4782 = vlaneseq
    %v4783 = vshrl.u32 %v4782, 7
    %v4784 = vsub.s32 %v4781, %v4783
    %v4785 = vrot.slane %v4771, %v4784
    %v4786 = vcombine.high %v4762, 0.0
    %v4787 = vcombine.high %v4769, 0.0
    %v4788 = vcombine.high %v4778, 0.0
    %v4789 = vcombine.high %v4785, 0.0
    %v4790 = vcombine.low %v4579, %v4671
    %v4791 = vcombine.high %v4579, %v4671
    %v4793 = vunpack.c.l.s4 1983009808
    %v4794 = vunpack.c.0.s8 %v4793
    %v4795 = vlaneseq
    %v4796 = vshrl.u32 %v4795, 7
    %v4797 = vsub.s32 %v4794, %v4796
    %v4798 = vrot.slane %v4790, %v4797
    %v4800 = vunpack.c.l.s4 1983009808
    %v4801 = vunpack.c.0.s8 %v4800
    %v4802 = vlaneseq
    %v4803 = vshrl.u32 %v4802, 7
    %v4804 = vsub.s32 %v4801, %v4803
    %v4805 = vrot.slane %v4791, %v4804
    %v4806 = vcombine.low %v4625, %v4717
    %v4807 = vcombine.high %v4625, %v4717
    %v4809 = vunpack.c.l.s4 1983009808
    %v4810 = vunpack.c.0.s8 %v4809
    %v4811 = vlaneseq
    %v4812 = vshrl.u32 %v4811, 7
    %v4813 = vsub.s32 %v4810, %v4812
    %v4814 = vrot.slane %v4806, %v4813
    %v4816 = vunpack.c.l.s4 1983009808
    %v4817 = vunpack.c.0.s8 %v4816
    %v4818 = vlaneseq
    %v4819 = vshrl.u32 %v4818, 7
    %v4820 = vsub.s32 %v4817, %v4819
    %v4821 = vrot.slane %v4807, %v4820
    %v4822 = vcombine.low %v4798, %v4814
    %v4823 = vcombine.high %v4798, %v4814
    %v4825 = vunpack.c.l.s4 1934713408
    %v4826 = vunpack.c.0.s8 %v4825
    %v4827 = vlaneseq
    %v4828 = vshrl.u32 %v4827, 7
    %v4829 = vsub.s32 %v4826, %v4828
    %v4830 = vrot.slane %v4822, %v4829
    %v4832 = vunpack.c.l.s4 1934713408
    %v4833 = vunpack.c.0.s8 %v4832
    %v4834 = vlaneseq
    %v4835 = vshrl.u32 %v4834, 7
    %v4836 = vsub.s32 %v4833, %v4835
    %v4837 = vrot.slane %v4823, %v4836
    %v4838 = vcombine.low %v4805, %v4821
    %v4839 = vcombine.high %v4805, %v4821
    %v4841 = vunpack.c.l.s4 1934713408
    %v4842 = vunpack.c.0.s8 %v4841
    %v4843 = vlaneseq
    %v4844 = vshrl.u32 %v4843, 7
    %v4845 = vsub.s32 %v4842, %v4844
    %v4846 = vrot.slane %v4838, %v4845
    %v4848 = vunpack.c.l.s4 1934713408
    %v4849 = vunpack.c.0.s8 %v4848
    %v4850 = vlaneseq
    %v4851 = vshrl.u32 %v4850, 7
    %v4852 = vsub.s32 %v4849, %v4851
    %v4853 = vrot.slane %v4839, %v4852
    %v4854 = vcombine.high %v4830, 0.0
    %v4855 = vcombine.high %v4837, 0.0
    %v4856 = vcombine.high %v4846, 0.0
    %v4857 = vcombine.high %v4853, 0.0
    %v4858 = vcombine.low %v4762, %v4769
    %v4860 = vunpack.c.l.s4 1983009808
    %v4861 = vunpack.c.0.s8 %v4860
    %v4862 = vlaneseq
    %v4863 = vshrl.u32 %v4862, 7
    %v4864 = vsub.s32 %v4861, %v4863
    %v4865 = vrot.slane %v4858, %v4864
    %v4866 = vcombine.low %v4786, %v4787
    %v4868 = vunpack.c.l.s4 1983009808
    %v4869 = vunpack.c.0.s8 %v4868
    %v4870 = vlaneseq
    %v4871 = vshrl.u32 %v4870, 7
    %v4872 = vsub.s32 %v4869, %v4871
    %v4873 = vrot.slane %v4866, %v4872
    %v4874 = vcombine.low %v4778, %v4785
    %v4876 = vunpack.c.l.s4 1983009808
    %v4877 = vunpack.c.0.s8 %v4876
    %v4878 = vlaneseq
    %v4879 = vshrl.u32 %v4878, 7
    %v4880 = vsub.s32 %v4877, %v4879
    %v4881 = vrot.slane %v4874, %v4880
    %v4882 = vcombine.low %v4788, %v4789
    %v4884 = vunpack.c.l.s4 1983009808
    %v4885 = vunpack.c.0.s8 %v4884
    %v4886 = vlaneseq
    %v4887 = vshrl.u32 %v4886, 7
    %v4888 = vsub.s32 %v4885, %v4887
    %v4889 = vrot.slane %v4882, %v4888
    %v4890 = vcombine.low %v4865, %v4873
    %v4891 = vcombine.high %v4865, %v4873
    %v4893 = vunpack.c.l.s4 1934713408
    %v4894 = vunpack.c.0.s8 %v4893
    %v4895 = vlaneseq
    %v4896 = vshrl.u32 %v4895, 7
    %v4897 = vsub.s32 %v4894, %v4896
    %v4898 = vrot.slane %v4890, %v4897
    %v4900 = vunpack.c.l.s4 1934713408
    %v4901 = vunpack.c.0.s8 %v4900
    %v4902 = vlaneseq
    %v4903 = vshrl.u32 %v4902, 7
    %v4904 = vsub.s32 %v4901, %v4903
    %v4905 = vrot.slane %v4891, %v4904
    %v4906 = vcombine.low %v4881, %v4889
    %v4907 = vcombine.high %v4881, %v4889
    %v4909 = vunpack.c.l.s4 1934713408
    %v4910 = vunpack.c.0.s8 %v4909
    %v4911 = vlaneseq
    %v4912 = vshrl.u32 %v4911, 7
    %v4913 = vsub.s32 %v4910, %v4912
    %v4914 = vrot.slane %v4906, %v4913
    %v4916 = vunpack.c.l.s4 1934713408
    %v4917 = vunpack.c.0.s8 %v4916
    %v4918 = vlaneseq
    %v4919 = vshrl.u32 %v4918, 7
    %v4920 = vsub.s32 %v4917, %v4919
    %v4921 = vrot.slane %v4907, %v4920
    %v4922 = vcombine.low %v4898, %v4914
    %v4923 = vcombine.high %v4898, %v4914
    %v4924 = vcombine.low %v4905, %v4921
    %v4925 = vcombine.high %v4905, %v4921
    %v4926 = vcombine.low %v4830, %v4837
    %v4928 = vunpack.c.l.s4 1983009808
    %v4929 = vunpack.c.0.s8 %v4928
    %v4930 = vlaneseq
    %v4931 = vshrl.u32 %v4930, 7
    %v4932 = vsub.s32 %v4929, %v4931
    %v4933 = vrot.slane %v4926, %v4932
    %v4934 = vcombine.low %v4854, %v4855
    %v4936 = vunpack.c.l.s4 1983009808
    %v4937 = vunpack.c.0.s8 %v4936
    %v4938 = vlaneseq
    %v4939 = vshrl.u32 %v4938, 7
    %v4940 = vsub.s32 %v4937, %v4939
    %v4941 = vrot.slane %v4934, %v4940
    %v4942 = vcombine.low %v4846, %v4853
    %v4944 = vunpack.c.l.s4 1983009808
    %v4945 = vunpack.c.0.s8 %v4944
    %v4946 = vlaneseq
    %v4947 = vshrl.u32 %v4946, 7
    %v4948 = vsub.s32 %v4945, %v4947
    %v4949 = vrot.slane %v4942, %v4948
    %v4950 = vcombine.low %v4856, %v4857
    %v4952 = vunpack.c.l.s4 1983009808
    %v4953 = vunpack.c.0.s8 %v4952
    %v4954 = vlaneseq
    %v4955 = vshrl.u32 %v4954, 7
    %v4956 = vsub.s32 %v4953, %v4955
    %v4957 = vrot.slane %v4950, %v4956
    %v4958 = vcombine.low %v4933, %v4941
    %v4959 = vcombine.high %v4933, %v4941
    %v4961 = vunpack.c.l.s4 1934713408
    %v4962 = vunpack.c.0.s8 %v4961
    %v4963 = vlaneseq
    %v4964 = vshrl.u32 %v4963, 7
    %v4965 = vsub.s32 %v4962, %v4964
    %v4966 = vrot.slane %v4958, %v4965
    %v4968 = vunpack.c.l.s4 1934713408
    %v4969 = vunpack.c.0.s8 %v4968
    %v4970 = vlaneseq
    %v4971 = vshrl.u32 %v4970, 7
    %v4972 = vsub.s32 %v4969, %v4971
    %v4973 = vrot.slane %v4959, %v4972
    %v4974 = vcombine.low %v4949, %v4957
    %v4975 = vcombine.high %v4949, %v4957
    %v4977 = vunpack.c.l.s4 1934713408
    %v4978 = vunpack.c.0.s8 %v4977
    %v4979 = vlaneseq
    %v4980 = vshrl.u32 %v4979, 7
    %v4981 = vsub.s32 %v4978, %v4980
    %v4982 = vrot.slane %v4974, %v4981
    %v4984 = vunpack.c.l.s4 1934713408
    %v4985 = vunpack.c.0.s8 %v4984
    %v4986 = vlaneseq
    %v4987 = vshrl.u32 %v4986, 7
    %v4988 = vsub.s32 %v4985, %v4987
    %v4989 = vrot.slane %v4975, %v4988
    %v4990 = vcombine.low %v4966, %v4982
    %v4991 = vcombine.high %v4966, %v4982
    %v4992 = vcombine.low %v4973, %v4989
    %v4993 = vcombine.high %v4973, %v4989
    %4996 = vrot.lane.b32.xlu0 %v4923, 8
    %v4997 = vpop.permute.xlu0 %4996
    %4998 = vrot.lane.b32.xlu0 %v4991, 8
    %v4999 = vpop.permute.xlu0 %4998
    %5004 = vrot.lane.b32.xlu0 %v4924, 16
    %v5005 = vpop.permute.xlu0 %5004
    %5006 = vrot.lane.b32.xlu0 %v4992, 16
    %v5007 = vpop.permute.xlu0 %5006
    %5012 = vrot.lane.b32.xlu0 %v4925, 24
    %v5013 = vpop.permute.xlu0 %5012
    %5014 = vrot.lane.b32.xlu0 %v4993, 24
    %v5015 = vpop.permute.xlu0 %5014
    %v5018 = vsel %vm1315, %v4922, %v4997
    %v5019 = vsel %vm1315, %v4990, %v4999
    %v5020 = vsel %vm2455, %v5018, %v5005
    %v5021 = vsel %vm2455, %v5019, %v5007
    %v5022 = vsel %vm2458, %v5020, %v5013
    %v5023 = vsel %vm2458, %v5021, %v5015
    %s5024 = scalar_lea.vmem [#allocation8], 16
    %v5025 = vld [vmem:[%s5024] sm:$0xf]
    %v5026 = vld [vmem:[%s5024 + $0x4] sm:$0xf]
    %v5027 = vld [vmem:[%s5024 + $0x8] sm:$0xf]
    %v5028 = vld [vmem:[%s5024 + $0xc] sm:$0xf]
    %v5029 = vpack.c.bf16 %v5023, %v5022
    %v5031 = vlaneseq
    %v5032 = vshrl.u32 %v5031, 7
    %v5033 = vsub.s32 0, %v5032
    %v5034 = vrot.slane %v2803, %v5033
    %v5040 = vunpack.c.l.b16 %v5025
    %v5041 = vunpack.c.l.b16 %v5026
    %v5042 = vunpack.c.l.b16 %v5027
    %v5043 = vunpack.c.l.b16 %v5028
    %v5044 = vpack.c.b16 %v5041, %v5040
    %v5045 = vpack.c.b16 %v5043, %v5042
    %v5049 = vsel %vm141, %v5029, 0
    %5051 = vmatprep.subr.bf16.mxu0 0
    %5052 = vmatpush1.bf16.msra.mxu0 %v5044
    %5053 = vmatprep.subr.bf16.mxu0 0
    %5054 = vmatpush1.bf16.msra.mxu0 %v5045
    %5055 = vmatprep.subr.bf16.mxu0 0
    %5056 = vmatpush1.bf16.msra.mxu0 0
    %5057 = vmatprep.subr.bf16.mxu0 0
    %5058 = vmatpush1.bf16.msra.mxu0 0
    %5059 = vmatprep.subr.bf16.mxu0 0
    %5060 = vmatpush1.bf16.msra.mxu0 0
    %5061 = vmatprep.subr.bf16.mxu0 0
    %5062 = vmatpush1.bf16.msra.mxu0 0
    %5063 = vmatprep.subr.bf16.mxu0 0
    %5064 = vmatpush1.bf16.msra.mxu0 0
    %5065 = vmatprep.subr.bf16.mxu0 0
    %5066 = vmatpush1.bf16.msra.mxu0 0
    %5067 = vmatprep.subr.bf16.mxu0 0
    %5068 = vmatpush1.bf16.msra.mxu0 0
    %5069 = vmatprep.subr.bf16.mxu0 0
    %5070 = vmatpush1.bf16.msra.mxu0 0
    %5071 = vmatprep.subr.bf16.mxu0 0
    %5072 = vmatpush1.bf16.msra.mxu0 0
    %5073 = vmatprep.subr.bf16.mxu0 0
    %5074 = vmatpush1.bf16.msra.mxu0 0
    %5075 = vmatprep.subr.bf16.mxu0 0
    %5076 = vmatpush1.bf16.msra.mxu0 0
    %5077 = vmatprep.subr.bf16.mxu0 0
    %5078 = vmatpush1.bf16.msra.mxu0 0
    %5079 = vmatprep.subr.bf16.mxu0 0
    %5080 = vmatpush1.bf16.msra.mxu0 0
    %5081 = vmatprep.subr.bf16.mxu0 0
    %5082 = vmatpush1.bf16.msra.mxu0 0
    %5083 = vmatprep.mubr.bf16.mxu0 0
    %5084 = vmatmul.mubr.bf16.gmra.mrb[0].mxu0 %v5049
    %v5085 = vpop.f32.mrb[0].mxu0
    %v5086 = vadd.f32 %v5034, %v5085
    %v5087 = vpop.f32.mrb[0].mxu0
    %v5088 = vpop.f32.mrb[0].mxu0
    %v5089 = vadd.f32 %v5034, %v5088
    %v5090 = vpop.f32.mrb[0].mxu0
    %5091 = vdwg.mxu0
    %v5092 = vadd.f32 %v2784, %v5086
    %v5093 = vadd.f32 %v2785, %v5089
    %v5094 = vsel %vm141, %v5092, 0.0
    %5095 = vadd.xlane.f32.xlu0 %v5094
    %v5096 = vpop.xlane.xlu0 %5095
    %v5097 = vsel %vm141, %v5093, 0.0
    %5098 = vadd.xlane.f32.xlu0 %v5097
    %v5099 = vpop.xlane.xlu0 %5098
    %v5100 = vmul.f32 %v5096, %v148
    %v5101 = vmul.f32 %v5099, %v148
    %v5102 = vsub.f32 %v5092, %v5100
    %v5103 = vsub.f32 %v5093, %v5101
    %v5104 = vmul.f32 %v5102, %v5102
    %v5105 = vmul.f32 %v5103, %v5103
    %v5106 = vsel %vm141, %v5104, 0.0
    %5107 = vadd.xlane.f32.xlu0 %v5106
    %v5108 = vpop.xlane.xlu0 %5107
    %v5109 = vsel %vm141, %v5105, 0.0
    %5110 = vadd.xlane.f32.xlu0 %v5109
    %v5111 = vpop.xlane.xlu0 %5110
    %v5112 = vmul.f32 %v5108, %v148
    %v5113 = vmul.f32 %v5111, %v148
    %v5114 = vadd.f32 %v5112, 1e-12
    %v5115 = vadd.f32 %v5113, 1e-12
    %v5116 = vrsqrt.pop %v5114
    %v5117 = vrsqrt.pop %v5115
    %v5118 = vmul.f32 %v5102, %v5116
    %v5119 = vmul.f32 %v5103, %v5117
    %v5121 = vlaneseq
    %v5122 = vshrl.u32 %v5121, 7
    %v5123 = vsub.s32 0, %v5122
    %v5124 = vrot.slane %v2804, %v5123
    %v5126 = vmul.f32 %v5118, %v5124
    %v5127 = vmul.f32 %v5119, %v5124
    %v5129 = vlaneseq
    %v5130 = vshrl.u32 %v5129, 7
    %v5131 = vsub.s32 0, %v5130
    %v5132 = vrot.slane %v2805, %v5131
    %v5134 = vadd.f32 %v5126, %v5132
    %v5135 = vadd.f32 %v5127, %v5132
    %s5136 = scalar_lea.vmem [#allocation10], 16
    %v5137 = vld [vmem:[%s5136] sm:$0xf]
    %v5138 = vld [vmem:[%s5136 + $0x4] sm:$0xf]
    %v5139 = vld [vmem:[%s5136 + $0x8] sm:$0xf]
    %v5140 = vld [vmem:[%s5136 + $0xc] sm:$0xf]
    %v5141 = vpack.c.bf16 %v5135, %v5134
    %s5142 = scalar_lea.vmem [#allocation11], 1
    %v5143 = vld [vmem:[%s5142] sm:$0x1]
    %v5145 = vlaneseq
    %v5146 = vshrl.u32 %v5145, 7
    %v5147 = vsub.s32 0, %v5146
    %v5148 = vrot.slane %v5143, %v5147
    %v5154 = vunpack.c.l.b16 %v5137
    %v5155 = vunpack.c.l.b16 %v5138
    %v5156 = vunpack.c.l.b16 %v5139
    %v5157 = vunpack.c.l.b16 %v5140
    %v5158 = vpack.c.b16 %v5155, %v5154
    %v5159 = vpack.c.b16 %v5157, %v5156
    %v5163 = vsel %vm141, %v5141, 0
    %5165 = vmatprep.subr.bf16.mxu0 0
    %5166 = vmatpush1.bf16.msra.mxu0 %v5158
    %5167 = vmatprep.subr.bf16.mxu0 0
    %5168 = vmatpush1.bf16.msra.mxu0 %v5159
    %5169 = vmatprep.subr.bf16.mxu0 0
    %5170 = vmatpush1.bf16.msra.mxu0 0
    %5171 = vmatprep.subr.bf16.mxu0 0
    %5172 = vmatpush1.bf16.msra.mxu0 0
    %5173 = vmatprep.subr.bf16.mxu0 0
    %5174 = vmatpush1.bf16.msra.mxu0 0
    %5175 = vmatprep.subr.bf16.mxu0 0
    %5176 = vmatpush1.bf16.msra.mxu0 0
    %5177 = vmatprep.subr.bf16.mxu0 0
    %5178 = vmatpush1.bf16.msra.mxu0 0
    %5179 = vmatprep.subr.bf16.mxu0 0
    %5180 = vmatpush1.bf16.msra.mxu0 0
    %5181 = vmatprep.subr.bf16.mxu0 0
    %5182 = vmatpush1.bf16.msra.mxu0 0
    %5183 = vmatprep.subr.bf16.mxu0 0
    %5184 = vmatpush1.bf16.msra.mxu0 0
    %5185 = vmatprep.subr.bf16.mxu0 0
    %5186 = vmatpush1.bf16.msra.mxu0 0
    %5187 = vmatprep.subr.bf16.mxu0 0
    %5188 = vmatpush1.bf16.msra.mxu0 0
    %5189 = vmatprep.subr.bf16.mxu0 0
    %5190 = vmatpush1.bf16.msra.mxu0 0
    %5191 = vmatprep.subr.bf16.mxu0 0
    %5192 = vmatpush1.bf16.msra.mxu0 0
    %5193 = vmatprep.subr.bf16.mxu0 0
    %5194 = vmatpush1.bf16.msra.mxu0 0
    %5195 = vmatprep.subr.bf16.mxu0 0
    %5196 = vmatpush1.bf16.msra.mxu0 0
    %5197 = vmatprep.mubr.bf16.mxu0 0
    %5198 = vmatmul.mubr.bf16.gmra.mrb[0].mxu0 %v5163
    %v5199 = vpop.f32.mrb[0].mxu0
    %v5200 = vadd.f32 %v5148, %v5199
    %v5201 = vpop.f32.mrb[0].mxu0
    %v5202 = vpop.f32.mrb[0].mxu0
    %v5203 = vadd.f32 %v5148, %v5202
    %v5204 = vpop.f32.mrb[0].mxu0
    %5205 = vdwg.mxu0
    %v5206 = vmul.f32 %v5200, %v5200
    %v5207 = vmul.f32 %v5203, %v5203
    %v5208 = vmul.f32 %v5200, %v5206
    %v5209 = vmul.f32 %v5203, %v5207
    %v5210 = vmul.f32 %v5208, 0.044715
    %v5211 = vmul.f32 %v5209, 0.044715
    %v5212 = vadd.f32 %v5200, %v5210
    %v5213 = vadd.f32 %v5203, %v5211
    %v5214 = vmul.f32 %v5212, 0.7978846
    %v5215 = vmul.f32 %v5213, 0.7978846
    %v5216 = vtanh.pop %v5214
    %v5217 = vtanh.pop %v5215
    %v5218 = vadd.f32 %v5216, 1.0
    %v5219 = vadd.f32 %v5217, 1.0
    %v5220 = vmul.f32 %v5218, 0.5
    %v5221 = vmul.f32 %v5219, 0.5
    %v5222 = vmul.f32 %v5200, %v5220
    %v5223 = vmul.f32 %v5203, %v5221
    %s5224 = scalar_lea.vmem %s8, 32
    %v5225 = vld [vmem:[%s5224] sm:$0xf]
    %v5226 = vld [vmem:[%s5224 + $0x4] sm:$0xf]
    %v5227 = vld [vmem:[%s5224 + $0x8] sm:$0xf]
    %v5228 = vld [vmem:[%s5224 + $0xc] sm:$0xf]
    %v5229 = vld [vmem:[%s5224 + $0x10] sm:$0xf]
    %v5230 = vld [vmem:[%s5224 + $0x14] sm:$0xf]
    %v5231 = vld [vmem:[%s5224 + $0x18] sm:$0xf]
    %v5232 = vld [vmem:[%s5224 + $0x1c] sm:$0xf]
    %v5233 = vpack.c.bf16 %v5223, %v5222
    %v5235 = vlaneseq
    %v5236 = vshrl.u32 %v5235, 7
    %v5237 = vsub.s32 0, %v5236
    %v5238 = vrot.slane %v2806, %v5237
    %v5248 = vunpack.c.l.b16 %v5225
    %v5249 = vunpack.c.l.b16 %v5226
    %v5250 = vunpack.c.l.b16 %v5227
    %v5251 = vunpack.c.l.b16 %v5228
    %v5252 = vunpack.c.l.b16 %v5229
    %v5253 = vunpack.c.l.b16 %v5230
    %v5254 = vunpack.c.l.b16 %v5231
    %v5255 = vunpack.c.l.b16 %v5232
    %v5256 = vpack.c.b16 %v5249, %v5248
    %v5257 = vpack.c.b16 %v5251, %v5250
    %v5258 = vpack.c.b16 %v5253, %v5252
    %v5259 = vpack.c.b16 %v5255, %v5254
    %v5265 = vsel %vm2697, %v5233, 0
    %5267 = vmatprep.subr.bf16.mxu0 0
    %5268 = vmatpush1.bf16.msra.mxu0 %v5256
    %5269 = vmatprep.subr.bf16.mxu0 0
    %5270 = vmatpush1.bf16.msra.mxu0 %v5257
    %5271 = vmatprep.subr.bf16.mxu0 0
    %5272 = vmatpush1.bf16.msra.mxu0 %v5258
    %5273 = vmatprep.subr.bf16.mxu0 0
    %5274 = vmatpush1.bf16.msra.mxu0 %v5259
    %5275 = vmatprep.subr.bf16.mxu0 0
    %5276 = vmatpush1.bf16.msra.mxu0 0
    %5277 = vmatprep.subr.bf16.mxu0 0
    %5278 = vmatpush1.bf16.msra.mxu0 0
    %5279 = vmatprep.subr.bf16.mxu0 0
    %5280 = vmatpush1.bf16.msra.mxu0 0
    %5281 = vmatprep.subr.bf16.mxu0 0
    %5282 = vmatpush1.bf16.msra.mxu0 0
    %5283 = vmatprep.subr.bf16.mxu0 0
    %5284 = vmatpush1.bf16.msra.mxu0 0
    %5285 = vmatprep.subr.bf16.mxu0 0
    %5286 = vmatpush1.bf16.msra.mxu0 0
    %5287 = vmatprep.subr.bf16.mxu0 0
    %5288 = vmatpush1.bf16.msra.mxu0 0
    %5289 = vmatprep.subr.bf16.mxu0 0
    %5290 = vmatpush1.bf16.msra.mxu0 0
    %5291 = vmatprep.subr.bf16.mxu0 0
    %5292 = vmatpush1.bf16.msra.mxu0 0
    %5293 = vmatprep.subr.bf16.mxu0 0
    %5294 = vmatpush1.bf16.msra.mxu0 0
    %5295 = vmatprep.subr.bf16.mxu0 0
    %5296 = vmatpush1.bf16.msra.mxu0 0
    %5297 = vmatprep.subr.bf16.mxu0 0
    %5298 = vmatpush1.bf16.msra.mxu0 0
    %5299 = vmatprep.mubr.bf16.mxu0 0
    %5300 = vmatmul.mubr.bf16.gmra.mrb[0].mxu0 %v5265
    %v5301 = vpop.f32.mrb[0].mxu0
    %v5302 = vadd.f32 %v5238, %v5301
    %v5303 = vpop.f32.mrb[0].mxu0
    %v5304 = vpop.f32.mrb[0].mxu0
    %v5305 = vadd.f32 %v5238, %v5304
    %v5306 = vpop.f32.mrb[0].mxu0
    %5307 = vdwg.mxu0
    %v5308 = vadd.f32 %v5134, %v5302
    %v5309 = vadd.f32 %v5135, %v5305
    %v5310 = vsel %vm141, %v5308, 0.0
    %5311 = vadd.xlane.f32.xlu0 %v5310
    %v5312 = vpop.xlane.xlu0 %5311
    %v5313 = vsel %vm141, %v5309, 0.0
    %5314 = vadd.xlane.f32.xlu0 %v5313
    %v5315 = vpop.xlane.xlu0 %5314
    %v5316 = vmul.f32 %v5312, %v148
    %v5317 = vmul.f32 %v5315, %v148
    %v5318 = vsub.f32 %v5308, %v5316
    %v5319 = vsub.f32 %v5309, %v5317
    %v5320 = vmul.f32 %v5318, %v5318
    %v5321 = vmul.f32 %v5319, %v5319
    %v5322 = vsel %vm141, %v5320, 0.0
    %5323 = vadd.xlane.f32.xlu0 %v5322
    %v5324 = vpop.xlane.xlu0 %5323
    %v5325 = vsel %vm141, %v5321, 0.0
    %5326 = vadd.xlane.f32.xlu0 %v5325
    %v5327 = vpop.xlane.xlu0 %5326
    %v5328 = vmul.f32 %v5324, %v148
    %v5329 = vmul.f32 %v5327, %v148
    %v5330 = vadd.f32 %v5328, 1e-12
    %v5331 = vadd.f32 %v5329, 1e-12
    %v5332 = vrsqrt.pop %v5330
    %v5333 = vrsqrt.pop %v5331
    %v5334 = vmul.f32 %v5318, %v5332
    %v5335 = vmul.f32 %v5319, %v5333
    %v5337 = vlaneseq
    %v5338 = vshrl.u32 %v5337, 7
    %v5339 = vsub.s32 0, %v5338
    %v5340 = vrot.slane %v2807, %v5339
    %v5342 = vmul.f32 %v5334, %v5340
    %v5343 = vmul.f32 %v5335, %v5340
    %v5345 = vlaneseq
    %v5346 = vshrl.u32 %v5345, 7
    %v5347 = vsub.s32 0, %v5346
    %v5348 = vrot.slane %v2808, %v5347
    %v5350 = vadd.f32 %v5342, %v5348
    %v5351 = vadd.f32 %v5343, %v5348
    %v5352 = vld [vmem:[%s9] sm:$0xf]
    %v5353 = vld [vmem:[%s9 + $0x4] sm:$0xf]
    %v5354 = vld [vmem:[%s9 + $0x8] sm:$0xf]
    %v5355 = vld [vmem:[%s9 + $0xc] sm:$0xf]
    %v5356 = vpack.c.bf16 %v5350, %v5350
    %v5357 = vpack.c.bf16 %v5351, %v5351
    %s5358 = scalar_lea.vmem [#allocation7], 2
    %v5359 = vld [vmem:[%s5358] sm:$0x1]
    %v5361 = vlaneseq
    %v5362 = vshrl.u32 %v5361, 7
    %v5363 = vsub.s32 0, %v5362
    %v5364 = vrot.slane %v5359, %v5363
    %v5368 = vunpack.c.l.b16 %v5356
    %v5369 = vunpack.c.l.b16 %v5357
    %v5370 = vrot.slane %v5369, 7
    %vm5371 = vcmask 1041409
    %v5372 = vsel %vm5371, %v5370, %v5368
    %v5373 = vpack.c.b16 %v5372, %v5372
    %v5378 = vunpack.c.l.b16 %v5352
    %v5379 = vunpack.c.l.b16 %v5353
    %v5380 = vunpack.c.l.b16 %v5354
    %v5381 = vunpack.c.l.b16 %v5355
    %v5382 = vpack.c.b16 %v5379, %v5378
    %v5383 = vpack.c.b16 %v5381, %v5380
    %v5387 = vsel %vm141, %v5373, 0
    %5389 = vmatprep.subr.bf16.mxu0 0
    %5390 = vmatpush1.bf16.msra.mxu0 %v5382
    %5391 = vmatprep.subr.bf16.mxu0 0
    %5392 = vmatpush1.bf16.msra.mxu0 %v5383
    %5393 = vmatprep.subr.bf16.mxu0 0
    %5394 = vmatpush1.bf16.msra.mxu0 0
    %5395 = vmatprep.subr.bf16.mxu0 0
    %5396 = vmatpush1.bf16.msra.mxu0 0
    %5397 = vmatprep.subr.bf16.mxu0 0
    %5398 = vmatpush1.bf16.msra.mxu0 0
    %5399 = vmatprep.subr.bf16.mxu0 0
    %5400 = vmatpush1.bf16.msra.mxu0 0
    %5401 = vmatprep.subr.bf16.mxu0 0
    %5402 = vmatpush1.bf16.msra.mxu0 0
    %5403 = vmatprep.subr.bf16.mxu0 0
    %5404 = vmatpush1.bf16.msra.mxu0 0
    %5405 = vmatprep.subr.bf16.mxu0 0
    %5406 = vmatpush1.bf16.msra.mxu0 0
    %5407 = vmatprep.subr.bf16.mxu0 0
    %5408 = vmatpush1.bf16.msra.mxu0 0
    %5409 = vmatprep.subr.bf16.mxu0 0
    %5410 = vmatpush1.bf16.msra.mxu0 0
    %5411 = vmatprep.subr.bf16.mxu0 0
    %5412 = vmatpush1.bf16.msra.mxu0 0
    %5413 = vmatprep.subr.bf16.mxu0 0
    %5414 = vmatpush1.bf16.msra.mxu0 0
    %5415 = vmatprep.subr.bf16.mxu0 0
    %5416 = vmatpush1.bf16.msra.mxu0 0
    %5417 = vmatprep.subr.bf16.mxu0 0
    %5418 = vmatpush1.bf16.msra.mxu0 0
    %5419 = vmatprep.subr.bf16.mxu0 0
    %5420 = vmatpush1.bf16.msra.mxu0 0
    %5421 = vmatprep.mubr.bf16.mxu0 0
    %5422 = vmatmul.mubr.bf16.gmra.mrb[0].mxu0 %v5387
    %v5423 = vpop.f32.mrb[0].mxu0
    %v5424 = vadd.f32 %v5364, %v5423
    %v5425 = vpop.f32.mrb[0].mxu0
    %v5426 = vpop.f32.mrb[0].mxu0
    %v5427 = vpop.f32.mrb[0].mxu0
    %5428 = vdwg.mxu0
    %v5429 = vtanh.pop %v5424
    %v5430 = vld [vmem:[#allocation13] sm:$0xf]
    %v5431 = vld [vmem:[#allocation13 + $0x4] sm:$0xf]
    %v5432 = vld [vmem:[#allocation13 + $0x8] sm:$0xf]
    %v5433 = vld [vmem:[#allocation13 + $0xc] sm:$0xf]
    %v5434 = vpack.c.bf16 %v5429, %v5429
    %v5435 = vld [vmem:[%s11] sm:$0x1]
    %v5437 = vlaneseq
    %v5438 = vshrl.u32 %v5437, 7
    %v5439 = vsub.s32 0, %v5438
    %v5440 = vrot.slane %v5435, %v5439
    %v5446 = vunpack.c.l.b16 %v5430
    %v5447 = vunpack.c.l.b16 %v5431
    %v5448 = vunpack.c.l.b16 %v5432
    %v5449 = vunpack.c.l.b16 %v5433
    %v5450 = vpack.c.b16 %v5447, %v5446
    %v5451 = vpack.c.b16 %v5449, %v5448
    %v5455 = vsel %vm141, %v5434, 0
    %5457 = vmatprep.subr.bf16.mxu0 0
    %5458 = vmatpush1.bf16.msra.mxu0 %v5450
    %5459 = vmatprep.subr.bf16.mxu0 0
    %5460 = vmatpush1.bf16.msra.mxu0 %v5451
    %5461 = vmatprep.subr.bf16.mxu0 0
    %5462 = vmatpush1.bf16.msra.mxu0 0
    %5463 = vmatprep.subr.bf16.mxu0 0
    %5464 = vmatpush1.bf16.msra.mxu0 0
    %5465 = vmatprep.subr.bf16.mxu0 0
    %5466 = vmatpush1.bf16.msra.mxu0 0
    %5467 = vmatprep.subr.bf16.mxu0 0
    %5468 = vmatpush1.bf16.msra.mxu0 0
    %5469 = vmatprep.subr.bf16.mxu0 0
    %5470 = vmatpush1.bf16.msra.mxu0 0
    %5471 = vmatprep.subr.bf16.mxu0 0
    %5472 = vmatpush1.bf16.msra.mxu0 0
    %5473 = vmatprep.subr.bf16.mxu0 0
    %5474 = vmatpush1.bf16.msra.mxu0 0
    %5475 = vmatprep.subr.bf16.mxu0 0
    %5476 = vmatpush1.bf16.msra.mxu0 0
    %5477 = vmatprep.subr.bf16.mxu0 0
    %5478 = vmatpush1.bf16.msra.mxu0 0
    %5479 = vmatprep.subr.bf16.mxu0 0
    %5480 = vmatpush1.bf16.msra.mxu0 0
    %5481 = vmatprep.subr.bf16.mxu0 0
    %5482 = vmatpush1.bf16.msra.mxu0 0
    %5483 = vmatprep.subr.bf16.mxu0 0
    %5484 = vmatpush1.bf16.msra.mxu0 0
    %5485 = vmatprep.subr.bf16.mxu0 0
    %5486 = vmatpush1.bf16.msra.mxu0 0
    %5487 = vmatprep.subr.bf16.mxu0 0
    %5488 = vmatpush1.bf16.msra.mxu0 0
    %5489 = vmatprep.mubr.bf16.mxu0 0
    %5490 = vmatmul.mubr.bf16.gmra.mrb[0].mxu0 %v5455
    %v5491 = vpop.f32.mrb[0].mxu0
    %v5492 = vadd.f32 %v5440, %v5491
    %v5493 = vpop.f32.mrb[0].mxu0
    %v5494 = vpop.f32.mrb[0].mxu0
    %v5495 = vpop.f32.mrb[0].mxu0
    %5496 = vdwg.mxu0
    %5497 = vst [vmem:[#allocation14] sm:$0x3] %v5492
    // Predicated region
    $region78: #{tpu_custom_call.1} parent=1 // pred_check
      _
    $region79: #{tpu_custom_call.1} parent=1 // pred_check_branch
      %5499 = sbr.rel (0) target = $region81
    $region80: #{tpu_custom_call.1} parent=1 // pred_region
      %s5501 = ssub.s32 32, 32
      %5502 = vsyncadd [#allocation4], %s5501
      %s5504 = sshll.u32 [#allocation14], 4
      %s5505 = int_to_ptr.vmem [resolvable:$true] %s5504
      %5507 = dma.vmem_to_hbm [thread:$0]  %s5505, 32, %s12, [#allocation4]
    $region81: #{tpu_custom_call.1} parent=1 // pred_fallthru
      _
    // Predicated region
    $region82: #{tpu_custom_call.1} parent=1 // pred_check
      _
    $region83: #{tpu_custom_call.1} parent=1 // pred_check_branch
      %5509 = sbr.rel (0) target = $region85
    $region84: #{tpu_custom_call.1} parent=1 // pred_region
      %5510 = dma.done [#allocation4], 32
    $region85: #{tpu_custom_call.1} parent=1 // pred_fallthru
      _
    %5511 = vsyncpa [#allocation3], 1
    %5512 = vsyncpa [#allocation6], 1
    %5513 = vsyncpa [#allocation9], 1
    %5514 = vsyncpa [#allocation12], 1
    %5515 = vsyncpa [#allocation4], 1

</llo_original>
